<compile_context>
chip_gen: v5e
topology: v5e:2x2
jax: 0.10.0
libtpu: 0.0.40
codegen_flags: <defaults>
</compile_context>

<pallas_src>
import functools
import math

import jax
import jax.numpy as jnp
from jax import lax
from jax.experimental import pallas as pl
from jax.experimental.pallas import tpu as pltpu


# 48 MiB: above the 16/32 MiB scoped defaults, below v7x's 64 MiB physical VMEM.
_VMEM_LIMIT = 48 * 1024 * 1024


def _ceil_to(x, m):
    return -(-x // m) * m


# --------------------------------------------------------------------------- #
# single-pass BatchNorm batch statistics (train-mode forward, biased variance)
# --------------------------------------------------------------------------- #
def _bn_scale_shift(x, gamma, beta, eps):
    C = x.shape[-1]
    xf = x.reshape(-1, C)
    m = jnp.mean(xf, axis=0)
    m2 = jnp.mean(xf * xf, axis=0)
    var = jnp.maximum(m2 - m * m, 0.0)
    scale = gamma * lax.rsqrt(var + eps)
    shift = beta - m * scale
    return scale, shift


# --------------------------------------------------------------------------- #
# Kernel 1: fused BN+ReLU prologue + tiled MXU matmul (1x1x1 convs)
#   relu(x*scale+shift) @ W, bf16 operands, f32 accumulation over the K grid.
# --------------------------------------------------------------------------- #
def _bn_mm_kernel(x_ref, s_ref, b_ref, w_ref, o_ref, acc_ref):
    @pl.when(pl.program_id(2) == 0)
    def _():
        acc_ref[...] = jnp.zeros_like(acc_ref)

    a = jnp.maximum(x_ref[...] * s_ref[...] + b_ref[...], 0.0).astype(jnp.bfloat16)
    acc_ref[...] += jnp.dot(a, w_ref[...], preferred_element_type=jnp.float32)

    @pl.when(pl.program_id(2) == pl.num_programs(2) - 1)
    def _():
        o_ref[...] = acc_ref[...]


def bn_relu_matmul(x2d, scale, shift, w_bf16, tm_max=512, tn_max=512, tk_max=512):
    """relu(x2d*scale+shift) @ w.  x2d: [M,K] f32, w: [K,N] bf16 -> [M,N] f32.

    Small channel dims (K, N <= max tile) are kept as a single full-extent
    block so no zero-padding to 128 multiples is needed; larger dims are
    tiled with 128-aligned tiles.
    """
    M, K = x2d.shape
    K2, N = w_bf16.shape
    assert K == K2
    tk = K if K <= tk_max else tk_max          # tk_max is a multiple of 128
    tn = N if N <= tn_max else 256
    tm = min(tm_max, _ceil_to(M, 8))
    Kp, Np, Mp = _ceil_to(K, tk), _ceil_to(N, tn), _ceil_to(M, tm)

    xp = x2d if (Mp == M and Kp == K) else jnp.pad(x2d, ((0, Mp - M), (0, Kp - K)))
    sp = scale.reshape(1, K)
    bp = shift.reshape(1, K)
    if Kp != K:
        sp = jnp.pad(sp, ((0, 0), (0, Kp - K)))
        bp = jnp.pad(bp, ((0, 0), (0, Kp - K)))
    wp = w_bf16 if (Kp == K and Np == N) else jnp.pad(
        w_bf16, ((0, Kp - K), (0, Np - N)))

    out = pl.pallas_call(
        _bn_mm_kernel,
        out_shape=jax.ShapeDtypeStruct((Mp, Np), jnp.float32),
        grid_spec=pltpu.PrefetchScalarGridSpec(
            num_scalar_prefetch=0,
            grid=(Mp // tm, Np // tn, Kp // tk),
            in_specs=[pl.BlockSpec((tm, tk), lambda i, j, k: (i, k)),
                      pl.BlockSpec((1, tk), lambda i, j, k: (0, k)),
                      pl.BlockSpec((1, tk), lambda i, j, k: (0, k)),
                      pl.BlockSpec((tk, tn), lambda i, j, k: (k, j))],
            out_specs=pl.BlockSpec((tm, tn), lambda i, j, k: (i, j)),
            scratch_shapes=[pltpu.VMEM((tm, tn), jnp.float32)]),
        compiler_params=pltpu.CompilerParams(
            dimension_semantics=("parallel", "parallel", "arbitrary"),
            vmem_limit_bytes=_VMEM_LIMIT),
    )(xp, sp, bp, wp)
    if Mp != M or Np != N:
        out = out[:M, :N]
    return out


def conv1x1_bnrelu(x, gamma, beta, w_bf16, eps=1e-5):
    """norm + relu + 1x1x1 conv (no bias).  x: [N,D,H,W,C] f32."""
    N, D, H, W, C = x.shape
    scale, shift = _bn_scale_shift(x, gamma, beta, eps)
    y = bn_relu_matmul(x.reshape(-1, C), scale, shift, w_bf16)
    return y.reshape(N, D, H, W, w_bf16.shape[1])


# --------------------------------------------------------------------------- #
# Kernel 2: direct 3x3x3 dense conv with fused BN+ReLU (no im2col).
#   Activation (padded, flattened over D*H*W) is VMEM-resident per batch item,
#   one matmul against the tap-packed weight [Cin, 27*Cout], then the 27 taps
#   are combined with static shifted adds (constant flattened offsets).
# --------------------------------------------------------------------------- #
def _dense_conv_kernel(x_ref, s_ref, b_ref, m_ref, w_ref, o_ref, *,
                       offs, s_out, cout):
    a = jnp.maximum(x_ref[0] * s_ref[...] + b_ref[...], 0.0)
    a = (a * m_ref[...]).astype(jnp.bfloat16)          # zero the conv padding ring
    p = jnp.dot(a, w_ref[...], preferred_element_type=jnp.float32)  # (S_p, 27*Cout)
    acc = p[offs[0]:offs[0] + s_out, 0:cout]
    for t in range(1, len(offs)):
        acc = acc + p[offs[t]:offs[t] + s_out, t * cout:(t + 1) * cout]
    o_ref[0] = acc


def conv3x3_bnrelu(x, gamma, beta, w_packed, cout, eps=1e-5):
    """norm + relu + 3x3x3 conv (stride 1, pad 1, no bias).  x: [N,D,H,W,C]."""
    N, D, H, W, C = x.shape
    k, pad = 3, 1
    scale, shift = _bn_scale_shift(x, gamma, beta, eps)
    Dp, Hp, Wp = D + 2 * pad, H + 2 * pad, W + 2 * pad
    S_p = Dp * Hp * Wp
    xp = jnp.pad(x, ((0, 0), (pad, pad), (pad, pad), (pad, pad), (0, 0)))
    xp = xp.reshape(N, S_p, C)
    mask = jnp.zeros((Dp, Hp, Wp), jnp.float32)
    mask = mask.at[pad:pad + D, pad:pad + H, pad:pad + W].set(1.0).reshape(S_p, 1)
    offs = tuple(kd * Hp * Wp + kh * Wp + kw
                 for kd in range(k) for kh in range(k) for kw in range(k))
    off_max = offs[-1]
    s_out = S_p - off_max
    ncols = w_packed.shape[1]
    kern = functools.partial(_dense_conv_kernel, offs=offs, s_out=s_out, cout=cout)
    # TODO(synk): for large volumes, tile over D-slabs (manual halo DMA) instead
    # of one whole padded volume per batch item.
    out = pl.pallas_call(
        kern,
        out_shape=jax.ShapeDtypeStruct((N, s_out, cout), jnp.float32),
        grid_spec=pltpu.PrefetchScalarGridSpec(
            num_scalar_prefetch=0,
            grid=(N,),
            in_specs=[pl.BlockSpec((1, S_p, C), lambda n: (n, 0, 0)),
                      pl.BlockSpec((1, C), lambda n: (0, 0)),
                      pl.BlockSpec((1, C), lambda n: (0, 0)),
                      pl.BlockSpec((S_p, 1), lambda n: (0, 0)),
                      pl.BlockSpec((C, ncols), lambda n: (0, 0))],
            out_specs=pl.BlockSpec((1, s_out, cout), lambda n: (n, 0, 0))),
        compiler_params=pltpu.CompilerParams(
            dimension_semantics=("parallel",),
            vmem_limit_bytes=_VMEM_LIMIT),
    )(xp, scale.reshape(1, C), shift.reshape(1, C), mask, w_packed)
    # recover valid rows: out rows are indexed by flattened padded coords
    y = jnp.pad(out, ((0, 0), (0, off_max), (0, 0)))
    y = y.reshape(N, Dp, Hp, Wp, cout)[:, :D, :H, :W, :]
    return y


# --------------------------------------------------------------------------- #
# Kernel 3: standalone BN+ReLU (norm0), lane-dense (rows, 128) tiled layout
#           when C divides 128; generic row-tiled fallback otherwise.
# --------------------------------------------------------------------------- #
def _bnrelu_kernel(x_ref, s_ref, b_ref, o_ref):
    o_ref[...] = jnp.maximum(x_ref[...] * s_ref[...] + b_ref[...], 0.0)


def bn_relu(x, gamma, beta, eps=1e-5):
    N, D, H, W, C = x.shape
    scale, shift = _bn_scale_shift(x, gamma, beta, eps)
    lane_dense = (128 % C == 0)
    if lane_dense:
        rep = 128 // C
        L = N * D * H * W * C
        R = _ceil_to(L, 128) // 128
        tr = min(512, _ceil_to(R, 8))
        Rp = _ceil_to(R, tr)
        xf = jnp.pad(x.reshape(-1), (0, Rp * 128 - L)).reshape(Rp, 128)
        s2 = jnp.tile(scale, rep).reshape(1, 128)
        b2 = jnp.tile(shift, rep).reshape(1, 128)
        cols = 128
    else:
        M = N * D * H * W
        tr = min(512, _ceil_to(M, 8))
        Rp = _ceil_to(M, tr)
        xf = jnp.pad(x.reshape(M, C), ((0, Rp - M), (0, 0)))
        s2, b2 = scale.reshape(1, C), shift.reshape(1, C)
        cols = C
    y = pl.pallas_call(
        _bnrelu_kernel,
        out_shape=jax.ShapeDtypeStruct((Rp, cols), jnp.float32),
        grid_spec=pltpu.PrefetchScalarGridSpec(
            num_scalar_prefetch=0,
            grid=(Rp // tr,),
            in_specs=[pl.BlockSpec((tr, cols), lambda i: (i, 0)),
                      pl.BlockSpec((1, cols), lambda i: (0, 0)),
                      pl.BlockSpec((1, cols), lambda i: (0, 0))],
            out_specs=pl.BlockSpec((tr, cols), lambda i: (i, 0))),
        compiler_params=pltpu.CompilerParams(
            dimension_semantics=("parallel",),
            vmem_limit_bytes=_VMEM_LIMIT),
    )(xf, s2, b2)
    if lane_dense:
        return y.reshape(-1)[: N * D * H * W * C].reshape(N, D, H, W, C)
    return y[: N * D * H * W].reshape(N, D, H, W, C)


# --------------------------------------------------------------------------- #
# Kernel 4: fused head = norm5 + relu + adaptive_avg_pool(1) + flatten + linear
# --------------------------------------------------------------------------- #
def _head_kernel(x_ref, s_ref, b_ref, w_ref, bias_ref, o_ref):
    a = jnp.maximum(x_ref[...] * s_ref[...] + b_ref[...], 0.0)   # (N, S, C)
    pooled = jnp.mean(a, axis=1)                                 # (N, C)
    o_ref[...] = jnp.dot(pooled, w_ref[...],
                         preferred_element_type=jnp.float32) + bias_ref[...]


def head_bnrelu_gap_fc(x, gamma, beta, fc_w, fc_b, eps=1e-5):
    N, D, H, W, C = x.shape
    scale, shift = _bn_scale_shift(x, gamma, beta, eps)
    S = D * H * W
    O = fc_w.shape[1]
    return pl.pallas_call(
        _head_kernel,
        out_shape=jax.ShapeDtypeStruct((N, O), jnp.float32),
        compiler_params=pltpu.CompilerParams(vmem_limit_bytes=_VMEM_LIMIT),
    )(x.reshape(N, S, C), scale.reshape(1, 1, C), shift.reshape(1, 1, C),
      fc_w, fc_b.reshape(1, O))


# ------------------------------ pooling glue -------------------------------- #
def maxpool3d(x, k=3, s=2, p=1):
    return lax.reduce_window(
        x, -jnp.inf, lax.max,
        (1, k, k, k, 1), (1, s, s, s, 1),
        ((0, 0), (p, p), (p, p), (p, p), (0, 0)))


def avgpool3d(x, k=2, s=2):
    summed = lax.reduce_window(
        x, 0.0, lax.add, (1, k, k, k, 1), (1, s, s, s, 1), "VALID")
    return summed / float(k ** 3)


# --------------------------- parameter init / pack -------------------------- #
def _kaiming_normal(key, shape_pt):
    fan_in = int(math.prod(shape_pt[1:]))
    std = math.sqrt(2.0 / fan_in)
    return std * jax.random.normal(key, shape_pt, jnp.float32)


def init_params(key, in_channels, out_channels, init_features, growth_rate,
                block_config, bn_size):
    cnt = [0]

    def nk():
        cnt[0] += 1
        return jax.random.fold_in(key, cnt[0])

    p = {}
    p["conv0"] = _kaiming_normal(nk(), (init_features, in_channels, 7, 7, 7))
    p["norm0_g"] = jnp.ones((init_features,), jnp.float32)
    p["norm0_b"] = jnp.zeros((init_features,), jnp.float32)
    ch = init_features
    for i, num_layers in enumerate(block_config):
        for l in range(num_layers):
            mid = bn_size * growth_rate
            p[f"block{i}_layer{l}"] = {
                "n1g": jnp.ones((ch,), jnp.float32),
                "n1b": jnp.zeros((ch,), jnp.float32),
                "c1": _kaiming_normal(nk(), (mid, ch, 1, 1, 1)),
                "n2g": jnp.ones((mid,), jnp.float32),
                "n2b": jnp.zeros((mid,), jnp.float32),
                "c2": _kaiming_normal(nk(), (growth_rate, mid, 3, 3, 3)),
            }
            ch += growth_rate
        if i == len(block_config) - 1:
            p["norm5_g"] = jnp.ones((ch,), jnp.float32)
            p["norm5_b"] = jnp.zeros((ch,), jnp.float32)
        else:
            oc = ch // 2
            p[f"trans{i}"] = {
                "ng": jnp.ones((ch,), jnp.float32),
                "nb": jnp.zeros((ch,), jnp.float32),
                "conv": _kaiming_normal(nk(), (oc, ch, 1, 1, 1)),
            }
            ch = oc
    bound = 1.0 / math.sqrt(ch)
    p["fc_w"] = jax.random.uniform(nk(), (out_channels, ch), jnp.float32,
                                   -bound, bound)
    p["fc_b"] = jnp.zeros((out_channels,), jnp.float32)
    return p, ch


def _pack_w1(w):
    # PyTorch [Cout, Cin, 1,1,1] -> [Cin, Cout] bf16
    cout, cin = w.shape[0], w.shape[1]
    return jnp.transpose(w.reshape(cout, cin), (1, 0)).astype(jnp.bfloat16)


def _pack_w3(w):
    # PyTorch [Cout, Cin, 3,3,3] -> tap-packed [Cin, ceil(27*Cout/128)*128] bf16
    cout, cin, k = w.shape[0], w.shape[1], w.shape[2]
    wp = jnp.transpose(w, (1, 2, 3, 4, 0)).reshape(cin, k * k * k * cout)
    ncols = _ceil_to(k * k * k * cout, 128)
    return jnp.pad(wp, ((0, 0), (0, ncols - k * k * k * cout))).astype(jnp.bfloat16)


def pack_params(p, block_config):
    """One-time weight repacking (transpose / flatten / bf16) outside the forward."""
    q = {
        "conv0": jnp.transpose(p["conv0"], (2, 3, 4, 1, 0)),   # DHWIO
        "norm0_g": p["norm0_g"], "norm0_b": p["norm0_b"],
        "norm5_g": p["norm5_g"], "norm5_b": p["norm5_b"],
        "fc_w": jnp.transpose(p["fc_w"], (1, 0)),              # [C, O]
        "fc_b": p["fc_b"],
    }
    for i, num_layers in enumerate(block_config):
        for l in range(num_layers):
            lp = p[f"block{i}_layer{l}"]
            q[f"block{i}_layer{l}"] = {
                "n1g": lp["n1g"], "n1b": lp["n1b"], "w1": _pack_w1(lp["c1"]),
                "n2g": lp["n2g"], "n2b": lp["n2b"], "w2": _pack_w3(lp["c2"]),
            }
        if i != len(block_config) - 1:
            tp = p[f"trans{i}"]
            q[f"trans{i}"] = {"ng": tp["ng"], "nb": tp["nb"],
                              "w": _pack_w1(tp["conv"])}
    return q


# ------------------------------- forward pass ------------------------------- #
def densenet_forward(x_ncdhw, params, *, block_config, growth_rate):
    # PyTorch NCDHW input -> TPU-friendly NDHWC
    x = jnp.transpose(x_ncdhw, (0, 2, 3, 4, 1)).astype(jnp.float32)

    # conv0 (7x7x7 s2 p3): tiny FLOP share -> XLA conv (avoids 343-tap im2col)
    # TODO(synk): stem conv + max/avg pooling stay on XLA (reduce_window / conv);
    # they have no clean, profitable Pallas mapping at these sizes.
    x = lax.conv_general_dilated(
        x, params["conv0"], window_strides=(2, 2, 2),
        padding=((3, 3), (3, 3), (3, 3)),
        dimension_numbers=("NDHWC", "DHWIO", "NDHWC"))
    x = bn_relu(x, params["norm0_g"], params["norm0_b"])         # norm0 + relu0
    x = maxpool3d(x, 3, 2, 1)                                    # pool0

    for i, num_layers in enumerate(block_config):
        for l in range(num_layers):
            lp = params[f"block{i}_layer{l}"]
            y = conv1x1_bnrelu(x, lp["n1g"], lp["n1b"], lp["w1"])   # norm1+relu1+conv1
            y = conv3x3_bnrelu(y, lp["n2g"], lp["n2b"], lp["w2"],   # norm2+relu2+conv2
                               cout=growth_rate)
            # TODO(synk): replace concat with a preallocated channel slab
            # (dynamic_update_slice) to avoid O(L^2) recopies on deep configs.
            x = jnp.concatenate([x, y], axis=-1)
        if i != len(block_config) - 1:
            tp = params[f"trans{i}"]
            x = conv1x1_bnrelu(x, tp["ng"], tp["nb"], tp["w"])      # transition
            x = avgpool3d(x, 2, 2)

    # norm5 + class_layers (relu -> adaptive_avg_pool(1) -> flatten -> linear)
    return head_bnrelu_gap_fc(x, params["norm5_g"], params["norm5_b"],
                              params["fc_w"], params["fc_b"])


# ----------------------------------- main ----------------------------------- #
if __name__ == "__main__":
    in_channels = 2
    out_classes = 3
    init_features = 16
    growth_rate = 8
    block_config = (2, 2)
    bn_size = 2

    key = jax.random.PRNGKey(0)
    kp, kx = jax.random.split(key)
    raw_params, final_ch = init_params(kp, in_channels, out_classes,
                                       init_features, growth_rate,
                                       block_config, bn_size)
    packed = pack_params(raw_params, block_config)

    # PyTorch-style NCDHW input: [batch=2, channels=2, 16, 16, 16]
    x = jax.random.normal(kx, (2, in_channels, 16, 16, 16), jnp.float32)

    fwd = jax.jit(functools.partial(densenet_forward,
                                    block_config=block_config,
                                    growth_rate=growth_rate))
    out = jax.block_until_ready(fwd(x, packed))
    assert out.shape == (2, out_classes), out.shape
    assert bool(jnp.all(jnp.isfinite(out)))
    print("KERNEL_OK")
</pallas_src>

<mosaic_0001>
module attributes {stable_mosaic.version = 11 : i64} {
  func.func @_bnrelu_kernel(%arg0: i32, %arg1: memref<128x128xf32, #tpu.memory_space<vmem>>, %arg2: memref<1x128xf32, #tpu.memory_space<vmem>>, %arg3: memref<1x128xf32, #tpu.memory_space<vmem>>, %arg4: memref<128x128xf32, #tpu.memory_space<vmem>>) attributes {dimension_semantics = [#tpu.dimension_semantics<parallel>], iteration_bounds = array<i64: 1>, scalar_prefetch = 0 : i64, scratch_operands = 0 : i64, tpu.core_type = #tpu.core_type<tc>, window_params = [{transform_indices = @transform_0, window_bounds = array<i64: 128, 128>}, {pipeline_mode = #tpu.pipeline_mode<synchronous>, transform_indices = @transform_1, window_bounds = array<i64: 1, 128>}, {pipeline_mode = #tpu.pipeline_mode<synchronous>, transform_indices = @transform_2, window_bounds = array<i64: 1, 128>}, {transform_indices = @transform_3, window_bounds = array<i64: 128, 128>}]} {
    %c0 = arith.constant 0 : index
    %c0_0 = arith.constant 0 : index
    %0 = vector.load %arg1[%c0, %c0_0] : memref<128x128xf32, #tpu.memory_space<vmem>>, vector<128x128xf32>
    %c0_1 = arith.constant 0 : index
    %c0_2 = arith.constant 0 : index
    %1 = vector.load %arg2[%c0_1, %c0_2] : memref<1x128xf32, #tpu.memory_space<vmem>>, vector<1x128xf32>
    %2 = vector.broadcast %1 : vector<1x128xf32> to vector<128x128xf32>
    %3 = arith.mulf %0, %2 : vector<128x128xf32>
    %c0_3 = arith.constant 0 : index
    %c0_4 = arith.constant 0 : index
    %4 = vector.load %arg3[%c0_3, %c0_4] : memref<1x128xf32, #tpu.memory_space<vmem>>, vector<1x128xf32>
    %5 = vector.broadcast %4 : vector<1x128xf32> to vector<128x128xf32>
    %6 = arith.addf %3, %5 : vector<128x128xf32>
    %cst = arith.constant 0.000000e+00 : f32
    %7 = vector.broadcast %cst : f32 to vector<128x128xf32>
    %8 = arith.maximumf %6, %7 : vector<128x128xf32>
    %c0_5 = arith.constant 0 : index
    %c0_6 = arith.constant 0 : index
    %9 = vector.load %arg4[%c0_5, %c0_6] : memref<128x128xf32, #tpu.memory_space<vmem>>, vector<128x128xf32>
    tpu.vector_store %arg4[%c0_5, %c0_6], %8 {strides = array<i32>} : memref<128x128xf32, #tpu.memory_space<vmem>>, vector<128x128xf32>,
    return
  }
  func.func @transform_0(%arg0: i32) -> (i32, i32) {
    %c0_i32 = arith.constant 0 : i32
    %c0_i32_0 = arith.constant 0 : i32
    return %arg0, %c0_i32 : i32, i32
  }
  func.func @transform_1(%arg0: i32) -> (i32, i32) {
    %c0_i32 = arith.constant 0 : i32
    %c0_i32_0 = arith.constant 0 : i32
    %c0_i32_1 = arith.constant 0 : i32
    return %c0_i32, %c0_i32_0 : i32, i32
  }
  func.func @transform_2(%arg0: i32) -> (i32, i32) {
    %c0_i32 = arith.constant 0 : i32
    %c0_i32_0 = arith.constant 0 : i32
    %c0_i32_1 = arith.constant 0 : i32
    return %c0_i32, %c0_i32_0 : i32, i32
  }
  func.func @transform_3(%arg0: i32) -> (i32, i32) {
    %c0_i32 = arith.constant 0 : i32
    %c0_i32_0 = arith.constant 0 : i32
    return %arg0, %c0_i32 : i32, i32
  }
}

module attributes {stable_mosaic.version = 11 : i64} {
  func.func @_bn_mm_kernel(%arg0: i32, %arg1: i32, %arg2: i32, %arg3: memref<128x16xf32, #tpu.memory_space<vmem>>, %arg4: memref<1x16xf32, #tpu.memory_space<vmem>>, %arg5: memref<1x16xf32, #tpu.memory_space<vmem>>, %arg6: memref<16x16xbf16, #tpu.memory_space<vmem>>, %arg7: memref<128x16xf32, #tpu.memory_space<vmem>>, %arg8: memref<128x16xf32, #tpu.memory_space<vmem>>) attributes {dimension_semantics = [#tpu.dimension_semantics<parallel>, #tpu.dimension_semantics<parallel>, #tpu.dimension_semantics<arbitrary>], iteration_bounds = array<i64: 1, 1, 1>, scalar_prefetch = 0 : i64, scratch_operands = 1 : i64, tpu.core_type = #tpu.core_type<tc>, window_params = [{transform_indices = @transform_0, window_bounds = array<i64: 128, 16>}, {transform_indices = @transform_1, window_bounds = array<i64: 1, 16>}, {transform_indices = @transform_2, window_bounds = array<i64: 1, 16>}, {transform_indices = @transform_3, window_bounds = array<i64: 16, 16>}, {transform_indices = @transform_4, window_bounds = array<i64: 128, 16>}]} {
    %c0_i32 = arith.constant 0 : i32
    %0 = arith.cmpi eq, %arg2, %c0_i32 : i32
    %1 = arith.extui %0 : i1 to i32
    %c0_i32_0 = arith.constant 0 : i32
    %2 = arith.cmpi ne, %1, %c0_i32_0 : i32
    scf.if %2 {
      %cst_15 = arith.constant 0.000000e+00 : f32
      %21 = vector.broadcast %cst_15 : f32 to vector<128x16xf32>
      %c0_16 = arith.constant 0 : index
      %c0_17 = arith.constant 0 : index
      %22 = vector.load %arg8[%c0_16, %c0_17] : memref<128x16xf32, #tpu.memory_space<vmem>>, vector<128x16xf32>
      tpu.vector_store %arg8[%c0_16, %c0_17], %21 {strides = array<i32>} : memref<128x16xf32, #tpu.memory_space<vmem>>, vector<128x16xf32>,
    } else {
    }
    %c0 = arith.constant 0 : index
    %c0_1 = arith.constant 0 : index
    %3 = vector.load %arg3[%c0, %c0_1] : memref<128x16xf32, #tpu.memory_space<vmem>>, vector<128x16xf32>
    %c0_2 = arith.constant 0 : index
    %c0_3 = arith.constant 0 : index
    %4 = vector.load %arg4[%c0_2, %c0_3] : memref<1x16xf32, #tpu.memory_space<vmem>>, vector<1x16xf32>
    %5 = vector.broadcast %4 : vector<1x16xf32> to vector<128x16xf32>
    %6 = arith.mulf %3, %5 : vector<128x16xf32>
    %c0_4 = arith.constant 0 : index
    %c0_5 = arith.constant 0 : index
    %7 = vector.load %arg5[%c0_4, %c0_5] : memref<1x16xf32, #tpu.memory_space<vmem>>, vector<1x16xf32>
    %8 = vector.broadcast %7 : vector<1x16xf32> to vector<128x16xf32>
    %9 = arith.addf %6, %8 : vector<128x16xf32>
    %cst = arith.constant 0.000000e+00 : f32
    %10 = vector.broadcast %cst : f32 to vector<128x16xf32>
    %11 = arith.maximumf %9, %10 : vector<128x16xf32>
    %12 = arith.truncf %11 : vector<128x16xf32> to vector<128x16xbf16>
    %c0_6 = arith.constant 0 : index
    %c0_7 = arith.constant 0 : index
    %13 = vector.load %arg8[%c0_6, %c0_7] : memref<128x16xf32, #tpu.memory_space<vmem>>, vector<128x16xf32>
    %c0_8 = arith.constant 0 : index
    %c0_9 = arith.constant 0 : index
    %14 = vector.load %arg6[%c0_8, %c0_9] : memref<16x16xbf16, #tpu.memory_space<vmem>>, vector<16x16xbf16>
    %cst_10 = arith.constant dense<0.000000e+00> : vector<128x16xf32>
    %15 = tpu.matmul %12, %14, %cst_10 {dimension_numbers = #tpu.dot_dimension_numbers<[1], [0], [0], [1], [0, 0, 1, 1], [], []>} : vector<128x16xbf16>, vector<16x16xbf16>, vector<128x16xf32> -> vector<128x16xf32>
    %16 = arith.addf %13, %15 : vector<128x16xf32>
    %c0_11 = arith.constant 0 : index
    %c0_12 = arith.constant 0 : index
    %17 = vector.load %arg8[%c0_11, %c0_12] : memref<128x16xf32, #tpu.memory_space<vmem>>, vector<128x16xf32>
    tpu.vector_store %arg8[%c0_11, %c0_12], %16 {strides = array<i32>} : memref<128x16xf32, #tpu.memory_space<vmem>>, vector<128x16xf32>,
    %c0_i32_13 = arith.constant 0 : i32
    %18 = arith.cmpi eq, %arg2, %c0_i32_13 : i32
    %19 = arith.extui %18 : i1 to i32
    %c0_i32_14 = arith.constant 0 : i32
    %20 = arith.cmpi ne, %19, %c0_i32_14 : i32
    scf.if %20 {
      %c0_15 = arith.constant 0 : index
      %c0_16 = arith.constant 0 : index
      %21 = vector.load %arg8[%c0_15, %c0_16] : memref<128x16xf32, #tpu.memory_space<vmem>>, vector<128x16xf32>
      %c0_17 = arith.constant 0 : index
      %c0_18 = arith.constant 0 : index
      %22 = vector.load %arg7[%c0_17, %c0_18] : memref<128x16xf32, #tpu.memory_space<vmem>>, vector<128x16xf32>
      tpu.vector_store %arg7[%c0_17, %c0_18], %21 {strides = array<i32>} : memref<128x16xf32, #tpu.memory_space<vmem>>, vector<128x16xf32>,
    } else {
    }
    return
  }
  func.func @transform_0(%arg0: i32, %arg1: i32, %arg2: i32) -> (i32, i32) {
    %c0_i32 = arith.constant 0 : i32
    return %arg0, %arg2 : i32, i32
  }
  func.func @transform_1(%arg0: i32, %arg1: i32, %arg2: i32) -> (i32, i32) {
    %c0_i32 = arith.constant 0 : i32
    %c0_i32_0 = arith.constant 0 : i32
    return %c0_i32, %arg2 : i32, i32
  }
  func.func @transform_2(%arg0: i32, %arg1: i32, %arg2: i32) -> (i32, i32) {
    %c0_i32 = arith.constant 0 : i32
    %c0_i32_0 = arith.constant 0 : i32
    return %c0_i32, %arg2 : i32, i32
  }
  func.func @transform_3(%arg0: i32, %arg1: i32, %arg2: i32) -> (i32, i32) {
    %c0_i32 = arith.constant 0 : i32
    return %arg2, %arg1 : i32, i32
  }
  func.func @transform_4(%arg0: i32, %arg1: i32, %arg2: i32) -> (i32, i32) {
    %c0_i32 = arith.constant 0 : i32
    return %arg0, %arg1 : i32, i32
  }
}

module attributes {stable_mosaic.version = 11 : i64} {
  func.func @_dense_conv_kernel(%arg0: i32, %arg1: memref<1x216x16xf32, #tpu.memory_space<vmem>>, %arg2: memref<1x16xf32, #tpu.memory_space<vmem>>, %arg3: memref<1x16xf32, #tpu.memory_space<vmem>>, %arg4: memref<216x1xf32, #tpu.memory_space<vmem>>, %arg5: memref<16x256xbf16, #tpu.memory_space<vmem>>, %arg6: memref<1x130x8xf32, #tpu.memory_space<vmem>>) attributes {dimension_semantics = [#tpu.dimension_semantics<parallel>], iteration_bounds = array<i64: 2>, scalar_prefetch = 0 : i64, scratch_operands = 0 : i64, tpu.core_type = #tpu.core_type<tc>, window_params = [{transform_indices = @transform_0, window_bounds = array<i64: 1, 216, 16>}, {pipeline_mode = #tpu.pipeline_mode<synchronous>, transform_indices = @transform_1, window_bounds = array<i64: 1, 16>}, {pipeline_mode = #tpu.pipeline_mode<synchronous>, transform_indices = @transform_2, window_bounds = array<i64: 1, 16>}, {pipeline_mode = #tpu.pipeline_mode<synchronous>, transform_indices = @transform_3, window_bounds = array<i64: 216, 1>}, {pipeline_mode = #tpu.pipeline_mode<synchronous>, transform_indices = @transform_4, window_bounds = array<i64: 16, 256>}, {transform_indices = @transform_5, window_bounds = array<i64: 1, 130, 8>}]} {
    %c0 = arith.constant 0 : index
    %c0_0 = arith.constant 0 : index
    %c0_1 = arith.constant 0 : index
    %0 = vector.load %arg1[%c0, %c0_0, %c0_1] : memref<1x216x16xf32, #tpu.memory_space<vmem>>, vector<1x216x16xf32>
    %1 = vector.shape_cast %0 : vector<1x216x16xf32> to vector<216x16xf32>
    %c0_2 = arith.constant 0 : index
    %c0_3 = arith.constant 0 : index
    %2 = vector.load %arg2[%c0_2, %c0_3] : memref<1x16xf32, #tpu.memory_space<vmem>>, vector<1x16xf32>
    %3 = vector.broadcast %2 : vector<1x16xf32> to vector<216x16xf32>
    %4 = arith.mulf %1, %3 : vector<216x16xf32>
    %c0_4 = arith.constant 0 : index
    %c0_5 = arith.constant 0 : index
    %5 = vector.load %arg3[%c0_4, %c0_5] : memref<1x16xf32, #tpu.memory_space<vmem>>, vector<1x16xf32>
    %6 = vector.broadcast %5 : vector<1x16xf32> to vector<216x16xf32>
    %7 = arith.addf %4, %6 : vector<216x16xf32>
    %cst = arith.constant 0.000000e+00 : f32
    %8 = vector.broadcast %cst : f32 to vector<216x16xf32>
    %9 = arith.maximumf %7, %8 : vector<216x16xf32>
    %c0_6 = arith.constant 0 : index
    %c0_7 = arith.constant 0 : index
    %10 = vector.load %arg4[%c0_6, %c0_7] : memref<216x1xf32, #tpu.memory_space<vmem>>, vector<216x1xf32>
    %11 = vector.broadcast %10 : vector<216x1xf32> to vector<216x16xf32>
    %12 = arith.mulf %9, %11 : vector<216x16xf32>
    %13 = arith.truncf %12 : vector<216x16xf32> to vector<216x16xbf16>
    %c0_8 = arith.constant 0 : index
    %c0_9 = arith.constant 0 : index
    %14 = vector.load %arg5[%c0_8, %c0_9] : memref<16x256xbf16, #tpu.memory_space<vmem>>, vector<16x256xbf16>
    %cst_10 = arith.constant dense<0.000000e+00> : vector<216x256xf32>
    %15 = tpu.matmul %13, %14, %cst_10 {dimension_numbers = #tpu.dot_dimension_numbers<[1], [0], [0], [1], [0, 0, 1, 1], [], []>} : vector<216x16xbf16>, vector<16x256xbf16>, vector<216x256xf32> -> vector<216x256xf32>
    %16 = vector.extract_strided_slice %15 {offsets = [0, 0], sizes = [130, 8], strides = [1, 1]} : vector<216x256xf32> to vector<130x8xf32>
    %17 = vector.extract_strided_slice %15 {offsets = [1, 8], sizes = [130, 8], strides = [1, 1]} : vector<216x256xf32> to vector<130x8xf32>
    %18 = arith.addf %16, %17 : vector<130x8xf32>
    %19 = vector.extract_strided_slice %15 {offsets = [2, 16], sizes = [130, 8], strides = [1, 1]} : vector<216x256xf32> to vector<130x8xf32>
    %20 = arith.addf %18, %19 : vector<130x8xf32>
    %21 = vector.extract_strided_slice %15 {offsets = [6, 24], sizes = [130, 8], strides = [1, 1]} : vector<216x256xf32> to vector<130x8xf32>
    %22 = arith.addf %20, %21 : vector<130x8xf32>
    %23 = vector.extract_strided_slice %15 {offsets = [7, 32], sizes = [130, 8], strides = [1, 1]} : vector<216x256xf32> to vector<130x8xf32>
    %24 = arith.addf %22, %23 : vector<130x8xf32>
    %25 = vector.extract_strided_slice %15 {offsets = [8, 40], sizes = [130, 8], strides = [1, 1]} : vector<216x256xf32> to vector<130x8xf32>
    %26 = arith.addf %24, %25 : vector<130x8xf32>
    %27 = vector.extract_strided_slice %15 {offsets = [12, 48], sizes = [130, 8], strides = [1, 1]} : vector<216x256xf32> to vector<130x8xf32>
    %28 = arith.addf %26, %27 : vector<130x8xf32>
    %29 = vector.extract_strided_slice %15 {offsets = [13, 56], sizes = [130, 8], strides = [1, 1]} : vector<216x256xf32> to vector<130x8xf32>
    %30 = arith.addf %28, %29 : vector<130x8xf32>
    %31 = vector.extract_strided_slice %15 {offsets = [14, 64], sizes = [130, 8], strides = [1, 1]} : vector<216x256xf32> to vector<130x8xf32>
    %32 = arith.addf %30, %31 : vector<130x8xf32>
    %33 = vector.extract_strided_slice %15 {offsets = [36, 72], sizes = [130, 8], strides = [1, 1]} : vector<216x256xf32> to vector<130x8xf32>
    %34 = arith.addf %32, %33 : vector<130x8xf32>
    %35 = vector.extract_strided_slice %15 {offsets = [37, 80], sizes = [130, 8], strides = [1, 1]} : vector<216x256xf32> to vector<130x8xf32>
    %36 = arith.addf %34, %35 : vector<130x8xf32>
    %37 = vector.extract_strided_slice %15 {offsets = [38, 88], sizes = [130, 8], strides = [1, 1]} : vector<216x256xf32> to vector<130x8xf32>
    %38 = arith.addf %36, %37 : vector<130x8xf32>
    %39 = vector.extract_strided_slice %15 {offsets = [42, 96], sizes = [130, 8], strides = [1, 1]} : vector<216x256xf32> to vector<130x8xf32>
    %40 = arith.addf %38, %39 : vector<130x8xf32>
    %41 = vector.extract_strided_slice %15 {offsets = [43, 104], sizes = [130, 8], strides = [1, 1]} : vector<216x256xf32> to vector<130x8xf32>
    %42 = arith.addf %40, %41 : vector<130x8xf32>
    %43 = vector.extract_strided_slice %15 {offsets = [44, 112], sizes = [130, 8], strides = [1, 1]} : vector<216x256xf32> to vector<130x8xf32>
    %44 = arith.addf %42, %43 : vector<130x8xf32>
    %45 = vector.extract_strided_slice %15 {offsets = [48, 120], sizes = [130, 8], strides = [1, 1]} : vector<216x256xf32> to vector<130x8xf32>
    %46 = arith.addf %44, %45 : vector<130x8xf32>
    %47 = vector.extract_strided_slice %15 {offsets = [49, 128], sizes = [130, 8], strides = [1, 1]} : vector<216x256xf32> to vector<130x8xf32>
    %48 = arith.addf %46, %47 : vector<130x8xf32>
    %49 = vector.extract_strided_slice %15 {offsets = [50, 136], sizes = [130, 8], strides = [1, 1]} : vector<216x256xf32> to vector<130x8xf32>
    %50 = arith.addf %48, %49 : vector<130x8xf32>
    %51 = vector.extract_strided_slice %15 {offsets = [72, 144], sizes = [130, 8], strides = [1, 1]} : vector<216x256xf32> to vector<130x8xf32>
    %52 = arith.addf %50, %51 : vector<130x8xf32>
    %53 = vector.extract_strided_slice %15 {offsets = [73, 152], sizes = [130, 8], strides = [1, 1]} : vector<216x256xf32> to vector<130x8xf32>
    %54 = arith.addf %52, %53 : vector<130x8xf32>
    %55 = vector.extract_strided_slice %15 {offsets = [74, 160], sizes = [130, 8], strides = [1, 1]} : vector<216x256xf32> to vector<130x8xf32>
    %56 = arith.addf %54, %55 : vector<130x8xf32>
    %57 = vector.extract_strided_slice %15 {offsets = [78, 168], sizes = [130, 8], strides = [1, 1]} : vector<216x256xf32> to vector<130x8xf32>
    %58 = arith.addf %56, %57 : vector<130x8xf32>
    %59 = vector.extract_strided_slice %15 {offsets = [79, 176], sizes = [130, 8], strides = [1, 1]} : vector<216x256xf32> to vector<130x8xf32>
    %60 = arith.addf %58, %59 : vector<130x8xf32>
    %61 = vector.extract_strided_slice %15 {offsets = [80, 184], sizes = [130, 8], strides = [1, 1]} : vector<216x256xf32> to vector<130x8xf32>
    %62 = arith.addf %60, %61 : vector<130x8xf32>
    %63 = vector.extract_strided_slice %15 {offsets = [84, 192], sizes = [130, 8], strides = [1, 1]} : vector<216x256xf32> to vector<130x8xf32>
    %64 = arith.addf %62, %63 : vector<130x8xf32>
    %65 = vector.extract_strided_slice %15 {offsets = [85, 200], sizes = [130, 8], strides = [1, 1]} : vector<216x256xf32> to vector<130x8xf32>
    %66 = arith.addf %64, %65 : vector<130x8xf32>
    %67 = vector.extract_strided_slice %15 {offsets = [86, 208], sizes = [130, 8], strides = [1, 1]} : vector<216x256xf32> to vector<130x8xf32>
    %68 = arith.addf %66, %67 : vector<130x8xf32>
    %c0_11 = arith.constant 0 : index
    %c0_12 = arith.constant 0 : index
    %c0_13 = arith.constant 0 : index
    %69 = vector.load %arg6[%c0_11, %c0_12, %c0_13] : memref<1x130x8xf32, #tpu.memory_space<vmem>>, vector<1x130x8xf32>
    %70 = vector.shape_cast %69 : vector<1x130x8xf32> to vector<130x8xf32>
    %71 = vector.shape_cast %68 : vector<130x8xf32> to vector<1x130x8xf32>
    tpu.vector_store %arg6[%c0_11, %c0_12, %c0_13], %71 {strides = array<i32>} : memref<1x130x8xf32, #tpu.memory_space<vmem>>, vector<1x130x8xf32>,
    return
  }
  func.func @transform_0(%arg0: i32) -> (i32, i32, i32) {
    %c0_i32 = arith.constant 0 : i32
    %c0_i32_0 = arith.constant 0 : i32
    %c0_i32_1 = arith.constant 0 : i32
    return %arg0, %c0_i32, %c0_i32_0 : i32, i32, i32
  }
  func.func @transform_1(%arg0: i32) -> (i32, i32) {
    %c0_i32 = arith.constant 0 : i32
    %c0_i32_0 = arith.constant 0 : i32
    %c0_i32_1 = arith.constant 0 : i32
    return %c0_i32, %c0_i32_0 : i32, i32
  }
  func.func @transform_2(%arg0: i32) -> (i32, i32) {
    %c0_i32 = arith.constant 0 : i32
    %c0_i32_0 = arith.constant 0 : i32
    %c0_i32_1 = arith.constant 0 : i32
    return %c0_i32, %c0_i32_0 : i32, i32
  }
  func.func @transform_3(%arg0: i32) -> (i32, i32) {
    %c0_i32 = arith.constant 0 : i32
    %c0_i32_0 = arith.constant 0 : i32
    %c0_i32_1 = arith.constant 0 : i32
    return %c0_i32, %c0_i32_0 : i32, i32
  }
  func.func @transform_4(%arg0: i32) -> (i32, i32) {
    %c0_i32 = arith.constant 0 : i32
    %c0_i32_0 = arith.constant 0 : i32
    %c0_i32_1 = arith.constant 0 : i32
    return %c0_i32, %c0_i32_0 : i32, i32
  }
  func.func @transform_5(%arg0: i32) -> (i32, i32, i32) {
    %c0_i32 = arith.constant 0 : i32
    %c0_i32_0 = arith.constant 0 : i32
    %c0_i32_1 = arith.constant 0 : i32
    return %arg0, %c0_i32, %c0_i32_0 : i32, i32, i32
  }
}

module attributes {stable_mosaic.version = 11 : i64} {
  func.func @_bn_mm_kernel(%arg0: i32, %arg1: i32, %arg2: i32, %arg3: memref<128x24xf32, #tpu.memory_space<vmem>>, %arg4: memref<1x24xf32, #tpu.memory_space<vmem>>, %arg5: memref<1x24xf32, #tpu.memory_space<vmem>>, %arg6: memref<24x16xbf16, #tpu.memory_space<vmem>>, %arg7: memref<128x16xf32, #tpu.memory_space<vmem>>, %arg8: memref<128x16xf32, #tpu.memory_space<vmem>>) attributes {dimension_semantics = [#tpu.dimension_semantics<parallel>, #tpu.dimension_semantics<parallel>, #tpu.dimension_semantics<arbitrary>], iteration_bounds = array<i64: 1, 1, 1>, scalar_prefetch = 0 : i64, scratch_operands = 1 : i64, tpu.core_type = #tpu.core_type<tc>, window_params = [{transform_indices = @transform_0, window_bounds = array<i64: 128, 24>}, {transform_indices = @transform_1, window_bounds = array<i64: 1, 24>}, {transform_indices = @transform_2, window_bounds = array<i64: 1, 24>}, {transform_indices = @transform_3, window_bounds = array<i64: 24, 16>}, {transform_indices = @transform_4, window_bounds = array<i64: 128, 16>}]} {
    %c0_i32 = arith.constant 0 : i32
    %0 = arith.cmpi eq, %arg2, %c0_i32 : i32
    %1 = arith.extui %0 : i1 to i32
    %c0_i32_0 = arith.constant 0 : i32
    %2 = arith.cmpi ne, %1, %c0_i32_0 : i32
    scf.if %2 {
      %cst_15 = arith.constant 0.000000e+00 : f32
      %21 = vector.broadcast %cst_15 : f32 to vector<128x16xf32>
      %c0_16 = arith.constant 0 : index
      %c0_17 = arith.constant 0 : index
      %22 = vector.load %arg8[%c0_16, %c0_17] : memref<128x16xf32, #tpu.memory_space<vmem>>, vector<128x16xf32>
      tpu.vector_store %arg8[%c0_16, %c0_17], %21 {strides = array<i32>} : memref<128x16xf32, #tpu.memory_space<vmem>>, vector<128x16xf32>,
    } else {
    }
    %c0 = arith.constant 0 : index
    %c0_1 = arith.constant 0 : index
    %3 = vector.load %arg3[%c0, %c0_1] : memref<128x24xf32, #tpu.memory_space<vmem>>, vector<128x24xf32>
    %c0_2 = arith.constant 0 : index
    %c0_3 = arith.constant 0 : index
    %4 = vector.load %arg4[%c0_2, %c0_3] : memref<1x24xf32, #tpu.memory_space<vmem>>, vector<1x24xf32>
    %5 = vector.broadcast %4 : vector<1x24xf32> to vector<128x24xf32>
    %6 = arith.mulf %3, %5 : vector<128x24xf32>
    %c0_4 = arith.constant 0 : index
    %c0_5 = arith.constant 0 : index
    %7 = vector.load %arg5[%c0_4, %c0_5] : memref<1x24xf32, #tpu.memory_space<vmem>>, vector<1x24xf32>
    %8 = vector.broadcast %7 : vector<1x24xf32> to vector<128x24xf32>
    %9 = arith.addf %6, %8 : vector<128x24xf32>
    %cst = arith.constant 0.000000e+00 : f32
    %10 = vector.broadcast %cst : f32 to vector<128x24xf32>
    %11 = arith.maximumf %9, %10 : vector<128x24xf32>
    %12 = arith.truncf %11 : vector<128x24xf32> to vector<128x24xbf16>
    %c0_6 = arith.constant 0 : index
    %c0_7 = arith.constant 0 : index
    %13 = vector.load %arg8[%c0_6, %c0_7] : memref<128x16xf32, #tpu.memory_space<vmem>>, vector<128x16xf32>
    %c0_8 = arith.constant 0 : index
    %c0_9 = arith.constant 0 : index
    %14 = vector.load %arg6[%c0_8, %c0_9] : memref<24x16xbf16, #tpu.memory_space<vmem>>, vector<24x16xbf16>
    %cst_10 = arith.constant dense<0.000000e+00> : vector<128x16xf32>
    %15 = tpu.matmul %12, %14, %cst_10 {dimension_numbers = #tpu.dot_dimension_numbers<[1], [0], [0], [1], [0, 0, 1, 1], [], []>} : vector<128x24xbf16>, vector<24x16xbf16>, vector<128x16xf32> -> vector<128x16xf32>
    %16 = arith.addf %13, %15 : vector<128x16xf32>
    %c0_11 = arith.constant 0 : index
    %c0_12 = arith.constant 0 : index
    %17 = vector.load %arg8[%c0_11, %c0_12] : memref<128x16xf32, #tpu.memory_space<vmem>>, vector<128x16xf32>
    tpu.vector_store %arg8[%c0_11, %c0_12], %16 {strides = array<i32>} : memref<128x16xf32, #tpu.memory_space<vmem>>, vector<128x16xf32>,
    %c0_i32_13 = arith.constant 0 : i32
    %18 = arith.cmpi eq, %arg2, %c0_i32_13 : i32
    %19 = arith.extui %18 : i1 to i32
    %c0_i32_14 = arith.constant 0 : i32
    %20 = arith.cmpi ne, %19, %c0_i32_14 : i32
    scf.if %20 {
      %c0_15 = arith.constant 0 : index
      %c0_16 = arith.constant 0 : index
      %21 = vector.load %arg8[%c0_15, %c0_16] : memref<128x16xf32, #tpu.memory_space<vmem>>, vector<128x16xf32>
      %c0_17 = arith.constant 0 : index
      %c0_18 = arith.constant 0 : index
      %22 = vector.load %arg7[%c0_17, %c0_18] : memref<128x16xf32, #tpu.memory_space<vmem>>, vector<128x16xf32>
      tpu.vector_store %arg7[%c0_17, %c0_18], %21 {strides = array<i32>} : memref<128x16xf32, #tpu.memory_space<vmem>>, vector<128x16xf32>,
    } else {
    }
    return
  }
  func.func @transform_0(%arg0: i32, %arg1: i32, %arg2: i32) -> (i32, i32) {
    %c0_i32 = arith.constant 0 : i32
    return %arg0, %arg2 : i32, i32
  }
  func.func @transform_1(%arg0: i32, %arg1: i32, %arg2: i32) -> (i32, i32) {
    %c0_i32 = arith.constant 0 : i32
    %c0_i32_0 = arith.constant 0 : i32
    return %c0_i32, %arg2 : i32, i32
  }
  func.func @transform_2(%arg0: i32, %arg1: i32, %arg2: i32) -> (i32, i32) {
    %c0_i32 = arith.constant 0 : i32
    %c0_i32_0 = arith.constant 0 : i32
    return %c0_i32, %arg2 : i32, i32
  }
  func.func @transform_3(%arg0: i32, %arg1: i32, %arg2: i32) -> (i32, i32) {
    %c0_i32 = arith.constant 0 : i32
    return %arg2, %arg1 : i32, i32
  }
  func.func @transform_4(%arg0: i32, %arg1: i32, %arg2: i32) -> (i32, i32) {
    %c0_i32 = arith.constant 0 : i32
    return %arg0, %arg1 : i32, i32
  }
}

module attributes {stable_mosaic.version = 11 : i64} {
  func.func @_bn_mm_kernel(%arg0: i32, %arg1: i32, %arg2: i32, %arg3: memref<128x32xf32, #tpu.memory_space<vmem>>, %arg4: memref<1x32xf32, #tpu.memory_space<vmem>>, %arg5: memref<1x32xf32, #tpu.memory_space<vmem>>, %arg6: memref<32x16xbf16, #tpu.memory_space<vmem>>, %arg7: memref<128x16xf32, #tpu.memory_space<vmem>>, %arg8: memref<128x16xf32, #tpu.memory_space<vmem>>) attributes {dimension_semantics = [#tpu.dimension_semantics<parallel>, #tpu.dimension_semantics<parallel>, #tpu.dimension_semantics<arbitrary>], iteration_bounds = array<i64: 1, 1, 1>, scalar_prefetch = 0 : i64, scratch_operands = 1 : i64, tpu.core_type = #tpu.core_type<tc>, window_params = [{transform_indices = @transform_0, window_bounds = array<i64: 128, 32>}, {transform_indices = @transform_1, window_bounds = array<i64: 1, 32>}, {transform_indices = @transform_2, window_bounds = array<i64: 1, 32>}, {transform_indices = @transform_3, window_bounds = array<i64: 32, 16>}, {transform_indices = @transform_4, window_bounds = array<i64: 128, 16>}]} {
    %c0_i32 = arith.constant 0 : i32
    %0 = arith.cmpi eq, %arg2, %c0_i32 : i32
    %1 = arith.extui %0 : i1 to i32
    %c0_i32_0 = arith.constant 0 : i32
    %2 = arith.cmpi ne, %1, %c0_i32_0 : i32
    scf.if %2 {
      %cst_15 = arith.constant 0.000000e+00 : f32
      %21 = vector.broadcast %cst_15 : f32 to vector<128x16xf32>
      %c0_16 = arith.constant 0 : index
      %c0_17 = arith.constant 0 : index
      %22 = vector.load %arg8[%c0_16, %c0_17] : memref<128x16xf32, #tpu.memory_space<vmem>>, vector<128x16xf32>
      tpu.vector_store %arg8[%c0_16, %c0_17], %21 {strides = array<i32>} : memref<128x16xf32, #tpu.memory_space<vmem>>, vector<128x16xf32>,
    } else {
    }
    %c0 = arith.constant 0 : index
    %c0_1 = arith.constant 0 : index
    %3 = vector.load %arg3[%c0, %c0_1] : memref<128x32xf32, #tpu.memory_space<vmem>>, vector<128x32xf32>
    %c0_2 = arith.constant 0 : index
    %c0_3 = arith.constant 0 : index
    %4 = vector.load %arg4[%c0_2, %c0_3] : memref<1x32xf32, #tpu.memory_space<vmem>>, vector<1x32xf32>
    %5 = vector.broadcast %4 : vector<1x32xf32> to vector<128x32xf32>
    %6 = arith.mulf %3, %5 : vector<128x32xf32>
    %c0_4 = arith.constant 0 : index
    %c0_5 = arith.constant 0 : index
    %7 = vector.load %arg5[%c0_4, %c0_5] : memref<1x32xf32, #tpu.memory_space<vmem>>, vector<1x32xf32>
    %8 = vector.broadcast %7 : vector<1x32xf32> to vector<128x32xf32>
    %9 = arith.addf %6, %8 : vector<128x32xf32>
    %cst = arith.constant 0.000000e+00 : f32
    %10 = vector.broadcast %cst : f32 to vector<128x32xf32>
    %11 = arith.maximumf %9, %10 : vector<128x32xf32>
    %12 = arith.truncf %11 : vector<128x32xf32> to vector<128x32xbf16>
    %c0_6 = arith.constant 0 : index
    %c0_7 = arith.constant 0 : index
    %13 = vector.load %arg8[%c0_6, %c0_7] : memref<128x16xf32, #tpu.memory_space<vmem>>, vector<128x16xf32>
    %c0_8 = arith.constant 0 : index
    %c0_9 = arith.constant 0 : index
    %14 = vector.load %arg6[%c0_8, %c0_9] : memref<32x16xbf16, #tpu.memory_space<vmem>>, vector<32x16xbf16>
    %cst_10 = arith.constant dense<0.000000e+00> : vector<128x16xf32>
    %15 = tpu.matmul %12, %14, %cst_10 {dimension_numbers = #tpu.dot_dimension_numbers<[1], [0], [0], [1], [0, 0, 1, 1], [], []>} : vector<128x32xbf16>, vector<32x16xbf16>, vector<128x16xf32> -> vector<128x16xf32>
    %16 = arith.addf %13, %15 : vector<128x16xf32>
    %c0_11 = arith.constant 0 : index
    %c0_12 = arith.constant 0 : index
    %17 = vector.load %arg8[%c0_11, %c0_12] : memref<128x16xf32, #tpu.memory_space<vmem>>, vector<128x16xf32>
    tpu.vector_store %arg8[%c0_11, %c0_12], %16 {strides = array<i32>} : memref<128x16xf32, #tpu.memory_space<vmem>>, vector<128x16xf32>,
    %c0_i32_13 = arith.constant 0 : i32
    %18 = arith.cmpi eq, %arg2, %c0_i32_13 : i32
    %19 = arith.extui %18 : i1 to i32
    %c0_i32_14 = arith.constant 0 : i32
    %20 = arith.cmpi ne, %19, %c0_i32_14 : i32
    scf.if %20 {
      %c0_15 = arith.constant 0 : index
      %c0_16 = arith.constant 0 : index
      %21 = vector.load %arg8[%c0_15, %c0_16] : memref<128x16xf32, #tpu.memory_space<vmem>>, vector<128x16xf32>
      %c0_17 = arith.constant 0 : index
      %c0_18 = arith.constant 0 : index
      %22 = vector.load %arg7[%c0_17, %c0_18] : memref<128x16xf32, #tpu.memory_space<vmem>>, vector<128x16xf32>
      tpu.vector_store %arg7[%c0_17, %c0_18], %21 {strides = array<i32>} : memref<128x16xf32, #tpu.memory_space<vmem>>, vector<128x16xf32>,
    } else {
    }
    return
  }
  func.func @transform_0(%arg0: i32, %arg1: i32, %arg2: i32) -> (i32, i32) {
    %c0_i32 = arith.constant 0 : i32
    return %arg0, %arg2 : i32, i32
  }
  func.func @transform_1(%arg0: i32, %arg1: i32, %arg2: i32) -> (i32, i32) {
    %c0_i32 = arith.constant 0 : i32
    %c0_i32_0 = arith.constant 0 : i32
    return %c0_i32, %arg2 : i32, i32
  }
  func.func @transform_2(%arg0: i32, %arg1: i32, %arg2: i32) -> (i32, i32) {
    %c0_i32 = arith.constant 0 : i32
    %c0_i32_0 = arith.constant 0 : i32
    return %c0_i32, %arg2 : i32, i32
  }
  func.func @transform_3(%arg0: i32, %arg1: i32, %arg2: i32) -> (i32, i32) {
    %c0_i32 = arith.constant 0 : i32
    return %arg2, %arg1 : i32, i32
  }
  func.func @transform_4(%arg0: i32, %arg1: i32, %arg2: i32) -> (i32, i32) {
    %c0_i32 = arith.constant 0 : i32
    return %arg0, %arg1 : i32, i32
  }
}

module attributes {stable_mosaic.version = 11 : i64} {
  func.func @_bn_mm_kernel(%arg0: i32, %arg1: i32, %arg2: i32, %arg3: memref<16x16xf32, #tpu.memory_space<vmem>>, %arg4: memref<1x16xf32, #tpu.memory_space<vmem>>, %arg5: memref<1x16xf32, #tpu.memory_space<vmem>>, %arg6: memref<16x16xbf16, #tpu.memory_space<vmem>>, %arg7: memref<16x16xf32, #tpu.memory_space<vmem>>, %arg8: memref<16x16xf32, #tpu.memory_space<vmem>>) attributes {dimension_semantics = [#tpu.dimension_semantics<parallel>, #tpu.dimension_semantics<parallel>, #tpu.dimension_semantics<arbitrary>], iteration_bounds = array<i64: 1, 1, 1>, scalar_prefetch = 0 : i64, scratch_operands = 1 : i64, tpu.core_type = #tpu.core_type<tc>, window_params = [{transform_indices = @transform_0, window_bounds = array<i64: 16, 16>}, {transform_indices = @transform_1, window_bounds = array<i64: 1, 16>}, {transform_indices = @transform_2, window_bounds = array<i64: 1, 16>}, {transform_indices = @transform_3, window_bounds = array<i64: 16, 16>}, {transform_indices = @transform_4, window_bounds = array<i64: 16, 16>}]} {
    %c0_i32 = arith.constant 0 : i32
    %0 = arith.cmpi eq, %arg2, %c0_i32 : i32
    %1 = arith.extui %0 : i1 to i32
    %c0_i32_0 = arith.constant 0 : i32
    %2 = arith.cmpi ne, %1, %c0_i32_0 : i32
    scf.if %2 {
      %cst_15 = arith.constant 0.000000e+00 : f32
      %21 = vector.broadcast %cst_15 : f32 to vector<16x16xf32>
      %c0_16 = arith.constant 0 : index
      %c0_17 = arith.constant 0 : index
      %22 = vector.load %arg8[%c0_16, %c0_17] : memref<16x16xf32, #tpu.memory_space<vmem>>, vector<16x16xf32>
      tpu.vector_store %arg8[%c0_16, %c0_17], %21 {strides = array<i32>} : memref<16x16xf32, #tpu.memory_space<vmem>>, vector<16x16xf32>,
    } else {
    }
    %c0 = arith.constant 0 : index
    %c0_1 = arith.constant 0 : index
    %3 = vector.load %arg3[%c0, %c0_1] : memref<16x16xf32, #tpu.memory_space<vmem>>, vector<16x16xf32>
    %c0_2 = arith.constant 0 : index
    %c0_3 = arith.constant 0 : index
    %4 = vector.load %arg4[%c0_2, %c0_3] : memref<1x16xf32, #tpu.memory_space<vmem>>, vector<1x16xf32>
    %5 = vector.broadcast %4 : vector<1x16xf32> to vector<16x16xf32>
    %6 = arith.mulf %3, %5 : vector<16x16xf32>
    %c0_4 = arith.constant 0 : index
    %c0_5 = arith.constant 0 : index
    %7 = vector.load %arg5[%c0_4, %c0_5] : memref<1x16xf32, #tpu.memory_space<vmem>>, vector<1x16xf32>
    %8 = vector.broadcast %7 : vector<1x16xf32> to vector<16x16xf32>
    %9 = arith.addf %6, %8 : vector<16x16xf32>
    %cst = arith.constant 0.000000e+00 : f32
    %10 = vector.broadcast %cst : f32 to vector<16x16xf32>
    %11 = arith.maximumf %9, %10 : vector<16x16xf32>
    %12 = arith.truncf %11 : vector<16x16xf32> to vector<16x16xbf16>
    %c0_6 = arith.constant 0 : index
    %c0_7 = arith.constant 0 : index
    %13 = vector.load %arg8[%c0_6, %c0_7] : memref<16x16xf32, #tpu.memory_space<vmem>>, vector<16x16xf32>
    %c0_8 = arith.constant 0 : index
    %c0_9 = arith.constant 0 : index
    %14 = vector.load %arg6[%c0_8, %c0_9] : memref<16x16xbf16, #tpu.memory_space<vmem>>, vector<16x16xbf16>
    %cst_10 = arith.constant dense<0.000000e+00> : vector<16x16xf32>
    %15 = tpu.matmul %12, %14, %cst_10 {dimension_numbers = #tpu.dot_dimension_numbers<[1], [0], [0], [1], [0, 0, 1, 1], [], []>} : vector<16x16xbf16>, vector<16x16xbf16>, vector<16x16xf32> -> vector<16x16xf32>
    %16 = arith.addf %13, %15 : vector<16x16xf32>
    %c0_11 = arith.constant 0 : index
    %c0_12 = arith.constant 0 : index
    %17 = vector.load %arg8[%c0_11, %c0_12] : memref<16x16xf32, #tpu.memory_space<vmem>>, vector<16x16xf32>
    tpu.vector_store %arg8[%c0_11, %c0_12], %16 {strides = array<i32>} : memref<16x16xf32, #tpu.memory_space<vmem>>, vector<16x16xf32>,
    %c0_i32_13 = arith.constant 0 : i32
    %18 = arith.cmpi eq, %arg2, %c0_i32_13 : i32
    %19 = arith.extui %18 : i1 to i32
    %c0_i32_14 = arith.constant 0 : i32
    %20 = arith.cmpi ne, %19, %c0_i32_14 : i32
    scf.if %20 {
      %c0_15 = arith.constant 0 : index
      %c0_16 = arith.constant 0 : index
      %21 = vector.load %arg8[%c0_15, %c0_16] : memref<16x16xf32, #tpu.memory_space<vmem>>, vector<16x16xf32>
      %c0_17 = arith.constant 0 : index
      %c0_18 = arith.constant 0 : index
      %22 = vector.load %arg7[%c0_17, %c0_18] : memref<16x16xf32, #tpu.memory_space<vmem>>, vector<16x16xf32>
      tpu.vector_store %arg7[%c0_17, %c0_18], %21 {strides = array<i32>} : memref<16x16xf32, #tpu.memory_space<vmem>>, vector<16x16xf32>,
    } else {
    }
    return
  }
  func.func @transform_0(%arg0: i32, %arg1: i32, %arg2: i32) -> (i32, i32) {
    %c0_i32 = arith.constant 0 : i32
    return %arg0, %arg2 : i32, i32
  }
  func.func @transform_1(%arg0: i32, %arg1: i32, %arg2: i32) -> (i32, i32) {
    %c0_i32 = arith.constant 0 : i32
    %c0_i32_0 = arith.constant 0 : i32
    return %c0_i32, %arg2 : i32, i32
  }
  func.func @transform_2(%arg0: i32, %arg1: i32, %arg2: i32) -> (i32, i32) {
    %c0_i32 = arith.constant 0 : i32
    %c0_i32_0 = arith.constant 0 : i32
    return %c0_i32, %arg2 : i32, i32
  }
  func.func @transform_3(%arg0: i32, %arg1: i32, %arg2: i32) -> (i32, i32) {
    %c0_i32 = arith.constant 0 : i32
    return %arg2, %arg1 : i32, i32
  }
  func.func @transform_4(%arg0: i32, %arg1: i32, %arg2: i32) -> (i32, i32) {
    %c0_i32 = arith.constant 0 : i32
    return %arg0, %arg1 : i32, i32
  }
}

module attributes {stable_mosaic.version = 11 : i64} {
  func.func @_bn_mm_kernel(%arg0: i32, %arg1: i32, %arg2: i32, %arg3: memref<16x24xf32, #tpu.memory_space<vmem>>, %arg4: memref<1x24xf32, #tpu.memory_space<vmem>>, %arg5: memref<1x24xf32, #tpu.memory_space<vmem>>, %arg6: memref<24x16xbf16, #tpu.memory_space<vmem>>, %arg7: memref<16x16xf32, #tpu.memory_space<vmem>>, %arg8: memref<16x16xf32, #tpu.memory_space<vmem>>) attributes {dimension_semantics = [#tpu.dimension_semantics<parallel>, #tpu.dimension_semantics<parallel>, #tpu.dimension_semantics<arbitrary>], iteration_bounds = array<i64: 1, 1, 1>, scalar_prefetch = 0 : i64, scratch_operands = 1 : i64, tpu.core_type = #tpu.core_type<tc>, window_params = [{transform_indices = @transform_0, window_bounds = array<i64: 16, 24>}, {transform_indices = @transform_1, window_bounds = array<i64: 1, 24>}, {transform_indices = @transform_2, window_bounds = array<i64: 1, 24>}, {transform_indices = @transform_3, window_bounds = array<i64: 24, 16>}, {transform_indices = @transform_4, window_bounds = array<i64: 16, 16>}]} {
    %c0_i32 = arith.constant 0 : i32
    %0 = arith.cmpi eq, %arg2, %c0_i32 : i32
    %1 = arith.extui %0 : i1 to i32
    %c0_i32_0 = arith.constant 0 : i32
    %2 = arith.cmpi ne, %1, %c0_i32_0 : i32
    scf.if %2 {
      %cst_15 = arith.constant 0.000000e+00 : f32
      %21 = vector.broadcast %cst_15 : f32 to vector<16x16xf32>
      %c0_16 = arith.constant 0 : index
      %c0_17 = arith.constant 0 : index
      %22 = vector.load %arg8[%c0_16, %c0_17] : memref<16x16xf32, #tpu.memory_space<vmem>>, vector<16x16xf32>
      tpu.vector_store %arg8[%c0_16, %c0_17], %21 {strides = array<i32>} : memref<16x16xf32, #tpu.memory_space<vmem>>, vector<16x16xf32>,
    } else {
    }
    %c0 = arith.constant 0 : index
    %c0_1 = arith.constant 0 : index
    %3 = vector.load %arg3[%c0, %c0_1] : memref<16x24xf32, #tpu.memory_space<vmem>>, vector<16x24xf32>
    %c0_2 = arith.constant 0 : index
    %c0_3 = arith.constant 0 : index
    %4 = vector.load %arg4[%c0_2, %c0_3] : memref<1x24xf32, #tpu.memory_space<vmem>>, vector<1x24xf32>
    %5 = vector.broadcast %4 : vector<1x24xf32> to vector<16x24xf32>
    %6 = arith.mulf %3, %5 : vector<16x24xf32>
    %c0_4 = arith.constant 0 : index
    %c0_5 = arith.constant 0 : index
    %7 = vector.load %arg5[%c0_4, %c0_5] : memref<1x24xf32, #tpu.memory_space<vmem>>, vector<1x24xf32>
    %8 = vector.broadcast %7 : vector<1x24xf32> to vector<16x24xf32>
    %9 = arith.addf %6, %8 : vector<16x24xf32>
    %cst = arith.constant 0.000000e+00 : f32
    %10 = vector.broadcast %cst : f32 to vector<16x24xf32>
    %11 = arith.maximumf %9, %10 : vector<16x24xf32>
    %12 = arith.truncf %11 : vector<16x24xf32> to vector<16x24xbf16>
    %c0_6 = arith.constant 0 : index
    %c0_7 = arith.constant 0 : index
    %13 = vector.load %arg8[%c0_6, %c0_7] : memref<16x16xf32, #tpu.memory_space<vmem>>, vector<16x16xf32>
    %c0_8 = arith.constant 0 : index
    %c0_9 = arith.constant 0 : index
    %14 = vector.load %arg6[%c0_8, %c0_9] : memref<24x16xbf16, #tpu.memory_space<vmem>>, vector<24x16xbf16>
    %cst_10 = arith.constant dense<0.000000e+00> : vector<16x16xf32>
    %15 = tpu.matmul %12, %14, %cst_10 {dimension_numbers = #tpu.dot_dimension_numbers<[1], [0], [0], [1], [0, 0, 1, 1], [], []>} : vector<16x24xbf16>, vector<24x16xbf16>, vector<16x16xf32> -> vector<16x16xf32>
    %16 = arith.addf %13, %15 : vector<16x16xf32>
    %c0_11 = arith.constant 0 : index
    %c0_12 = arith.constant 0 : index
    %17 = vector.load %arg8[%c0_11, %c0_12] : memref<16x16xf32, #tpu.memory_space<vmem>>, vector<16x16xf32>
    tpu.vector_store %arg8[%c0_11, %c0_12], %16 {strides = array<i32>} : memref<16x16xf32, #tpu.memory_space<vmem>>, vector<16x16xf32>,
    %c0_i32_13 = arith.constant 0 : i32
    %18 = arith.cmpi eq, %arg2, %c0_i32_13 : i32
    %19 = arith.extui %18 : i1 to i32
    %c0_i32_14 = arith.constant 0 : i32
    %20 = arith.cmpi ne, %19, %c0_i32_14 : i32
    scf.if %20 {
      %c0_15 = arith.constant 0 : index
      %c0_16 = arith.constant 0 : index
      %21 = vector.load %arg8[%c0_15, %c0_16] : memref<16x16xf32, #tpu.memory_space<vmem>>, vector<16x16xf32>
      %c0_17 = arith.constant 0 : index
      %c0_18 = arith.constant 0 : index
      %22 = vector.load %arg7[%c0_17, %c0_18] : memref<16x16xf32, #tpu.memory_space<vmem>>, vector<16x16xf32>
      tpu.vector_store %arg7[%c0_17, %c0_18], %21 {strides = array<i32>} : memref<16x16xf32, #tpu.memory_space<vmem>>, vector<16x16xf32>,
    } else {
    }
    return
  }
  func.func @transform_0(%arg0: i32, %arg1: i32, %arg2: i32) -> (i32, i32) {
    %c0_i32 = arith.constant 0 : i32
    return %arg0, %arg2 : i32, i32
  }
  func.func @transform_1(%arg0: i32, %arg1: i32, %arg2: i32) -> (i32, i32) {
    %c0_i32 = arith.constant 0 : i32
    %c0_i32_0 = arith.constant 0 : i32
    return %c0_i32, %arg2 : i32, i32
  }
  func.func @transform_2(%arg0: i32, %arg1: i32, %arg2: i32) -> (i32, i32) {
    %c0_i32 = arith.constant 0 : i32
    %c0_i32_0 = arith.constant 0 : i32
    return %c0_i32, %arg2 : i32, i32
  }
  func.func @transform_3(%arg0: i32, %arg1: i32, %arg2: i32) -> (i32, i32) {
    %c0_i32 = arith.constant 0 : i32
    return %arg2, %arg1 : i32, i32
  }
  func.func @transform_4(%arg0: i32, %arg1: i32, %arg2: i32) -> (i32, i32) {
    %c0_i32 = arith.constant 0 : i32
    return %arg0, %arg1 : i32, i32
  }
}

module attributes {stable_mosaic.version = 11 : i64} {
  func.func @_dense_conv_kernel(%arg0: i32, %arg1: memref<1x64x16xf32, #tpu.memory_space<vmem>>, %arg2: memref<1x16xf32, #tpu.memory_space<vmem>>, %arg3: memref<1x16xf32, #tpu.memory_space<vmem>>, %arg4: memref<64x1xf32, #tpu.memory_space<vmem>>, %arg5: memref<16x256xbf16, #tpu.memory_space<vmem>>, %arg6: memref<1x22x8xf32, #tpu.memory_space<vmem>>) attributes {dimension_semantics = [#tpu.dimension_semantics<parallel>], iteration_bounds = array<i64: 2>, scalar_prefetch = 0 : i64, scratch_operands = 0 : i64, tpu.core_type = #tpu.core_type<tc>, window_params = [{transform_indices = @transform_0, window_bounds = array<i64: 1, 64, 16>}, {pipeline_mode = #tpu.pipeline_mode<synchronous>, transform_indices = @transform_1, window_bounds = array<i64: 1, 16>}, {pipeline_mode = #tpu.pipeline_mode<synchronous>, transform_indices = @transform_2, window_bounds = array<i64: 1, 16>}, {pipeline_mode = #tpu.pipeline_mode<synchronous>, transform_indices = @transform_3, window_bounds = array<i64: 64, 1>}, {pipeline_mode = #tpu.pipeline_mode<synchronous>, transform_indices = @transform_4, window_bounds = array<i64: 16, 256>}, {transform_indices = @transform_5, window_bounds = array<i64: 1, 22, 8>}]} {
    %c0 = arith.constant 0 : index
    %c0_0 = arith.constant 0 : index
    %c0_1 = arith.constant 0 : index
    %0 = vector.load %arg1[%c0, %c0_0, %c0_1] : memref<1x64x16xf32, #tpu.memory_space<vmem>>, vector<1x64x16xf32>
    %1 = vector.shape_cast %0 : vector<1x64x16xf32> to vector<64x16xf32>
    %c0_2 = arith.constant 0 : index
    %c0_3 = arith.constant 0 : index
    %2 = vector.load %arg2[%c0_2, %c0_3] : memref<1x16xf32, #tpu.memory_space<vmem>>, vector<1x16xf32>
    %3 = vector.broadcast %2 : vector<1x16xf32> to vector<64x16xf32>
    %4 = arith.mulf %1, %3 : vector<64x16xf32>
    %c0_4 = arith.constant 0 : index
    %c0_5 = arith.constant 0 : index
    %5 = vector.load %arg3[%c0_4, %c0_5] : memref<1x16xf32, #tpu.memory_space<vmem>>, vector<1x16xf32>
    %6 = vector.broadcast %5 : vector<1x16xf32> to vector<64x16xf32>
    %7 = arith.addf %4, %6 : vector<64x16xf32>
    %cst = arith.constant 0.000000e+00 : f32
    %8 = vector.broadcast %cst : f32 to vector<64x16xf32>
    %9 = arith.maximumf %7, %8 : vector<64x16xf32>
    %c0_6 = arith.constant 0 : index
    %c0_7 = arith.constant 0 : index
    %10 = vector.load %arg4[%c0_6, %c0_7] : memref<64x1xf32, #tpu.memory_space<vmem>>, vector<64x1xf32>
    %11 = vector.broadcast %10 : vector<64x1xf32> to vector<64x16xf32>
    %12 = arith.mulf %9, %11 : vector<64x16xf32>
    %13 = arith.truncf %12 : vector<64x16xf32> to vector<64x16xbf16>
    %c0_8 = arith.constant 0 : index
    %c0_9 = arith.constant 0 : index
    %14 = vector.load %arg5[%c0_8, %c0_9] : memref<16x256xbf16, #tpu.memory_space<vmem>>, vector<16x256xbf16>
    %cst_10 = arith.constant dense<0.000000e+00> : vector<64x256xf32>
    %15 = tpu.matmul %13, %14, %cst_10 {dimension_numbers = #tpu.dot_dimension_numbers<[1], [0], [0], [1], [0, 0, 1, 1], [], []>} : vector<64x16xbf16>, vector<16x256xbf16>, vector<64x256xf32> -> vector<64x256xf32>
    %16 = vector.extract_strided_slice %15 {offsets = [0, 0], sizes = [22, 8], strides = [1, 1]} : vector<64x256xf32> to vector<22x8xf32>
    %17 = vector.extract_strided_slice %15 {offsets = [1, 8], sizes = [22, 8], strides = [1, 1]} : vector<64x256xf32> to vector<22x8xf32>
    %18 = arith.addf %16, %17 : vector<22x8xf32>
    %19 = vector.extract_strided_slice %15 {offsets = [2, 16], sizes = [22, 8], strides = [1, 1]} : vector<64x256xf32> to vector<22x8xf32>
    %20 = arith.addf %18, %19 : vector<22x8xf32>
    %21 = vector.extract_strided_slice %15 {offsets = [4, 24], sizes = [22, 8], strides = [1, 1]} : vector<64x256xf32> to vector<22x8xf32>
    %22 = arith.addf %20, %21 : vector<22x8xf32>
    %23 = vector.extract_strided_slice %15 {offsets = [5, 32], sizes = [22, 8], strides = [1, 1]} : vector<64x256xf32> to vector<22x8xf32>
    %24 = arith.addf %22, %23 : vector<22x8xf32>
    %25 = vector.extract_strided_slice %15 {offsets = [6, 40], sizes = [22, 8], strides = [1, 1]} : vector<64x256xf32> to vector<22x8xf32>
    %26 = arith.addf %24, %25 : vector<22x8xf32>
    %27 = vector.extract_strided_slice %15 {offsets = [8, 48], sizes = [22, 8], strides = [1, 1]} : vector<64x256xf32> to vector<22x8xf32>
    %28 = arith.addf %26, %27 : vector<22x8xf32>
    %29 = vector.extract_strided_slice %15 {offsets = [9, 56], sizes = [22, 8], strides = [1, 1]} : vector<64x256xf32> to vector<22x8xf32>
    %30 = arith.addf %28, %29 : vector<22x8xf32>
    %31 = vector.extract_strided_slice %15 {offsets = [10, 64], sizes = [22, 8], strides = [1, 1]} : vector<64x256xf32> to vector<22x8xf32>
    %32 = arith.addf %30, %31 : vector<22x8xf32>
    %33 = vector.extract_strided_slice %15 {offsets = [16, 72], sizes = [22, 8], strides = [1, 1]} : vector<64x256xf32> to vector<22x8xf32>
    %34 = arith.addf %32, %33 : vector<22x8xf32>
    %35 = vector.extract_strided_slice %15 {offsets = [17, 80], sizes = [22, 8], strides = [1, 1]} : vector<64x256xf32> to vector<22x8xf32>
    %36 = arith.addf %34, %35 : vector<22x8xf32>
    %37 = vector.extract_strided_slice %15 {offsets = [18, 88], sizes = [22, 8], strides = [1, 1]} : vector<64x256xf32> to vector<22x8xf32>
    %38 = arith.addf %36, %37 : vector<22x8xf32>
    %39 = vector.extract_strided_slice %15 {offsets = [20, 96], sizes = [22, 8], strides = [1, 1]} : vector<64x256xf32> to vector<22x8xf32>
    %40 = arith.addf %38, %39 : vector<22x8xf32>
    %41 = vector.extract_strided_slice %15 {offsets = [21, 104], sizes = [22, 8], strides = [1, 1]} : vector<64x256xf32> to vector<22x8xf32>
    %42 = arith.addf %40, %41 : vector<22x8xf32>
    %43 = vector.extract_strided_slice %15 {offsets = [22, 112], sizes = [22, 8], strides = [1, 1]} : vector<64x256xf32> to vector<22x8xf32>
    %44 = arith.addf %42, %43 : vector<22x8xf32>
    %45 = vector.extract_strided_slice %15 {offsets = [24, 120], sizes = [22, 8], strides = [1, 1]} : vector<64x256xf32> to vector<22x8xf32>
    %46 = arith.addf %44, %45 : vector<22x8xf32>
    %47 = vector.extract_strided_slice %15 {offsets = [25, 128], sizes = [22, 8], strides = [1, 1]} : vector<64x256xf32> to vector<22x8xf32>
    %48 = arith.addf %46, %47 : vector<22x8xf32>
    %49 = vector.extract_strided_slice %15 {offsets = [26, 136], sizes = [22, 8], strides = [1, 1]} : vector<64x256xf32> to vector<22x8xf32>
    %50 = arith.addf %48, %49 : vector<22x8xf32>
    %51 = vector.extract_strided_slice %15 {offsets = [32, 144], sizes = [22, 8], strides = [1, 1]} : vector<64x256xf32> to vector<22x8xf32>
    %52 = arith.addf %50, %51 : vector<22x8xf32>
    %53 = vector.extract_strided_slice %15 {offsets = [33, 152], sizes = [22, 8], strides = [1, 1]} : vector<64x256xf32> to vector<22x8xf32>
    %54 = arith.addf %52, %53 : vector<22x8xf32>
    %55 = vector.extract_strided_slice %15 {offsets = [34, 160], sizes = [22, 8], strides = [1, 1]} : vector<64x256xf32> to vector<22x8xf32>
    %56 = arith.addf %54, %55 : vector<22x8xf32>
    %57 = vector.extract_strided_slice %15 {offsets = [36, 168], sizes = [22, 8], strides = [1, 1]} : vector<64x256xf32> to vector<22x8xf32>
    %58 = arith.addf %56, %57 : vector<22x8xf32>
    %59 = vector.extract_strided_slice %15 {offsets = [37, 176], sizes = [22, 8], strides = [1, 1]} : vector<64x256xf32> to vector<22x8xf32>
    %60 = arith.addf %58, %59 : vector<22x8xf32>
    %61 = vector.extract_strided_slice %15 {offsets = [38, 184], sizes = [22, 8], strides = [1, 1]} : vector<64x256xf32> to vector<22x8xf32>
    %62 = arith.addf %60, %61 : vector<22x8xf32>
    %63 = vector.extract_strided_slice %15 {offsets = [40, 192], sizes = [22, 8], strides = [1, 1]} : vector<64x256xf32> to vector<22x8xf32>
    %64 = arith.addf %62, %63 : vector<22x8xf32>
    %65 = vector.extract_strided_slice %15 {offsets = [41, 200], sizes = [22, 8], strides = [1, 1]} : vector<64x256xf32> to vector<22x8xf32>
    %66 = arith.addf %64, %65 : vector<22x8xf32>
    %67 = vector.extract_strided_slice %15 {offsets = [42, 208], sizes = [22, 8], strides = [1, 1]} : vector<64x256xf32> to vector<22x8xf32>
    %68 = arith.addf %66, %67 : vector<22x8xf32>
    %c0_11 = arith.constant 0 : index
    %c0_12 = arith.constant 0 : index
    %c0_13 = arith.constant 0 : index
    %69 = vector.load %arg6[%c0_11, %c0_12, %c0_13] : memref<1x22x8xf32, #tpu.memory_space<vmem>>, vector<1x22x8xf32>
    %70 = vector.shape_cast %69 : vector<1x22x8xf32> to vector<22x8xf32>
    %71 = vector.shape_cast %68 : vector<22x8xf32> to vector<1x22x8xf32>
    tpu.vector_store %arg6[%c0_11, %c0_12, %c0_13], %71 {strides = array<i32>} : memref<1x22x8xf32, #tpu.memory_space<vmem>>, vector<1x22x8xf32>,
    return
  }
  func.func @transform_0(%arg0: i32) -> (i32, i32, i32) {
    %c0_i32 = arith.constant 0 : i32
    %c0_i32_0 = arith.constant 0 : i32
    %c0_i32_1 = arith.constant 0 : i32
    return %arg0, %c0_i32, %c0_i32_0 : i32, i32, i32
  }
  func.func @transform_1(%arg0: i32) -> (i32, i32) {
    %c0_i32 = arith.constant 0 : i32
    %c0_i32_0 = arith.constant 0 : i32
    %c0_i32_1 = arith.constant 0 : i32
    return %c0_i32, %c0_i32_0 : i32, i32
  }
  func.func @transform_2(%arg0: i32) -> (i32, i32) {
    %c0_i32 = arith.constant 0 : i32
    %c0_i32_0 = arith.constant 0 : i32
    %c0_i32_1 = arith.constant 0 : i32
    return %c0_i32, %c0_i32_0 : i32, i32
  }
  func.func @transform_3(%arg0: i32) -> (i32, i32) {
    %c0_i32 = arith.constant 0 : i32
    %c0_i32_0 = arith.constant 0 : i32
    %c0_i32_1 = arith.constant 0 : i32
    return %c0_i32, %c0_i32_0 : i32, i32
  }
  func.func @transform_4(%arg0: i32) -> (i32, i32) {
    %c0_i32 = arith.constant 0 : i32
    %c0_i32_0 = arith.constant 0 : i32
    %c0_i32_1 = arith.constant 0 : i32
    return %c0_i32, %c0_i32_0 : i32, i32
  }
  func.func @transform_5(%arg0: i32) -> (i32, i32, i32) {
    %c0_i32 = arith.constant 0 : i32
    %c0_i32_0 = arith.constant 0 : i32
    %c0_i32_1 = arith.constant 0 : i32
    return %arg0, %c0_i32, %c0_i32_0 : i32, i32, i32
  }
}

module attributes {stable_mosaic.version = 11 : i64} {
  func.func @_head_kernel(%arg0: memref<2x8x32xf32, #tpu.memory_space<vmem>>, %arg1: memref<1x1x32xf32, #tpu.memory_space<vmem>>, %arg2: memref<1x1x32xf32, #tpu.memory_space<vmem>>, %arg3: memref<32x3xf32, #tpu.memory_space<vmem>>, %arg4: memref<1x3xf32, #tpu.memory_space<vmem>>, %arg5: memref<2x3xf32, #tpu.memory_space<vmem>>) attributes {dimension_semantics = [], scalar_prefetch = 0 : i64, scratch_operands = 0 : i64, tpu.core_type = #tpu.core_type<tc>} {
    %c0 = arith.constant 0 : index
    %c0_0 = arith.constant 0 : index
    %c0_1 = arith.constant 0 : index
    %0 = vector.load %arg0[%c0, %c0_0, %c0_1] : memref<2x8x32xf32, #tpu.memory_space<vmem>>, vector<2x8x32xf32>
    %c0_2 = arith.constant 0 : index
    %c0_3 = arith.constant 0 : index
    %c0_4 = arith.constant 0 : index
    %1 = vector.load %arg1[%c0_2, %c0_3, %c0_4] : memref<1x1x32xf32, #tpu.memory_space<vmem>>, vector<1x1x32xf32>
    %2 = vector.broadcast %1 : vector<1x1x32xf32> to vector<2x8x32xf32>
    %3 = arith.mulf %0, %2 : vector<2x8x32xf32>
    %c0_5 = arith.constant 0 : index
    %c0_6 = arith.constant 0 : index
    %c0_7 = arith.constant 0 : index
    %4 = vector.load %arg2[%c0_5, %c0_6, %c0_7] : memref<1x1x32xf32, #tpu.memory_space<vmem>>, vector<1x1x32xf32>
    %5 = vector.broadcast %4 : vector<1x1x32xf32> to vector<2x8x32xf32>
    %6 = arith.addf %3, %5 : vector<2x8x32xf32>
    %cst = arith.constant 0.000000e+00 : f32
    %7 = vector.broadcast %cst : f32 to vector<2x8x32xf32>
    %8 = arith.maximumf %6, %7 : vector<2x8x32xf32>
    %cst_8 = arith.constant dense<0.000000e+00> : vector<2x32xf32>
    %9 = vector.multi_reduction <add>, %8, %cst_8 [1] : vector<2x8x32xf32> to vector<2x32xf32>
    %cst_9 = arith.constant 8.000000e+00 : f32
    %10 = vector.broadcast %cst_9 : f32 to vector<2x32xf32>
    %11 = arith.divf %9, %10 : vector<2x32xf32>
    %c0_10 = arith.constant 0 : index
    %c0_11 = arith.constant 0 : index
    %12 = vector.load %arg3[%c0_10, %c0_11] : memref<32x3xf32, #tpu.memory_space<vmem>>, vector<32x3xf32>
    %cst_12 = arith.constant dense<0.000000e+00> : vector<2x3xf32>
    %13 = tpu.matmul %11, %12, %cst_12 {dimension_numbers = #tpu.dot_dimension_numbers<[1], [0], [0], [1], [0, 0, 1, 1], [], []>} : vector<2x32xf32>, vector<32x3xf32>, vector<2x3xf32> -> vector<2x3xf32>
    %c0_13 = arith.constant 0 : index
    %c0_14 = arith.constant 0 : index
    %14 = vector.load %arg4[%c0_13, %c0_14] : memref<1x3xf32, #tpu.memory_space<vmem>>, vector<1x3xf32>
    %15 = vector.broadcast %14 : vector<1x3xf32> to vector<2x3xf32>
    %16 = arith.addf %13, %15 : vector<2x3xf32>
    %c0_15 = arith.constant 0 : index
    %c0_16 = arith.constant 0 : index
    %17 = vector.load %arg5[%c0_15, %c0_16] : memref<2x3xf32, #tpu.memory_space<vmem>>, vector<2x3xf32>
    tpu.vector_store %arg5[%c0_15, %c0_16], %16 {strides = array<i32>} : memref<2x3xf32, #tpu.memory_space<vmem>>, vector<2x3xf32>,
    return
  }
}

</mosaic_0001>

<llo_original>
// kernel: tile.13
$region0: #{tile.13}
  #allocation0 [shape = 's32[1]{0}', space=sflag, size = 0x4, scoped, tag = 'scoped memory for tile.13']
  %s0 = inlined_call_operand.vmem [shape: f32[16], index: 0, kind: input, shape index: {}]
  %s1 = inlined_call_operand.vmem [shape: f32[8,16], index: 1, kind: output, shape index: {}]
  // Predicated region
  $region2: #{tile.13} parent=0 // pred_check
    _
  $region3: #{tile.13} parent=0 // pred_check_branch
    %3 = sbr.rel (0) target = $region5
  $region4: #{tile.13} parent=0 // pred_region
    _
  $region5: #{tile.13} parent=0 // pred_fallthru
    _
  %v4 = vld [vmem:[%s0] ss:$0 sm:$0xff]
  %5 = vst [vmem:[%s1] sm:$0xff] %v4

// kernel: tile.14
$region0: #{tile.14}
  %s0 = inlined_call_operand.vmem [shape: f32[8,16], index: 0, kind: input, shape index: {}]
  %s1 = inlined_call_operand.vmem [shape: f32[1,128], index: 1, kind: output, shape index: {}]
  $region1: #{tile.14} parent=0
    #allocation0 [shape = 'u8[4096]{0}', space=vmem, size = 0x1000, scoped, tag = 'scoped mem for output reshape']
    %v2 = vld [vmem:[%s0] sm:$0x1]
    %vm3 = vcmask 130048
    %4 = vst.msk [vmem:[#allocation0] sm:$0x1] %vm3, %v2
    %s5 = scalar_lea.vmem %s0, 7
    %v6 = vld [vmem:[%s5] sm:$0x1]
    %7 = vrot.lane.b32.xlu0 %v6, 112
    %v8 = vpop.permute.xlu0 %7
    %vm9 = vcmask 1048448
    %10 = vst.msk [vmem:[#allocation0] sm:$0x1] %vm9, %v8
    %s11 = scalar_lea.vmem %s0, 6
    %v12 = vld [vmem:[%s11] sm:$0x1]
    %13 = vrot.lane.b32.xlu0 %v12, 96
    %v14 = vpop.permute.xlu0 %13
    %vm15 = vcmask 917248
    %16 = vst.msk [vmem:[#allocation0] sm:$0x1] %vm15, %v14
    %s17 = scalar_lea.vmem %s0, 5
    %v18 = vld [vmem:[%s17] sm:$0x1]
    %19 = vrot.lane.b32.xlu0 %v18, 80
    %v20 = vpop.permute.xlu0 %19
    %vm21 = vcmask 786048
    %22 = vst.msk [vmem:[#allocation0] sm:$0x1] %vm21, %v20
    %s23 = scalar_lea.vmem %s0, 4
    %v24 = vld [vmem:[%s23] sm:$0x1]
    %25 = vrot.lane.b32.xlu0 %v24, 64
    %v26 = vpop.permute.xlu0 %25
    %vm27 = vcmask 654848
    %28 = vst.msk [vmem:[#allocation0] sm:$0x1] %vm27, %v26
    %s29 = scalar_lea.vmem %s0, 3
    %v30 = vld [vmem:[%s29] sm:$0x1]
    %31 = vrot.lane.b32.xlu0 %v30, 48
    %v32 = vpop.permute.xlu0 %31
    %vm33 = vcmask 523648
    %34 = vst.msk [vmem:[#allocation0] sm:$0x1] %vm33, %v32
    %s35 = scalar_lea.vmem %s0, 2
    %v36 = vld [vmem:[%s35] sm:$0x1]
    %37 = vrot.lane.b32.xlu0 %v36, 32
    %v38 = vpop.permute.xlu0 %37
    %vm39 = vcmask 392448
    %40 = vst.msk [vmem:[#allocation0] sm:$0x1] %vm39, %v38
    %s41 = scalar_lea.vmem %s0, 1
    %v42 = vld [vmem:[%s41] sm:$0x1]
    %43 = vrot.lane.b32.xlu0 %v42, 16
    %v44 = vpop.permute.xlu0 %43
    %vm45 = vcmask 261248
    %46 = vst.msk [vmem:[#allocation0] sm:$0x1] %vm45, %v44
    %s48 = ssub.s32 2, 1
    %v49 = vld [vmem:[#allocation0] sm:%s48]
    %s51 = ssub.s32 2, 1
    %52 = vst [vmem:[%s1] sm:%s51] %v49

// kernel: densenet_forward.11
$region0: #{densenet_forward.11}
  #allocation0 [shape = 'u32[]', space=smem, size = 0x4, offset = 0x4, fixed_abs, tag = 'smem constant byte address 0x4 - core index']
  #allocation1 [shape = 'u32[72,128]{1,0:T(1,128)}', space=vmem, size = 0x9000, scoped, tag = 'internal scratch']
  %s0 = inlined_call_operand.vmem [shape: f32[128,128], index: 0, kind: input, shape index: {}]
  %s1 = inlined_call_operand.vmem [shape: f32[1,128], index: 1, kind: input, shape index: {}]
  %s2 = inlined_call_operand.vmem [shape: f32[1,128], index: 2, kind: input, shape index: {}]
  %s3 = inlined_call_operand.vmem [shape: f32[128,128], index: 3, kind: output, shape index: {}]
  %s4 = sld [smem:[#allocation0]]
  $region22: #{densenet_forward.11} parent=0
    _
  %s6 = ssub.s32 1, %s4
  %s7 = scalar_select 0, %s6, %s4
  // Predicated region
  $region2: #{densenet_forward.11} parent=0 // pred_check
    _
  $region3: #{densenet_forward.11} parent=0 // pred_check_branch
    %9 = sbr.rel (0) target = $region5
  $region4: #{densenet_forward.11} parent=0 // pred_region
    _
  $region5: #{densenet_forward.11} parent=0 // pred_fallthru
    _
  // Predicated region
  $region6: #{densenet_forward.11} parent=0 // pred_check
    _
  $region7: #{densenet_forward.11} parent=0 // pred_check_branch
    %11 = sbr.rel (0) target = $region9
  $region8: #{densenet_forward.11} parent=0 // pred_region
    _
  $region9: #{densenet_forward.11} parent=0 // pred_fallthru
    _
  // Predicated region
  $region10: #{densenet_forward.11} parent=0 // pred_check
    _
  $region11: #{densenet_forward.11} parent=0 // pred_check_branch
    %13 = sbr.rel (0) target = $region13
  $region12: #{densenet_forward.11} parent=0 // pred_region
    _
  $region13: #{densenet_forward.11} parent=0 // pred_fallthru
    _
  %v14 = vld [vmem:[%s0] sm:$0xff]
  %v15 = vld [vmem:[%s0 + $0x8] sm:$0xff]
  %v16 = vld [vmem:[%s0 + $0x10] sm:$0xff]
  %v17 = vld [vmem:[%s0 + $0x18] sm:$0xff]
  %v18 = vld [vmem:[%s0 + $0x20] sm:$0xff]
  %v19 = vld [vmem:[%s0 + $0x28] sm:$0xff]
  %v20 = vld [vmem:[%s0 + $0x30] sm:$0xff]
  %v21 = vld [vmem:[%s0 + $0x38] sm:$0xff]
  %v22 = vld [vmem:[%s0 + $0x40] sm:$0xff]
  %v23 = vld [vmem:[%s0 + $0x48] sm:$0xff]
  %v24 = vld [vmem:[%s0 + $0x50] sm:$0xff]
  %v25 = vld [vmem:[%s0 + $0x58] sm:$0xff]
  %v26 = vld [vmem:[%s0 + $0x60] sm:$0xff]
  %v27 = vld [vmem:[%s0 + $0x68] sm:$0xff]
  %v28 = vld [vmem:[%s0 + $0x70] sm:$0xff]
  %v29 = vld [vmem:[%s0 + $0x78] sm:$0xff]
  %v30 = vld [vmem:[%s1] sm:$0x1]
  %v32 = vperm.slane %v30, 0
  %v34 = vmul.f32 %v14, %v32
  %v35 = vmul.f32 %v15, %v32
  %v36 = vmul.f32 %v16, %v32
  %v37 = vmul.f32 %v17, %v32
  %v38 = vmul.f32 %v18, %v32
  %v39 = vmul.f32 %v19, %v32
  %v40 = vmul.f32 %v20, %v32
  %v41 = vmul.f32 %v21, %v32
  %v42 = vmul.f32 %v22, %v32
  %v43 = vmul.f32 %v23, %v32
  %v44 = vmul.f32 %v24, %v32
  %v45 = vmul.f32 %v25, %v32
  %v46 = vmul.f32 %v26, %v32
  %v47 = vmul.f32 %v27, %v32
  %v48 = vmul.f32 %v28, %v32
  %v49 = vmul.f32 %v29, %v32
  %v50 = vld [vmem:[%s2] sm:$0x1]
  %v52 = vperm.slane %v50, 0
  %v54 = vadd.f32 %v34, %v52
  %v55 = vadd.f32 %v35, %v52
  %v56 = vadd.f32 %v36, %v52
  %v57 = vadd.f32 %v37, %v52
  %v58 = vadd.f32 %v38, %v52
  %v59 = vadd.f32 %v39, %v52
  %v60 = vadd.f32 %v40, %v52
  %v61 = vadd.f32 %v41, %v52
  %v62 = vadd.f32 %v42, %v52
  %v63 = vadd.f32 %v43, %v52
  %v64 = vadd.f32 %v44, %v52
  %v65 = vadd.f32 %v45, %v52
  %v66 = vadd.f32 %v46, %v52
  %v67 = vadd.f32 %v47, %v52
  %v68 = vadd.f32 %v48, %v52
  %v69 = vadd.f32 %v49, %v52
  %v70 = vmax.f32 %v54, 0.0
  %v71 = vmax.f32 %v55, 0.0
  %v72 = vmax.f32 %v56, 0.0
  %v73 = vmax.f32 %v57, 0.0
  %v74 = vmax.f32 %v58, 0.0
  %v75 = vmax.f32 %v59, 0.0
  %v76 = vmax.f32 %v60, 0.0
  %v77 = vmax.f32 %v61, 0.0
  %v78 = vmax.f32 %v62, 0.0
  %v79 = vmax.f32 %v63, 0.0
  %v80 = vmax.f32 %v64, 0.0
  %v81 = vmax.f32 %v65, 0.0
  %v82 = vmax.f32 %v66, 0.0
  %v83 = vmax.f32 %v67, 0.0
  %v84 = vmax.f32 %v68, 0.0
  %v85 = vmax.f32 %v69, 0.0
  %86 = vst [vmem:[%s3] sm:$0xff] %v70
  %87 = vst [vmem:[%s3 + $0x8] sm:$0xff] %v71
  %88 = vst [vmem:[%s3 + $0x10] sm:$0xff] %v72
  %89 = vst [vmem:[%s3 + $0x18] sm:$0xff] %v73
  %90 = vst [vmem:[%s3 + $0x20] sm:$0xff] %v74
  %91 = vst [vmem:[%s3 + $0x28] sm:$0xff] %v75
  %92 = vst [vmem:[%s3 + $0x30] sm:$0xff] %v76
  %93 = vst [vmem:[%s3 + $0x38] sm:$0xff] %v77
  %94 = vst [vmem:[%s3 + $0x40] sm:$0xff] %v78
  %95 = vst [vmem:[%s3 + $0x48] sm:$0xff] %v79
  %96 = vst [vmem:[%s3 + $0x50] sm:$0xff] %v80
  %97 = vst [vmem:[%s3 + $0x58] sm:$0xff] %v81
  %98 = vst [vmem:[%s3 + $0x60] sm:$0xff] %v82
  %99 = vst [vmem:[%s3 + $0x68] sm:$0xff] %v83
  %100 = vst [vmem:[%s3 + $0x70] sm:$0xff] %v84
  %101 = vst [vmem:[%s3 + $0x78] sm:$0xff] %v85
  // Predicated region
  $region14: #{densenet_forward.11} parent=0 // pred_check
    _
  $region15: #{densenet_forward.11} parent=0 // pred_check_branch
    %103 = sbr.rel (0) target = $region17
  $region16: #{densenet_forward.11} parent=0 // pred_region
    _
  $region17: #{densenet_forward.11} parent=0 // pred_fallthru
    _
  // Predicated region
  $region18: #{densenet_forward.11} parent=0 // pred_check
    _
  $region19: #{densenet_forward.11} parent=0 // pred_check_branch
    %105 = sbr.rel (0) target = $region21
  $region20: #{densenet_forward.11} parent=0 // pred_region
    _
  $region21: #{densenet_forward.11} parent=0 // pred_fallthru
    _

// kernel: densenet_forward.12
$region0: #{densenet_forward.12}
  #allocation0 [shape = 'u32[]', space=smem, size = 0x4, offset = 0x4, fixed_abs, tag = 'smem constant byte address 0x4 - core index']
  #allocation1 [shape = 'u32[72,128]{1,0:T(1,128)}', space=vmem, size = 0x9000, scoped, tag = 'internal scratch']
  #allocation2 [shape = 'f32[128,16]{1,0:T(8,128)}', space=vmem, size = 0x10000, scoped, tag = 'scratch operand']
  %s0 = inlined_call_operand.vmem [shape: f32[128,16], index: 0, kind: input, shape index: {}]
  %s1 = inlined_call_operand.vmem [shape: f32[1,16], index: 1, kind: input, shape index: {}]
  %s2 = inlined_call_operand.vmem [shape: f32[1,16], index: 2, kind: input, shape index: {}]
  %s3 = inlined_call_operand.vmem [shape: bf16[16,16], index: 3, kind: input, shape index: {}]
  %s4 = inlined_call_operand.vmem [shape: f32[128,16], index: 4, kind: output, shape index: {}]
  %s5 = sld [smem:[#allocation0]]
  $region34: #{densenet_forward.12} parent=0
    _
  %s7 = ssub.s32 1, %s5
  %s8 = scalar_select 0, %s7, %s5
  // Predicated region
  $region2: #{densenet_forward.12} parent=0 // pred_check
    _
  $region3: #{densenet_forward.12} parent=0 // pred_check_branch
    %10 = sbr.rel (0) target = $region5
  $region4: #{densenet_forward.12} parent=0 // pred_region
    _
  $region5: #{densenet_forward.12} parent=0 // pred_fallthru
    _
  // Predicated region
  $region6: #{densenet_forward.12} parent=0 // pred_check
    _
  $region7: #{densenet_forward.12} parent=0 // pred_check_branch
    %12 = sbr.rel (0) target = $region9
  $region8: #{densenet_forward.12} parent=0 // pred_region
    _
  $region9: #{densenet_forward.12} parent=0 // pred_fallthru
    _
  // Predicated region
  $region10: #{densenet_forward.12} parent=0 // pred_check
    _
  $region11: #{densenet_forward.12} parent=0 // pred_check_branch
    %14 = sbr.rel (0) target = $region13
  $region12: #{densenet_forward.12} parent=0 // pred_region
    _
  $region13: #{densenet_forward.12} parent=0 // pred_fallthru
    _
  // Predicated region
  $region14: #{densenet_forward.12} parent=0 // pred_check
    _
  $region15: #{densenet_forward.12} parent=0 // pred_check_branch
    %16 = sbr.rel (0) target = $region17
  $region16: #{densenet_forward.12} parent=0 // pred_region
    _
  $region17: #{densenet_forward.12} parent=0 // pred_fallthru
    _
  %p18 = scmp.eq.s32.totalorder 0, 0
  // Predicated region
  $region18: #{densenet_forward.12} parent=0 // pred_check
    %p19 = pneg %p18
  $region19: #{densenet_forward.12} parent=0 // pred_check_branch
    %21 = sbr.rel (%p19) target = $region21
  $region20: #{densenet_forward.12} parent=0 // pred_region
    %vm22 = vcmask 130048
    %23 = vst.msk [vmem:[#allocation2] sm:$0xff] %vm22, 0.0
    %24 = vst.msk [vmem:[#allocation2 + $0x8] sm:$0xff] %vm22, 0.0
    %25 = vst.msk [vmem:[#allocation2 + $0x10] sm:$0xff] %vm22, 0.0
    %26 = vst.msk [vmem:[#allocation2 + $0x18] sm:$0xff] %vm22, 0.0
    %27 = vst.msk [vmem:[#allocation2 + $0x20] sm:$0xff] %vm22, 0.0
    %28 = vst.msk [vmem:[#allocation2 + $0x28] sm:$0xff] %vm22, 0.0
    %29 = vst.msk [vmem:[#allocation2 + $0x30] sm:$0xff] %vm22, 0.0
    %30 = vst.msk [vmem:[#allocation2 + $0x38] sm:$0xff] %vm22, 0.0
    %31 = vst.msk [vmem:[#allocation2 + $0x40] sm:$0xff] %vm22, 0.0
    %32 = vst.msk [vmem:[#allocation2 + $0x48] sm:$0xff] %vm22, 0.0
    %33 = vst.msk [vmem:[#allocation2 + $0x50] sm:$0xff] %vm22, 0.0
    %34 = vst.msk [vmem:[#allocation2 + $0x58] sm:$0xff] %vm22, 0.0
    %35 = vst.msk [vmem:[#allocation2 + $0x60] sm:$0xff] %vm22, 0.0
    %36 = vst.msk [vmem:[#allocation2 + $0x68] sm:$0xff] %vm22, 0.0
    %37 = vst.msk [vmem:[#allocation2 + $0x70] sm:$0xff] %vm22, 0.0
    %38 = vst.msk [vmem:[#allocation2 + $0x78] sm:$0xff] %vm22, 0.0
  $region21: #{densenet_forward.12} parent=0 // pred_fallthru
    _
  %v39 = vld [vmem:[%s0] sm:$0xff]
  %v40 = vld [vmem:[%s0 + $0x8] sm:$0xff]
  %v41 = vld [vmem:[%s0 + $0x10] sm:$0xff]
  %v42 = vld [vmem:[%s0 + $0x18] sm:$0xff]
  %v43 = vld [vmem:[%s0 + $0x20] sm:$0xff]
  %v44 = vld [vmem:[%s0 + $0x28] sm:$0xff]
  %v45 = vld [vmem:[%s0 + $0x30] sm:$0xff]
  %v46 = vld [vmem:[%s0 + $0x38] sm:$0xff]
  %v47 = vld [vmem:[%s0 + $0x40] sm:$0xff]
  %v48 = vld [vmem:[%s0 + $0x48] sm:$0xff]
  %v49 = vld [vmem:[%s0 + $0x50] sm:$0xff]
  %v50 = vld [vmem:[%s0 + $0x58] sm:$0xff]
  %v51 = vld [vmem:[%s0 + $0x60] sm:$0xff]
  %v52 = vld [vmem:[%s0 + $0x68] sm:$0xff]
  %v53 = vld [vmem:[%s0 + $0x70] sm:$0xff]
  %v54 = vld [vmem:[%s0 + $0x78] sm:$0xff]
  %v55 = vld [vmem:[%s1] sm:$0x1]
  %v57 = vperm.slane %v55, 0
  %v59 = vmul.f32 %v39, %v57
  %v60 = vmul.f32 %v40, %v57
  %v61 = vmul.f32 %v41, %v57
  %v62 = vmul.f32 %v42, %v57
  %v63 = vmul.f32 %v43, %v57
  %v64 = vmul.f32 %v44, %v57
  %v65 = vmul.f32 %v45, %v57
  %v66 = vmul.f32 %v46, %v57
  %v67 = vmul.f32 %v47, %v57
  %v68 = vmul.f32 %v48, %v57
  %v69 = vmul.f32 %v49, %v57
  %v70 = vmul.f32 %v50, %v57
  %v71 = vmul.f32 %v51, %v57
  %v72 = vmul.f32 %v52, %v57
  %v73 = vmul.f32 %v53, %v57
  %v74 = vmul.f32 %v54, %v57
  %v75 = vld [vmem:[%s2] sm:$0x1]
  %v77 = vperm.slane %v75, 0
  %v79 = vadd.f32 %v59, %v77
  %v80 = vadd.f32 %v60, %v77
  %v81 = vadd.f32 %v61, %v77
  %v82 = vadd.f32 %v62, %v77
  %v83 = vadd.f32 %v63, %v77
  %v84 = vadd.f32 %v64, %v77
  %v85 = vadd.f32 %v65, %v77
  %v86 = vadd.f32 %v66, %v77
  %v87 = vadd.f32 %v67, %v77
  %v88 = vadd.f32 %v68, %v77
  %v89 = vadd.f32 %v69, %v77
  %v90 = vadd.f32 %v70, %v77
  %v91 = vadd.f32 %v71, %v77
  %v92 = vadd.f32 %v72, %v77
  %v93 = vadd.f32 %v73, %v77
  %v94 = vadd.f32 %v74, %v77
  %v95 = vmax.f32 %v79, 0.0
  %v96 = vmax.f32 %v80, 0.0
  %v97 = vmax.f32 %v81, 0.0
  %v98 = vmax.f32 %v82, 0.0
  %v99 = vmax.f32 %v83, 0.0
  %v100 = vmax.f32 %v84, 0.0
  %v101 = vmax.f32 %v85, 0.0
  %v102 = vmax.f32 %v86, 0.0
  %v103 = vmax.f32 %v87, 0.0
  %v104 = vmax.f32 %v88, 0.0
  %v105 = vmax.f32 %v89, 0.0
  %v106 = vmax.f32 %v90, 0.0
  %v107 = vmax.f32 %v91, 0.0
  %v108 = vmax.f32 %v92, 0.0
  %v109 = vmax.f32 %v93, 0.0
  %v110 = vmax.f32 %v94, 0.0
  %v111 = vpack.c.bf16 %v96, %v95
  %v112 = vpack.c.bf16 %v98, %v97
  %v113 = vpack.c.bf16 %v100, %v99
  %v114 = vpack.c.bf16 %v102, %v101
  %v115 = vpack.c.bf16 %v104, %v103
  %v116 = vpack.c.bf16 %v106, %v105
  %v117 = vpack.c.bf16 %v108, %v107
  %v118 = vpack.c.bf16 %v110, %v109
  %v119 = vld [vmem:[#allocation2] sm:$0xff]
  %v120 = vld [vmem:[#allocation2 + $0x8] sm:$0xff]
  %v121 = vld [vmem:[#allocation2 + $0x10] sm:$0xff]
  %v122 = vld [vmem:[#allocation2 + $0x18] sm:$0xff]
  %v123 = vld [vmem:[#allocation2 + $0x20] sm:$0xff]
  %v124 = vld [vmem:[#allocation2 + $0x28] sm:$0xff]
  %v125 = vld [vmem:[#allocation2 + $0x30] sm:$0xff]
  %v126 = vld [vmem:[#allocation2 + $0x38] sm:$0xff]
  %v127 = vld [vmem:[#allocation2 + $0x40] sm:$0xff]
  %v128 = vld [vmem:[#allocation2 + $0x48] sm:$0xff]
  %v129 = vld [vmem:[#allocation2 + $0x50] sm:$0xff]
  %v130 = vld [vmem:[#allocation2 + $0x58] sm:$0xff]
  %v131 = vld [vmem:[#allocation2 + $0x60] sm:$0xff]
  %v132 = vld [vmem:[#allocation2 + $0x68] sm:$0xff]
  %v133 = vld [vmem:[#allocation2 + $0x70] sm:$0xff]
  %v134 = vld [vmem:[#allocation2 + $0x78] sm:$0xff]
  %v135 = vld [vmem:[%s3] sm:$0xf]
  %v136 = vld [vmem:[%s3 + $0x4] sm:$0xf]
  %v139 = vunpack.c.l.b16 %v135
  %v140 = vunpack.c.l.b16 %v136
  %v141 = vpack.c.b16 %v140, %v139
  %vm143 = vcmask 130048
  %v145 = vsel %vm143, %v111, 0
  %v148 = vsel %vm143, %v112, 0
  %v151 = vsel %vm143, %v113, 0
  %v154 = vsel %vm143, %v114, 0
  %v157 = vsel %vm143, %v115, 0
  %v160 = vsel %vm143, %v116, 0
  %v163 = vsel %vm143, %v117, 0
  %v166 = vsel %vm143, %v118, 0
  %168 = vmatpush.bf16.msra.mxu0 0
  %169 = vmatpush.bf16.msra.mxu0 0
  %170 = vmatpush.bf16.msra.mxu0 0
  %171 = vmatpush.bf16.msra.mxu0 0
  %172 = vmatpush.bf16.msra.mxu0 0
  %173 = vmatpush.bf16.msra.mxu0 0
  %174 = vmatpush.bf16.msra.mxu0 0
  %175 = vmatpush.bf16.msra.mxu0 %v141
  %176 = vmatmul.bf16.gmra.mxu0 %v145
  %v177 = vpop.f32.mrf.mxu0
  %v178 = vadd.f32 0.0, %v177
  %v179 = vpop.f32.mrf.mxu0
  %v180 = vadd.f32 0.0, %v179
  %181 = vmatmul.bf16.gmra.mxu0 %v148
  %v182 = vpop.f32.mrf.mxu0
  %v183 = vadd.f32 0.0, %v182
  %v184 = vpop.f32.mrf.mxu0
  %v185 = vadd.f32 0.0, %v184
  %186 = vmatmul.bf16.gmra.mxu0 %v151
  %v187 = vpop.f32.mrf.mxu0
  %v188 = vadd.f32 0.0, %v187
  %v189 = vpop.f32.mrf.mxu0
  %v190 = vadd.f32 0.0, %v189
  %191 = vmatmul.bf16.gmra.mxu0 %v154
  %v192 = vpop.f32.mrf.mxu0
  %v193 = vadd.f32 0.0, %v192
  %v194 = vpop.f32.mrf.mxu0
  %v195 = vadd.f32 0.0, %v194
  %196 = vmatmul.bf16.gmra.mxu0 %v157
  %v197 = vpop.f32.mrf.mxu0
  %v198 = vadd.f32 0.0, %v197
  %v199 = vpop.f32.mrf.mxu0
  %v200 = vadd.f32 0.0, %v199
  %201 = vmatmul.bf16.gmra.mxu0 %v160
  %v202 = vpop.f32.mrf.mxu0
  %v203 = vadd.f32 0.0, %v202
  %v204 = vpop.f32.mrf.mxu0
  %v205 = vadd.f32 0.0, %v204
  %206 = vmatmul.bf16.gmra.mxu0 %v163
  %v207 = vpop.f32.mrf.mxu0
  %v208 = vadd.f32 0.0, %v207
  %v209 = vpop.f32.mrf.mxu0
  %v210 = vadd.f32 0.0, %v209
  %211 = vmatmul.bf16.gmra.mxu0 %v166
  %v212 = vpop.f32.mrf.mxu0
  %v213 = vadd.f32 0.0, %v212
  %v214 = vpop.f32.mrf.mxu0
  %v215 = vadd.f32 0.0, %v214
  %216 = vdwg.mxu0
  %v217 = vadd.f32 %v119, %v178
  %v218 = vadd.f32 %v120, %v180
  %v219 = vadd.f32 %v121, %v183
  %v220 = vadd.f32 %v122, %v185
  %v221 = vadd.f32 %v123, %v188
  %v222 = vadd.f32 %v124, %v190
  %v223 = vadd.f32 %v125, %v193
  %v224 = vadd.f32 %v126, %v195
  %v225 = vadd.f32 %v127, %v198
  %v226 = vadd.f32 %v128, %v200
  %v227 = vadd.f32 %v129, %v203
  %v228 = vadd.f32 %v130, %v205
  %v229 = vadd.f32 %v131, %v208
  %v230 = vadd.f32 %v132, %v210
  %v231 = vadd.f32 %v133, %v213
  %v232 = vadd.f32 %v134, %v215
  %233 = vst.msk [vmem:[#allocation2] sm:$0xff] %vm143, %v217
  %234 = vst.msk [vmem:[#allocation2 + $0x8] sm:$0xff] %vm143, %v218
  %235 = vst.msk [vmem:[#allocation2 + $0x10] sm:$0xff] %vm143, %v219
  %236 = vst.msk [vmem:[#allocation2 + $0x18] sm:$0xff] %vm143, %v220
  %237 = vst.msk [vmem:[#allocation2 + $0x20] sm:$0xff] %vm143, %v221
  %238 = vst.msk [vmem:[#allocation2 + $0x28] sm:$0xff] %vm143, %v222
  %239 = vst.msk [vmem:[#allocation2 + $0x30] sm:$0xff] %vm143, %v223
  %240 = vst.msk [vmem:[#allocation2 + $0x38] sm:$0xff] %vm143, %v224
  %241 = vst.msk [vmem:[#allocation2 + $0x40] sm:$0xff] %vm143, %v225
  %242 = vst.msk [vmem:[#allocation2 + $0x48] sm:$0xff] %vm143, %v226
  %243 = vst.msk [vmem:[#allocation2 + $0x50] sm:$0xff] %vm143, %v227
  %244 = vst.msk [vmem:[#allocation2 + $0x58] sm:$0xff] %vm143, %v228
  %245 = vst.msk [vmem:[#allocation2 + $0x60] sm:$0xff] %vm143, %v229
  %246 = vst.msk [vmem:[#allocation2 + $0x68] sm:$0xff] %vm143, %v230
  %247 = vst.msk [vmem:[#allocation2 + $0x70] sm:$0xff] %vm143, %v231
  %248 = vst.msk [vmem:[#allocation2 + $0x78] sm:$0xff] %vm143, %v232
  // Predicated region
  $region22: #{densenet_forward.12} parent=0 // pred_check
    %p249 = pneg %p18
  $region23: #{densenet_forward.12} parent=0 // pred_check_branch
    %251 = sbr.rel (%p249) target = $region25
  $region24: #{densenet_forward.12} parent=0 // pred_region
    %v252 = vld [vmem:[#allocation2] sm:$0xff]
    %v253 = vld [vmem:[#allocation2 + $0x8] sm:$0xff]
    %v254 = vld [vmem:[#allocation2 + $0x10] sm:$0xff]
    %v255 = vld [vmem:[#allocation2 + $0x18] sm:$0xff]
    %v256 = vld [vmem:[#allocation2 + $0x20] sm:$0xff]
    %v257 = vld [vmem:[#allocation2 + $0x28] sm:$0xff]
    %v258 = vld [vmem:[#allocation2 + $0x30] sm:$0xff]
    %v259 = vld [vmem:[#allocation2 + $0x38] sm:$0xff]
    %v260 = vld [vmem:[#allocation2 + $0x40] sm:$0xff]
    %v261 = vld [vmem:[#allocation2 + $0x48] sm:$0xff]
    %v262 = vld [vmem:[#allocation2 + $0x50] sm:$0xff]
    %v263 = vld [vmem:[#allocation2 + $0x58] sm:$0xff]
    %v264 = vld [vmem:[#allocation2 + $0x60] sm:$0xff]
    %v265 = vld [vmem:[#allocation2 + $0x68] sm:$0xff]
    %v266 = vld [vmem:[#allocation2 + $0x70] sm:$0xff]
    %v267 = vld [vmem:[#allocation2 + $0x78] sm:$0xff]
    %268 = vst.msk [vmem:[%s4] sm:$0xff] %vm143, %v252
    %269 = vst.msk [vmem:[%s4 + $0x8] sm:$0xff] %vm143, %v253
    %270 = vst.msk [vmem:[%s4 + $0x10] sm:$0xff] %vm143, %v254
    %271 = vst.msk [vmem:[%s4 + $0x18] sm:$0xff] %vm143, %v255
    %272 = vst.msk [vmem:[%s4 + $0x20] sm:$0xff] %vm143, %v256
    %273 = vst.msk [vmem:[%s4 + $0x28] sm:$0xff] %vm143, %v257
    %274 = vst.msk [vmem:[%s4 + $0x30] sm:$0xff] %vm143, %v258
    %275 = vst.msk [vmem:[%s4 + $0x38] sm:$0xff] %vm143, %v259
    %276 = vst.msk [vmem:[%s4 + $0x40] sm:$0xff] %vm143, %v260
    %277 = vst.msk [vmem:[%s4 + $0x48] sm:$0xff] %vm143, %v261
    %278 = vst.msk [vmem:[%s4 + $0x50] sm:$0xff] %vm143, %v262
    %279 = vst.msk [vmem:[%s4 + $0x58] sm:$0xff] %vm143, %v263
    %280 = vst.msk [vmem:[%s4 + $0x60] sm:$0xff] %vm143, %v264
    %281 = vst.msk [vmem:[%s4 + $0x68] sm:$0xff] %vm143, %v265
    %282 = vst.msk [vmem:[%s4 + $0x70] sm:$0xff] %vm143, %v266
    %283 = vst.msk [vmem:[%s4 + $0x78] sm:$0xff] %vm143, %v267
  $region25: #{densenet_forward.12} parent=0 // pred_fallthru
    _
  // Predicated region
  $region26: #{densenet_forward.12} parent=0 // pred_check
    _
  $region27: #{densenet_forward.12} parent=0 // pred_check_branch
    %285 = sbr.rel (0) target = $region29
  $region28: #{densenet_forward.12} parent=0 // pred_region
    _
  $region29: #{densenet_forward.12} parent=0 // pred_fallthru
    _
  // Predicated region
  $region30: #{densenet_forward.12} parent=0 // pred_check
    _
  $region31: #{densenet_forward.12} parent=0 // pred_check_branch
    %287 = sbr.rel (0) target = $region33
  $region32: #{densenet_forward.12} parent=0 // pred_region
    _
  $region33: #{densenet_forward.12} parent=0 // pred_fallthru
    _

// kernel: densenet_forward.13
$region0: #{densenet_forward.13}
  #allocation0 [shape = 'u32[]', space=smem, size = 0x4, offset = 0x4, fixed_abs, tag = 'smem constant byte address 0x4 - core index']
  #allocation1 [shape = 'u32[72,128]{1,0:T(1,128)}', space=vmem, size = 0x9000, scoped, tag = 'internal scratch']
  %s0 = inlined_call_operand.vmem [shape: f32[2,216,16], index: 0, kind: input, shape index: {}]
  %s1 = inlined_call_operand.vmem [shape: f32[1,16], index: 1, kind: input, shape index: {}]
  %s2 = inlined_call_operand.vmem [shape: f32[1,16], index: 2, kind: input, shape index: {}]
  %s3 = inlined_call_operand.vmem [shape: f32[216,1], index: 3, kind: input, shape index: {}]
  %s4 = inlined_call_operand.vmem [shape: bf16[16,256], index: 4, kind: input, shape index: {}]
  %s5 = inlined_call_operand.vmem [shape: f32[2,130,8], index: 5, kind: output, shape index: {}]
  %s6 = sld [smem:[#allocation0]]
  $region53: #{densenet_forward.13} parent=0
    _
  %s8 = ssub.s32 1, %s6
  %s9 = scalar_select 0, %s8, %s6
  loop: start=0, step=1, limit=4
  $region2: #{densenet_forward.13} parent=0 // loop_pre_header
    _
  $region3: #{densenet_forward.13} parent=0 // loop_header
    %s11 = sphi 0, %s15
    %p12 = scmp.ge.s32.totalorder %s11, 4
    %s21 = sphi 0, %s23
    %s24 = sphi 0, %s21
    %s25 = sphi 0, %s24
    %s41 = sphi 0, %s25
    %s45 = sphi 0, %s45
    %s47 = sphi 0, %s45
    %s48 = sphi 0, %s47
    %s62 = sphi 0, %s48
    %s66 = sphi 0, %s66
    %s68 = sphi 0, %s66
    %s69 = sphi 0, %s68
    %s83 = sphi 0, %s69
    %s87 = sphi 0, %s87
    %s89 = sphi 0, %s87
    %s90 = sphi 0, %s89
    %s104 = sphi 0, %s90
    %s108 = sphi 0, %s108
    %s110 = sphi 0, %s108
    %s111 = sphi 0, %s110
    %s125 = sphi 0, %s111
    %s131 = sphi 0, %s133
    %s134 = sphi 0, %s131
    %s135 = sphi 0, %s134
    %s151 = sphi 0, %s135
  $region4: #{densenet_forward.13} parent=0 // loop_header_branch
    %14 = sbr.rel (%p12) target = $region8
  $region5: #{densenet_forward.13} parent=0 // loop_body
    %s16 = ssub.s32 %s11, 1
    %s17 = ssub.s32 %s11, 2
    %s18 = sadd.s32 %s11, 1
    %s19 = ssub.s32 %s11, %s18
    %p20 = scmp.eq.s32.totalorder %s19, 0
    %s22 = sadd.s32 %s21, 1
    %s23 = scalar_select %p20, %s21, %s22
    %p26 = pneg %p20
    %p27 = scmp.eq.s32.totalorder %s11, 1
    %p28 = por %p26, %p27
    %p29 = scmp.ne.s32.totalorder %s21, %s24
    %p30 = scmp.eq.s32.totalorder %s11, 0
    %p31 = por %p29, %p30
    %p32 = scmp.ne.s32.totalorder %s21, %s24
    %p33 = scmp.eq.s32.totalorder %s16, 1
    %p34 = por %p32, %p33
    %p35 = scmp.ne.s32.totalorder %s24, %s25
    %p36 = scmp.eq.s32.totalorder %s16, 0
    %p37 = por %p35, %p36
    %p38 = scmp.ne.s32.totalorder %s24, %s25
    %p39 = scmp.eq.s32.totalorder %s17, 1
    %p40 = por %p38, %p39
    %p42 = scmp.ne.s32.totalorder %s25, %s41
    %p43 = scmp.eq.s32.totalorder %s17, 0
    %p44 = por %p42, %p43
    %s46 = sadd.s32 %s45, 1
    %p49 = scmp.eq.s32.totalorder %s11, 1
    %p50 = scmp.ne.s32.totalorder %s45, %s47
    %p51 = scmp.eq.s32.totalorder %s11, 0
    %p52 = por %p50, %p51
    %p53 = scmp.ne.s32.totalorder %s45, %s47
    %p54 = scmp.eq.s32.totalorder %s16, 1
    %p55 = por %p53, %p54
    %p56 = scmp.ne.s32.totalorder %s47, %s48
    %p57 = scmp.eq.s32.totalorder %s16, 0
    %p58 = por %p56, %p57
    %p59 = scmp.ne.s32.totalorder %s47, %s48
    %p60 = scmp.eq.s32.totalorder %s17, 1
    %p61 = por %p59, %p60
    %p63 = scmp.ne.s32.totalorder %s48, %s62
    %p64 = scmp.eq.s32.totalorder %s17, 0
    %p65 = por %p63, %p64
    %s67 = sadd.s32 %s66, 1
    %p70 = scmp.eq.s32.totalorder %s11, 1
    %p71 = scmp.ne.s32.totalorder %s66, %s68
    %p72 = scmp.eq.s32.totalorder %s11, 0
    %p73 = por %p71, %p72
    %p74 = scmp.ne.s32.totalorder %s66, %s68
    %p75 = scmp.eq.s32.totalorder %s16, 1
    %p76 = por %p74, %p75
    %p77 = scmp.ne.s32.totalorder %s68, %s69
    %p78 = scmp.eq.s32.totalorder %s16, 0
    %p79 = por %p77, %p78
    %p80 = scmp.ne.s32.totalorder %s68, %s69
    %p81 = scmp.eq.s32.totalorder %s17, 1
    %p82 = por %p80, %p81
    %p84 = scmp.ne.s32.totalorder %s69, %s83
    %p85 = scmp.eq.s32.totalorder %s17, 0
    %p86 = por %p84, %p85
    %s88 = sadd.s32 %s87, 1
    %p91 = scmp.eq.s32.totalorder %s11, 1
    %p92 = scmp.ne.s32.totalorder %s87, %s89
    %p93 = scmp.eq.s32.totalorder %s11, 0
    %p94 = por %p92, %p93
    %p95 = scmp.ne.s32.totalorder %s87, %s89
    %p96 = scmp.eq.s32.totalorder %s16, 1
    %p97 = por %p95, %p96
    %p98 = scmp.ne.s32.totalorder %s89, %s90
    %p99 = scmp.eq.s32.totalorder %s16, 0
    %p100 = por %p98, %p99
    %p101 = scmp.ne.s32.totalorder %s89, %s90
    %p102 = scmp.eq.s32.totalorder %s17, 1
    %p103 = por %p101, %p102
    %p105 = scmp.ne.s32.totalorder %s90, %s104
    %p106 = scmp.eq.s32.totalorder %s17, 0
    %p107 = por %p105, %p106
    %s109 = sadd.s32 %s108, 1
    %p112 = scmp.eq.s32.totalorder %s11, 1
    %p113 = scmp.ne.s32.totalorder %s108, %s110
    %p114 = scmp.eq.s32.totalorder %s11, 0
    %p115 = por %p113, %p114
    %p116 = scmp.ne.s32.totalorder %s108, %s110
    %p117 = scmp.eq.s32.totalorder %s16, 1
    %p118 = por %p116, %p117
    %p119 = scmp.ne.s32.totalorder %s110, %s111
    %p120 = scmp.eq.s32.totalorder %s16, 0
    %p121 = por %p119, %p120
    %p122 = scmp.ne.s32.totalorder %s110, %s111
    %p123 = scmp.eq.s32.totalorder %s17, 1
    %p124 = por %p122, %p123
    %p126 = scmp.ne.s32.totalorder %s111, %s125
    %p127 = scmp.eq.s32.totalorder %s17, 0
    %p128 = por %p126, %p127
    %s129 = ssub.s32 %s11, %s18
    %p130 = scmp.eq.s32.totalorder %s129, 0
    %s132 = sadd.s32 %s131, 1
    %s133 = scalar_select %p130, %s131, %s132
    %p136 = pneg %p130
    %p137 = scmp.eq.s32.totalorder %s11, 1
    %p138 = por %p136, %p137
    %p139 = scmp.ne.s32.totalorder %s131, %s134
    %p140 = scmp.eq.s32.totalorder %s11, 0
    %p141 = por %p139, %p140
    %p142 = scmp.ne.s32.totalorder %s131, %s134
    %p143 = scmp.eq.s32.totalorder %s16, 1
    %p144 = por %p142, %p143
    %p145 = scmp.ne.s32.totalorder %s134, %s135
    %p146 = scmp.eq.s32.totalorder %s16, 0
    %p147 = por %p145, %p146
    %p148 = scmp.ne.s32.totalorder %s134, %s135
    %p149 = scmp.eq.s32.totalorder %s17, 1
    %p150 = por %p148, %p149
    %p152 = scmp.ne.s32.totalorder %s135, %s151
    %p153 = scmp.eq.s32.totalorder %s17, 0
    %p154 = por %p152, %p153
    %p155 = scmp.le.s32.totalorder 1, %s11
    %p156 = scmp.lt.s32.totalorder %s11, 3
    %p157 = pnand %p155, %p156
    %p158 = pneg %p157
    // Predicated region
    $region9: #{densenet_forward.13} parent=5 // pred_check
      _
    $region10: #{densenet_forward.13} parent=5 // pred_check_branch
      %160 = sbr.rel (%p157) target = $region12
    $region11: #{densenet_forward.13} parent=5 // pred_region
      %s161 = ssub.s32 %s11, 1
      // Predicated region
      $region13: #{densenet_forward.13} parent=11 // pred_check
        %p162 = pneg %p58
      $region14: #{densenet_forward.13} parent=11 // pred_check_branch
        %164 = sbr.rel (%p162) target = $region16
      $region15: #{densenet_forward.13} parent=11 // pred_region
        _
      $region16: #{densenet_forward.13} parent=11 // pred_fallthru
        _
      // Predicated region
      $region17: #{densenet_forward.13} parent=11 // pred_check
        %p165 = pneg %p79
      $region18: #{densenet_forward.13} parent=11 // pred_check_branch
        %167 = sbr.rel (%p165) target = $region20
      $region19: #{densenet_forward.13} parent=11 // pred_region
        _
      $region20: #{densenet_forward.13} parent=11 // pred_fallthru
        _
      // Predicated region
      $region21: #{densenet_forward.13} parent=11 // pred_check
        %p168 = pneg %p100
      $region22: #{densenet_forward.13} parent=11 // pred_check_branch
        %170 = sbr.rel (%p168) target = $region24
      $region23: #{densenet_forward.13} parent=11 // pred_region
        _
      $region24: #{densenet_forward.13} parent=11 // pred_fallthru
        _
      // Predicated region
      $region25: #{densenet_forward.13} parent=11 // pred_check
        %p171 = pneg %p121
      $region26: #{densenet_forward.13} parent=11 // pred_check_branch
        %173 = sbr.rel (%p171) target = $region28
      $region27: #{densenet_forward.13} parent=11 // pred_region
        _
      $region28: #{densenet_forward.13} parent=11 // pred_fallthru
        _
    $region12: #{densenet_forward.13} parent=5 // pred_fallthru
      _
    %p174 = scmp.lt.s32.totalorder %s11, 2
    // Predicated region
    $region29: #{densenet_forward.13} parent=5 // pred_check
      %p175 = pneg %p174
    $region30: #{densenet_forward.13} parent=5 // pred_check_branch
      %177 = sbr.rel (%p175) target = $region32
    $region31: #{densenet_forward.13} parent=5 // pred_region
      // Predicated region
      $region33: #{densenet_forward.13} parent=31 // pred_check
        %p178 = pneg %p31
      $region34: #{densenet_forward.13} parent=31 // pred_check_branch
        %180 = sbr.rel (%p178) target = $region36
      $region35: #{densenet_forward.13} parent=31 // pred_region
        %p181 = scmp.lt.s32.totalorder %s11, 1
        %s182 = scalar_select %p181, %s11, 1
        %s183 = smul.addr %s182, 27
        %s184 = smul.addr %s183, 8
        %s185 = scalar_lea.vmem %s0, %s184
      $region36: #{densenet_forward.13} parent=31 // pred_fallthru
        _
    $region32: #{densenet_forward.13} parent=5 // pred_fallthru
      _
    %p186 = scmp.le.s32.totalorder 1, %s11
    %p187 = scmp.lt.s32.totalorder %s11, 3
    %p188 = pnand %p186, %p187
    %p189 = pneg %p188
    // Predicated region
    $region37: #{densenet_forward.13} parent=5 // pred_check
      _
    $region38: #{densenet_forward.13} parent=5 // pred_check_branch
      %191 = sbr.rel (%p188) target = $region40
    $region39: #{densenet_forward.13} parent=5 // pred_region
      %s192 = ssub.s32 %s11, 1
      %p193 = scmp.lt.s32.totalorder %s16, 1
      %s194 = scalar_select %p193, %s16, 1
      %s195 = smul.addr %s194, 27
      %s196 = smul.addr %s195, 8
      %s197 = scalar_lea.vmem %s0, %s196
      %p198 = pneg %p37
      %p199 = pneg %p34
      %p200 = pneg %p58
      %p201 = pneg %p55
      %p202 = pneg %p79
      %p203 = pneg %p76
      %p204 = pneg %p100
      %p205 = pneg %p97
      %p206 = pneg %p121
      %p207 = pneg %p118
      %p208 = pneg %p147
      %p209 = pneg %p144
      %p210 = scmp.lt.s32.totalorder %s16, 1
      %s211 = scalar_select %p210, %s16, 1
      %s212 = smul.addr %s211, 17
      %s213 = smul.addr %s212, 8
      %s214 = scalar_lea.vmem %s5, %s213
      %p215 = scmp.lt.s32.totalorder %s16, 1
      %s216 = scalar_select %p215, %s16, 1
      %s217 = smul.addr %s216, 27
      %s218 = smul.addr %s217, 8
      %s219 = scalar_lea.vmem %s0, %s218
      %p220 = scmp.lt.s32.totalorder %s16, 1
      %s221 = scalar_select %p220, %s16, 1
      %s222 = smul.addr %s221, 17
      %s223 = smul.addr %s222, 8
      %s224 = scalar_lea.vmem %s5, %s223
      %v226 = vld [vmem:[%s219] sm:$0xff]
      %v227 = vld [vmem:[%s219 + $0x8] sm:$0xff]
      %v228 = vld [vmem:[%s219 + $0x10] sm:$0xff]
      %v229 = vld [vmem:[%s219 + $0x18] sm:$0xff]
      %v230 = vld [vmem:[%s219 + $0x20] sm:$0xff]
      %v231 = vld [vmem:[%s219 + $0x28] sm:$0xff]
      %v232 = vld [vmem:[%s219 + $0x30] sm:$0xff]
      %v233 = vld [vmem:[%s219 + $0x38] sm:$0xff]
      %v234 = vld [vmem:[%s219 + $0x40] sm:$0xff]
      %v235 = vld [vmem:[%s219 + $0x48] sm:$0xff]
      %v236 = vld [vmem:[%s219 + $0x50] sm:$0xff]
      %v237 = vld [vmem:[%s219 + $0x58] sm:$0xff]
      %v238 = vld [vmem:[%s219 + $0x60] sm:$0xff]
      %v239 = vld [vmem:[%s219 + $0x68] sm:$0xff]
      %v240 = vld [vmem:[%s219 + $0x70] sm:$0xff]
      %v241 = vld [vmem:[%s219 + $0x78] sm:$0xff]
      %v242 = vld [vmem:[%s219 + $0x80] sm:$0xff]
      %v243 = vld [vmem:[%s219 + $0x88] sm:$0xff]
      %v244 = vld [vmem:[%s219 + $0x90] sm:$0xff]
      %v245 = vld [vmem:[%s219 + $0x98] sm:$0xff]
      %v246 = vld [vmem:[%s219 + $0xa0] sm:$0xff]
      %v247 = vld [vmem:[%s219 + $0xa8] sm:$0xff]
      %v248 = vld [vmem:[%s219 + $0xb0] sm:$0xff]
      %v249 = vld [vmem:[%s219 + $0xb8] sm:$0xff]
      %v250 = vld [vmem:[%s219 + $0xc0] sm:$0xff]
      %v251 = vld [vmem:[%s219 + $0xc8] sm:$0xff]
      %v252 = vld [vmem:[%s219 + $0xd0] sm:$0xff]
      %v253 = vld [vmem:[%s1] sm:$0x1]
      %v255 = vperm.slane %v253, 0
      %v257 = vmul.f32 %v226, %v255
      %v258 = vmul.f32 %v227, %v255
      %v259 = vmul.f32 %v228, %v255
      %v260 = vmul.f32 %v229, %v255
      %v261 = vmul.f32 %v230, %v255
      %v262 = vmul.f32 %v231, %v255
      %v263 = vmul.f32 %v232, %v255
      %v264 = vmul.f32 %v233, %v255
      %v265 = vmul.f32 %v234, %v255
      %v266 = vmul.f32 %v235, %v255
      %v267 = vmul.f32 %v236, %v255
      %v268 = vmul.f32 %v237, %v255
      %v269 = vmul.f32 %v238, %v255
      %v270 = vmul.f32 %v239, %v255
      %v271 = vmul.f32 %v240, %v255
      %v272 = vmul.f32 %v241, %v255
      %v273 = vmul.f32 %v242, %v255
      %v274 = vmul.f32 %v243, %v255
      %v275 = vmul.f32 %v244, %v255
      %v276 = vmul.f32 %v245, %v255
      %v277 = vmul.f32 %v246, %v255
      %v278 = vmul.f32 %v247, %v255
      %v279 = vmul.f32 %v248, %v255
      %v280 = vmul.f32 %v249, %v255
      %v281 = vmul.f32 %v250, %v255
      %v282 = vmul.f32 %v251, %v255
      %v283 = vmul.f32 %v252, %v255
      %v284 = vld [vmem:[%s2] sm:$0x1]
      %v286 = vperm.slane %v284, 0
      %v288 = vadd.f32 %v257, %v286
      %v289 = vadd.f32 %v258, %v286
      %v290 = vadd.f32 %v259, %v286
      %v291 = vadd.f32 %v260, %v286
      %v292 = vadd.f32 %v261, %v286
      %v293 = vadd.f32 %v262, %v286
      %v294 = vadd.f32 %v263, %v286
      %v295 = vadd.f32 %v264, %v286
      %v296 = vadd.f32 %v265, %v286
      %v297 = vadd.f32 %v266, %v286
      %v298 = vadd.f32 %v267, %v286
      %v299 = vadd.f32 %v268, %v286
      %v300 = vadd.f32 %v269, %v286
      %v301 = vadd.f32 %v270, %v286
      %v302 = vadd.f32 %v271, %v286
      %v303 = vadd.f32 %v272, %v286
      %v304 = vadd.f32 %v273, %v286
      %v305 = vadd.f32 %v274, %v286
      %v306 = vadd.f32 %v275, %v286
      %v307 = vadd.f32 %v276, %v286
      %v308 = vadd.f32 %v277, %v286
      %v309 = vadd.f32 %v278, %v286
      %v310 = vadd.f32 %v279, %v286
      %v311 = vadd.f32 %v280, %v286
      %v312 = vadd.f32 %v281, %v286
      %v313 = vadd.f32 %v282, %v286
      %v314 = vadd.f32 %v283, %v286
      %v315 = vmax.f32 %v288, 0.0
      %v316 = vmax.f32 %v289, 0.0
      %v317 = vmax.f32 %v290, 0.0
      %v318 = vmax.f32 %v291, 0.0
      %v319 = vmax.f32 %v292, 0.0
      %v320 = vmax.f32 %v293, 0.0
      %v321 = vmax.f32 %v294, 0.0
      %v322 = vmax.f32 %v295, 0.0
      %v323 = vmax.f32 %v296, 0.0
      %v324 = vmax.f32 %v297, 0.0
      %v325 = vmax.f32 %v298, 0.0
      %v326 = vmax.f32 %v299, 0.0
      %v327 = vmax.f32 %v300, 0.0
      %v328 = vmax.f32 %v301, 0.0
      %v329 = vmax.f32 %v302, 0.0
      %v330 = vmax.f32 %v303, 0.0
      %v331 = vmax.f32 %v304, 0.0
      %v332 = vmax.f32 %v305, 0.0
      %v333 = vmax.f32 %v306, 0.0
      %v334 = vmax.f32 %v307, 0.0
      %v335 = vmax.f32 %v308, 0.0
      %v336 = vmax.f32 %v309, 0.0
      %v337 = vmax.f32 %v310, 0.0
      %v338 = vmax.f32 %v311, 0.0
      %v339 = vmax.f32 %v312, 0.0
      %v340 = vmax.f32 %v313, 0.0
      %v341 = vmax.f32 %v314, 0.0
      %v342 = vld [vmem:[%s3] sm:$0xff]
      %v343 = vld [vmem:[%s3 + $0x8] sm:$0xff]
      %v344 = vld [vmem:[%s3 + $0x10] sm:$0xff]
      %v345 = vld [vmem:[%s3 + $0x18] sm:$0xff]
      %v346 = vld [vmem:[%s3 + $0x20] sm:$0xff]
      %v347 = vld [vmem:[%s3 + $0x28] sm:$0xff]
      %v348 = vld [vmem:[%s3 + $0x30] sm:$0xff]
      %v349 = vld [vmem:[%s3 + $0x38] sm:$0xff]
      %v350 = vld [vmem:[%s3 + $0x40] sm:$0xff]
      %v351 = vld [vmem:[%s3 + $0x48] sm:$0xff]
      %v352 = vld [vmem:[%s3 + $0x50] sm:$0xff]
      %v353 = vld [vmem:[%s3 + $0x58] sm:$0xff]
      %v354 = vld [vmem:[%s3 + $0x60] sm:$0xff]
      %v355 = vld [vmem:[%s3 + $0x68] sm:$0xff]
      %v356 = vld [vmem:[%s3 + $0x70] sm:$0xff]
      %v357 = vld [vmem:[%s3 + $0x78] sm:$0xff]
      %v358 = vld [vmem:[%s3 + $0x80] sm:$0xff]
      %v359 = vld [vmem:[%s3 + $0x88] sm:$0xff]
      %v360 = vld [vmem:[%s3 + $0x90] sm:$0xff]
      %v361 = vld [vmem:[%s3 + $0x98] sm:$0xff]
      %v362 = vld [vmem:[%s3 + $0xa0] sm:$0xff]
      %v363 = vld [vmem:[%s3 + $0xa8] sm:$0xff]
      %v364 = vld [vmem:[%s3 + $0xb0] sm:$0xff]
      %v365 = vld [vmem:[%s3 + $0xb8] sm:$0xff]
      %v366 = vld [vmem:[%s3 + $0xc0] sm:$0xff]
      %v367 = vld [vmem:[%s3 + $0xc8] sm:$0xff]
      %v368 = vld [vmem:[%s3 + $0xd0] sm:$0xff]
      %370 = vset.pattern.permute.xlu0 0
      %371 = vperm.xlu0 %370, %v342
      %v372 = vpop.permute.xlu0 %371
      %375 = vset.pattern.permute.xlu0 0
      %376 = vperm.xlu0 %375, %v343
      %v377 = vpop.permute.xlu0 %376
      %380 = vset.pattern.permute.xlu0 0
      %381 = vperm.xlu0 %380, %v344
      %v382 = vpop.permute.xlu0 %381
      %385 = vset.pattern.permute.xlu0 0
      %386 = vperm.xlu0 %385, %v345
      %v387 = vpop.permute.xlu0 %386
      %390 = vset.pattern.permute.xlu0 0
      %391 = vperm.xlu0 %390, %v346
      %v392 = vpop.permute.xlu0 %391
      %395 = vset.pattern.permute.xlu0 0
      %396 = vperm.xlu0 %395, %v347
      %v397 = vpop.permute.xlu0 %396
      %400 = vset.pattern.permute.xlu0 0
      %401 = vperm.xlu0 %400, %v348
      %v402 = vpop.permute.xlu0 %401
      %405 = vset.pattern.permute.xlu0 0
      %406 = vperm.xlu0 %405, %v349
      %v407 = vpop.permute.xlu0 %406
      %410 = vset.pattern.permute.xlu0 0
      %411 = vperm.xlu0 %410, %v350
      %v412 = vpop.permute.xlu0 %411
      %415 = vset.pattern.permute.xlu0 0
      %416 = vperm.xlu0 %415, %v351
      %v417 = vpop.permute.xlu0 %416
      %420 = vset.pattern.permute.xlu0 0
      %421 = vperm.xlu0 %420, %v352
      %v422 = vpop.permute.xlu0 %421
      %425 = vset.pattern.permute.xlu0 0
      %426 = vperm.xlu0 %425, %v353
      %v427 = vpop.permute.xlu0 %426
      %430 = vset.pattern.permute.xlu0 0
      %431 = vperm.xlu0 %430, %v354
      %v432 = vpop.permute.xlu0 %431
      %435 = vset.pattern.permute.xlu0 0
      %436 = vperm.xlu0 %435, %v355
      %v437 = vpop.permute.xlu0 %436
      %440 = vset.pattern.permute.xlu0 0
      %441 = vperm.xlu0 %440, %v356
      %v442 = vpop.permute.xlu0 %441
      %445 = vset.pattern.permute.xlu0 0
      %446 = vperm.xlu0 %445, %v357
      %v447 = vpop.permute.xlu0 %446
      %450 = vset.pattern.permute.xlu0 0
      %451 = vperm.xlu0 %450, %v358
      %v452 = vpop.permute.xlu0 %451
      %455 = vset.pattern.permute.xlu0 0
      %456 = vperm.xlu0 %455, %v359
      %v457 = vpop.permute.xlu0 %456
      %460 = vset.pattern.permute.xlu0 0
      %461 = vperm.xlu0 %460, %v360
      %v462 = vpop.permute.xlu0 %461
      %465 = vset.pattern.permute.xlu0 0
      %466 = vperm.xlu0 %465, %v361
      %v467 = vpop.permute.xlu0 %466
      %470 = vset.pattern.permute.xlu0 0
      %471 = vperm.xlu0 %470, %v362
      %v472 = vpop.permute.xlu0 %471
      %475 = vset.pattern.permute.xlu0 0
      %476 = vperm.xlu0 %475, %v363
      %v477 = vpop.permute.xlu0 %476
      %480 = vset.pattern.permute.xlu0 0
      %481 = vperm.xlu0 %480, %v364
      %v482 = vpop.permute.xlu0 %481
      %485 = vset.pattern.permute.xlu0 0
      %486 = vperm.xlu0 %485, %v365
      %v487 = vpop.permute.xlu0 %486
      %490 = vset.pattern.permute.xlu0 0
      %491 = vperm.xlu0 %490, %v366
      %v492 = vpop.permute.xlu0 %491
      %495 = vset.pattern.permute.xlu0 0
      %496 = vperm.xlu0 %495, %v367
      %v497 = vpop.permute.xlu0 %496
      %500 = vset.pattern.permute.xlu0 0
      %501 = vperm.xlu0 %500, %v368
      %v502 = vpop.permute.xlu0 %501
      %v504 = vmul.f32 %v315, %v372
      %v505 = vmul.f32 %v316, %v377
      %v506 = vmul.f32 %v317, %v382
      %v507 = vmul.f32 %v318, %v387
      %v508 = vmul.f32 %v319, %v392
      %v509 = vmul.f32 %v320, %v397
      %v510 = vmul.f32 %v321, %v402
      %v511 = vmul.f32 %v322, %v407
      %v512 = vmul.f32 %v323, %v412
      %v513 = vmul.f32 %v324, %v417
      %v514 = vmul.f32 %v325, %v422
      %v515 = vmul.f32 %v326, %v427
      %v516 = vmul.f32 %v327, %v432
      %v517 = vmul.f32 %v328, %v437
      %v518 = vmul.f32 %v329, %v442
      %v519 = vmul.f32 %v330, %v447
      %v520 = vmul.f32 %v331, %v452
      %v521 = vmul.f32 %v332, %v457
      %v522 = vmul.f32 %v333, %v462
      %v523 = vmul.f32 %v334, %v467
      %v524 = vmul.f32 %v335, %v472
      %v525 = vmul.f32 %v336, %v477
      %v526 = vmul.f32 %v337, %v482
      %v527 = vmul.f32 %v338, %v487
      %v528 = vmul.f32 %v339, %v492
      %v529 = vmul.f32 %v340, %v497
      %v530 = vmul.f32 %v341, %v502
      %v531 = vpack.c.bf16 %v505, %v504
      %v532 = vpack.c.bf16 %v507, %v506
      %v533 = vpack.c.bf16 %v509, %v508
      %v534 = vpack.c.bf16 %v511, %v510
      %v535 = vpack.c.bf16 %v513, %v512
      %v536 = vpack.c.bf16 %v515, %v514
      %v537 = vpack.c.bf16 %v517, %v516
      %v538 = vpack.c.bf16 %v519, %v518
      %v539 = vpack.c.bf16 %v521, %v520
      %v540 = vpack.c.bf16 %v523, %v522
      %v541 = vpack.c.bf16 %v525, %v524
      %v542 = vpack.c.bf16 %v527, %v526
      %v543 = vpack.c.bf16 %v529, %v528
      %v544 = vpack.c.bf16 %v530, %v530
      %v545 = vld [vmem:[%s4] sm:$0xff]
      %v546 = vld [vmem:[%s4 + $0x8] sm:$0xff]
      %v549 = vunpack.c.l.b16 %v545
      %v550 = vunpack.c.h.b16 %v545
      %v551 = vunpack.c.l.b16 %v546
      %v552 = vunpack.c.h.b16 %v546
      %v553 = vpack.c.b16 %v551, %v549
      %v554 = vpack.c.b16 %v552, %v550
      %vm557 = vcmask 130048
      %v559 = vsel %vm557, %v531, 0
      %v562 = vsel %vm557, %v532, 0
      %v565 = vsel %vm557, %v533, 0
      %v568 = vsel %vm557, %v534, 0
      %v571 = vsel %vm557, %v535, 0
      %v574 = vsel %vm557, %v536, 0
      %v577 = vsel %vm557, %v537, 0
      %v580 = vsel %vm557, %v538, 0
      %v583 = vsel %vm557, %v539, 0
      %v586 = vsel %vm557, %v540, 0
      %v589 = vsel %vm557, %v541, 0
      %v592 = vsel %vm557, %v542, 0
      %v595 = vsel %vm557, %v543, 0
      %v598 = vsel %vm557, %v544, 0
      %600 = vmatpush.bf16.msra.mxu0 0
      %601 = vmatpush.bf16.msra.mxu0 0
      %602 = vmatpush.bf16.msra.mxu0 0
      %603 = vmatpush.bf16.msra.mxu0 0
      %604 = vmatpush.bf16.msra.mxu0 0
      %605 = vmatpush.bf16.msra.mxu0 0
      %606 = vmatpush.bf16.msra.mxu0 0
      %607 = vmatpush.bf16.msra.mxu0 %v553
      %608 = vmatmul.bf16.gmra.mxu0 %v559
      %v609 = vpop.f32.mrf.mxu0
      %v610 = vadd.f32 0.0, %v609
      %v611 = vpop.f32.mrf.mxu0
      %v612 = vadd.f32 0.0, %v611
      %613 = vmatmul.bf16.gmra.mxu0 %v562
      %v614 = vpop.f32.mrf.mxu0
      %v615 = vadd.f32 0.0, %v614
      %v616 = vpop.f32.mrf.mxu0
      %v617 = vadd.f32 0.0, %v616
      %618 = vmatmul.bf16.gmra.mxu0 %v565
      %v619 = vpop.f32.mrf.mxu0
      %v620 = vadd.f32 0.0, %v619
      %v621 = vpop.f32.mrf.mxu0
      %v622 = vadd.f32 0.0, %v621
      %623 = vmatmul.bf16.gmra.mxu0 %v568
      %v624 = vpop.f32.mrf.mxu0
      %v625 = vadd.f32 0.0, %v624
      %v626 = vpop.f32.mrf.mxu0
      %v627 = vadd.f32 0.0, %v626
      %628 = vmatmul.bf16.gmra.mxu0 %v571
      %v629 = vpop.f32.mrf.mxu0
      %v630 = vadd.f32 0.0, %v629
      %v631 = vpop.f32.mrf.mxu0
      %v632 = vadd.f32 0.0, %v631
      %633 = vmatmul.bf16.gmra.mxu0 %v574
      %v634 = vpop.f32.mrf.mxu0
      %v635 = vadd.f32 0.0, %v634
      %v636 = vpop.f32.mrf.mxu0
      %v637 = vadd.f32 0.0, %v636
      %638 = vmatmul.bf16.gmra.mxu0 %v577
      %v639 = vpop.f32.mrf.mxu0
      %v640 = vadd.f32 0.0, %v639
      %v641 = vpop.f32.mrf.mxu0
      %v642 = vadd.f32 0.0, %v641
      %643 = vmatmul.bf16.gmra.mxu0 %v580
      %v644 = vpop.f32.mrf.mxu0
      %v645 = vadd.f32 0.0, %v644
      %v646 = vpop.f32.mrf.mxu0
      %v647 = vadd.f32 0.0, %v646
      %648 = vmatmul.bf16.gmra.mxu0 %v583
      %v649 = vpop.f32.mrf.mxu0
      %v650 = vadd.f32 0.0, %v649
      %v651 = vpop.f32.mrf.mxu0
      %v652 = vadd.f32 0.0, %v651
      %653 = vmatmul.bf16.gmra.mxu0 %v586
      %v654 = vpop.f32.mrf.mxu0
      %v655 = vadd.f32 0.0, %v654
      %v656 = vpop.f32.mrf.mxu0
      %v657 = vadd.f32 0.0, %v656
      %658 = vmatmul.bf16.gmra.mxu0 %v589
      %v659 = vpop.f32.mrf.mxu0
      %v660 = vadd.f32 0.0, %v659
      %v661 = vpop.f32.mrf.mxu0
      %v662 = vadd.f32 0.0, %v661
      %663 = vmatmul.bf16.gmra.mxu0 %v592
      %v664 = vpop.f32.mrf.mxu0
      %v665 = vadd.f32 0.0, %v664
      %v666 = vpop.f32.mrf.mxu0
      %667 = vmatmul.bf16.gmra.mxu0 %v595
      %v668 = vpop.f32.mrf.mxu0
      %v669 = vpop.f32.mrf.mxu0
      %670 = vmatmul.bf16.gmra.mxu0 %v598
      %v671 = vpop.f32.mrf.mxu0
      %v672 = vpop.f32.mrf.mxu0
      %673 = vdwg.mxu0
      %674 = vmatpush.bf16.msra.mxu0 0
      %675 = vmatpush.bf16.msra.mxu0 0
      %676 = vmatpush.bf16.msra.mxu0 0
      %677 = vmatpush.bf16.msra.mxu0 0
      %678 = vmatpush.bf16.msra.mxu0 0
      %679 = vmatpush.bf16.msra.mxu0 0
      %680 = vmatpush.bf16.msra.mxu0 0
      %681 = vmatpush.bf16.msra.mxu0 %v554
      %682 = vmatmul.bf16.gmra.mxu0 %v559
      %v683 = vpop.f32.mrf.mxu0
      %v684 = vpop.f32.mrf.mxu0
      %685 = vmatmul.bf16.gmra.mxu0 %v562
      %v686 = vpop.f32.mrf.mxu0
      %v687 = vpop.f32.mrf.mxu0
      %688 = vmatmul.bf16.gmra.mxu0 %v565
      %v689 = vpop.f32.mrf.mxu0
      %v690 = vpop.f32.mrf.mxu0
      %691 = vmatmul.bf16.gmra.mxu0 %v568
      %v692 = vpop.f32.mrf.mxu0
      %v693 = vadd.f32 0.0, %v692
      %v694 = vpop.f32.mrf.mxu0
      %v695 = vadd.f32 0.0, %v694
      %696 = vmatmul.bf16.gmra.mxu0 %v571
      %v697 = vpop.f32.mrf.mxu0
      %v698 = vadd.f32 0.0, %v697
      %v699 = vpop.f32.mrf.mxu0
      %v700 = vadd.f32 0.0, %v699
      %701 = vmatmul.bf16.gmra.mxu0 %v574
      %v702 = vpop.f32.mrf.mxu0
      %v703 = vadd.f32 0.0, %v702
      %v704 = vpop.f32.mrf.mxu0
      %v705 = vadd.f32 0.0, %v704
      %706 = vmatmul.bf16.gmra.mxu0 %v577
      %v707 = vpop.f32.mrf.mxu0
      %v708 = vadd.f32 0.0, %v707
      %v709 = vpop.f32.mrf.mxu0
      %v710 = vadd.f32 0.0, %v709
      %711 = vmatmul.bf16.gmra.mxu0 %v580
      %v712 = vpop.f32.mrf.mxu0
      %v713 = vadd.f32 0.0, %v712
      %v714 = vpop.f32.mrf.mxu0
      %v715 = vadd.f32 0.0, %v714
      %716 = vmatmul.bf16.gmra.mxu0 %v583
      %v717 = vpop.f32.mrf.mxu0
      %v718 = vadd.f32 0.0, %v717
      %v719 = vpop.f32.mrf.mxu0
      %v720 = vadd.f32 0.0, %v719
      %721 = vmatmul.bf16.gmra.mxu0 %v586
      %v722 = vpop.f32.mrf.mxu0
      %v723 = vadd.f32 0.0, %v722
      %v724 = vpop.f32.mrf.mxu0
      %v725 = vadd.f32 0.0, %v724
      %726 = vmatmul.bf16.gmra.mxu0 %v589
      %v727 = vpop.f32.mrf.mxu0
      %v728 = vadd.f32 0.0, %v727
      %v729 = vpop.f32.mrf.mxu0
      %v730 = vadd.f32 0.0, %v729
      %731 = vmatmul.bf16.gmra.mxu0 %v592
      %v732 = vpop.f32.mrf.mxu0
      %v733 = vadd.f32 0.0, %v732
      %v734 = vpop.f32.mrf.mxu0
      %v735 = vadd.f32 0.0, %v734
      %736 = vmatmul.bf16.gmra.mxu0 %v595
      %v737 = vpop.f32.mrf.mxu0
      %v738 = vadd.f32 0.0, %v737
      %v739 = vpop.f32.mrf.mxu0
      %v740 = vadd.f32 0.0, %v739
      %741 = vmatmul.bf16.gmra.mxu0 %v598
      %v742 = vpop.f32.mrf.mxu0
      %v743 = vadd.f32 0.0, %v742
      %v744 = vpop.f32.mrf.mxu0
      %745 = vdwg.mxu0
      %vm763 = vcmask 1046528
      %v764 = vrot.slane %v610, 1
      %v765 = vrot.slane %v612, 1
      %v766 = vsel %vm763, %v764, %v765
      %v767 = vrot.slane %v615, 1
      %v768 = vsel %vm763, %v765, %v767
      %v769 = vrot.slane %v617, 1
      %v770 = vsel %vm763, %v767, %v769
      %v771 = vrot.slane %v620, 1
      %v772 = vsel %vm763, %v769, %v771
      %v773 = vrot.slane %v622, 1
      %v774 = vsel %vm763, %v771, %v773
      %v775 = vrot.slane %v625, 1
      %v776 = vsel %vm763, %v773, %v775
      %v777 = vrot.slane %v627, 1
      %v778 = vsel %vm763, %v775, %v777
      %v779 = vrot.slane %v630, 1
      %v780 = vsel %vm763, %v777, %v779
      %v781 = vrot.slane %v632, 1
      %v782 = vsel %vm763, %v779, %v781
      %v783 = vrot.slane %v635, 1
      %v784 = vsel %vm763, %v781, %v783
      %v785 = vrot.slane %v637, 1
      %v786 = vsel %vm763, %v783, %v785
      %v787 = vrot.slane %v640, 1
      %v788 = vsel %vm763, %v785, %v787
      %v789 = vrot.slane %v642, 1
      %v790 = vsel %vm763, %v787, %v789
      %v791 = vrot.slane %v645, 1
      %v792 = vsel %vm763, %v789, %v791
      %v793 = vrot.slane %v647, 1
      %v794 = vsel %vm763, %v791, %v793
      %v795 = vrot.slane %v650, 1
      %v796 = vsel %vm763, %v793, %v795
      %797 = vrot.lane.b32.xlu0 %v766, 120
      %v798 = vpop.permute.xlu0 %797
      %799 = vrot.lane.b32.xlu0 %v768, 120
      %v800 = vpop.permute.xlu0 %799
      %801 = vrot.lane.b32.xlu0 %v770, 120
      %v802 = vpop.permute.xlu0 %801
      %803 = vrot.lane.b32.xlu0 %v772, 120
      %v804 = vpop.permute.xlu0 %803
      %805 = vrot.lane.b32.xlu0 %v774, 120
      %v806 = vpop.permute.xlu0 %805
      %807 = vrot.lane.b32.xlu0 %v776, 120
      %v808 = vpop.permute.xlu0 %807
      %809 = vrot.lane.b32.xlu0 %v778, 120
      %v810 = vpop.permute.xlu0 %809
      %811 = vrot.lane.b32.xlu0 %v780, 120
      %v812 = vpop.permute.xlu0 %811
      %813 = vrot.lane.b32.xlu0 %v782, 120
      %v814 = vpop.permute.xlu0 %813
      %815 = vrot.lane.b32.xlu0 %v784, 120
      %v816 = vpop.permute.xlu0 %815
      %817 = vrot.lane.b32.xlu0 %v786, 120
      %v818 = vpop.permute.xlu0 %817
      %819 = vrot.lane.b32.xlu0 %v788, 120
      %v820 = vpop.permute.xlu0 %819
      %821 = vrot.lane.b32.xlu0 %v790, 120
      %v822 = vpop.permute.xlu0 %821
      %823 = vrot.lane.b32.xlu0 %v792, 120
      %v824 = vpop.permute.xlu0 %823
      %825 = vrot.lane.b32.xlu0 %v794, 120
      %v826 = vpop.permute.xlu0 %825
      %827 = vrot.lane.b32.xlu0 %v796, 120
      %v828 = vpop.permute.xlu0 %827
      %829 = vrot.lane.b32.xlu0 %v795, 120
      %v830 = vpop.permute.xlu0 %829
      %v848 = vadd.f32 %v610, %v798
      %v849 = vadd.f32 %v612, %v800
      %v850 = vadd.f32 %v615, %v802
      %v851 = vadd.f32 %v617, %v804
      %v852 = vadd.f32 %v620, %v806
      %v853 = vadd.f32 %v622, %v808
      %v854 = vadd.f32 %v625, %v810
      %v855 = vadd.f32 %v627, %v812
      %v856 = vadd.f32 %v630, %v814
      %v857 = vadd.f32 %v632, %v816
      %v858 = vadd.f32 %v635, %v818
      %v859 = vadd.f32 %v637, %v820
      %v860 = vadd.f32 %v640, %v822
      %v861 = vadd.f32 %v642, %v824
      %v862 = vadd.f32 %v645, %v826
      %v863 = vadd.f32 %v647, %v828
      %v864 = vadd.f32 %v650, %v830
      %vm865 = vcmask 1045504
      %v866 = vrot.slane %v610, 2
      %v867 = vrot.slane %v612, 2
      %v868 = vsel %vm865, %v866, %v867
      %v869 = vrot.slane %v615, 2
      %v870 = vsel %vm865, %v867, %v869
      %v871 = vrot.slane %v617, 2
      %v872 = vsel %vm865, %v869, %v871
      %v873 = vrot.slane %v620, 2
      %v874 = vsel %vm865, %v871, %v873
      %v875 = vrot.slane %v622, 2
      %v876 = vsel %vm865, %v873, %v875
      %v877 = vrot.slane %v625, 2
      %v878 = vsel %vm865, %v875, %v877
      %v879 = vrot.slane %v627, 2
      %v880 = vsel %vm865, %v877, %v879
      %v881 = vrot.slane %v630, 2
      %v882 = vsel %vm865, %v879, %v881
      %v883 = vrot.slane %v632, 2
      %v884 = vsel %vm865, %v881, %v883
      %v885 = vrot.slane %v635, 2
      %v886 = vsel %vm865, %v883, %v885
      %v887 = vrot.slane %v637, 2
      %v888 = vsel %vm865, %v885, %v887
      %v889 = vrot.slane %v640, 2
      %v890 = vsel %vm865, %v887, %v889
      %v891 = vrot.slane %v642, 2
      %v892 = vsel %vm865, %v889, %v891
      %v893 = vrot.slane %v645, 2
      %v894 = vsel %vm865, %v891, %v893
      %v895 = vrot.slane %v647, 2
      %v896 = vsel %vm865, %v893, %v895
      %v897 = vrot.slane %v650, 2
      %v898 = vsel %vm865, %v895, %v897
      %899 = vrot.lane.b32.xlu0 %v868, 112
      %v900 = vpop.permute.xlu0 %899
      %901 = vrot.lane.b32.xlu0 %v870, 112
      %v902 = vpop.permute.xlu0 %901
      %903 = vrot.lane.b32.xlu0 %v872, 112
      %v904 = vpop.permute.xlu0 %903
      %905 = vrot.lane.b32.xlu0 %v874, 112
      %v906 = vpop.permute.xlu0 %905
      %907 = vrot.lane.b32.xlu0 %v876, 112
      %v908 = vpop.permute.xlu0 %907
      %909 = vrot.lane.b32.xlu0 %v878, 112
      %v910 = vpop.permute.xlu0 %909
      %911 = vrot.lane.b32.xlu0 %v880, 112
      %v912 = vpop.permute.xlu0 %911
      %913 = vrot.lane.b32.xlu0 %v882, 112
      %v914 = vpop.permute.xlu0 %913
      %915 = vrot.lane.b32.xlu0 %v884, 112
      %v916 = vpop.permute.xlu0 %915
      %917 = vrot.lane.b32.xlu0 %v886, 112
      %v918 = vpop.permute.xlu0 %917
      %919 = vrot.lane.b32.xlu0 %v888, 112
      %v920 = vpop.permute.xlu0 %919
      %921 = vrot.lane.b32.xlu0 %v890, 112
      %v922 = vpop.permute.xlu0 %921
      %923 = vrot.lane.b32.xlu0 %v892, 112
      %v924 = vpop.permute.xlu0 %923
      %925 = vrot.lane.b32.xlu0 %v894, 112
      %v926 = vpop.permute.xlu0 %925
      %927 = vrot.lane.b32.xlu0 %v896, 112
      %v928 = vpop.permute.xlu0 %927
      %929 = vrot.lane.b32.xlu0 %v898, 112
      %v930 = vpop.permute.xlu0 %929
      %931 = vrot.lane.b32.xlu0 %v897, 112
      %v932 = vpop.permute.xlu0 %931
      %v950 = vadd.f32 %v848, %v900
      %v951 = vadd.f32 %v849, %v902
      %v952 = vadd.f32 %v850, %v904
      %v953 = vadd.f32 %v851, %v906
      %v954 = vadd.f32 %v852, %v908
      %v955 = vadd.f32 %v853, %v910
      %v956 = vadd.f32 %v854, %v912
      %v957 = vadd.f32 %v855, %v914
      %v958 = vadd.f32 %v856, %v916
      %v959 = vadd.f32 %v857, %v918
      %v960 = vadd.f32 %v858, %v920
      %v961 = vadd.f32 %v859, %v922
      %v962 = vadd.f32 %v860, %v924
      %v963 = vadd.f32 %v861, %v926
      %v964 = vadd.f32 %v862, %v928
      %v965 = vadd.f32 %v863, %v930
      %v966 = vadd.f32 %v864, %v932
      %vm967 = vcmask 1041408
      %v968 = vrot.slane %v610, 6
      %v969 = vrot.slane %v612, 6
      %v970 = vsel %vm967, %v968, %v969
      %v971 = vrot.slane %v615, 6
      %v972 = vsel %vm967, %v969, %v971
      %v973 = vrot.slane %v617, 6
      %v974 = vsel %vm967, %v971, %v973
      %v975 = vrot.slane %v620, 6
      %v976 = vsel %vm967, %v973, %v975
      %v977 = vrot.slane %v622, 6
      %v978 = vsel %vm967, %v975, %v977
      %v979 = vrot.slane %v625, 6
      %v980 = vsel %vm967, %v977, %v979
      %v981 = vrot.slane %v627, 6
      %v982 = vsel %vm967, %v979, %v981
      %v983 = vrot.slane %v630, 6
      %v984 = vsel %vm967, %v981, %v983
      %v985 = vrot.slane %v632, 6
      %v986 = vsel %vm967, %v983, %v985
      %v987 = vrot.slane %v635, 6
      %v988 = vsel %vm967, %v985, %v987
      %v989 = vrot.slane %v637, 6
      %v990 = vsel %vm967, %v987, %v989
      %v991 = vrot.slane %v640, 6
      %v992 = vsel %vm967, %v989, %v991
      %v993 = vrot.slane %v642, 6
      %v994 = vsel %vm967, %v991, %v993
      %v995 = vrot.slane %v645, 6
      %v996 = vsel %vm967, %v993, %v995
      %v997 = vrot.slane %v647, 6
      %v998 = vsel %vm967, %v995, %v997
      %v999 = vrot.slane %v650, 6
      %v1000 = vsel %vm967, %v997, %v999
      %1001 = vrot.lane.b32.xlu0 %v970, 104
      %v1002 = vpop.permute.xlu0 %1001
      %1003 = vrot.lane.b32.xlu0 %v972, 104
      %v1004 = vpop.permute.xlu0 %1003
      %1005 = vrot.lane.b32.xlu0 %v974, 104
      %v1006 = vpop.permute.xlu0 %1005
      %1007 = vrot.lane.b32.xlu0 %v976, 104
      %v1008 = vpop.permute.xlu0 %1007
      %1009 = vrot.lane.b32.xlu0 %v978, 104
      %v1010 = vpop.permute.xlu0 %1009
      %1011 = vrot.lane.b32.xlu0 %v980, 104
      %v1012 = vpop.permute.xlu0 %1011
      %1013 = vrot.lane.b32.xlu0 %v982, 104
      %v1014 = vpop.permute.xlu0 %1013
      %1015 = vrot.lane.b32.xlu0 %v984, 104
      %v1016 = vpop.permute.xlu0 %1015
      %1017 = vrot.lane.b32.xlu0 %v986, 104
      %v1018 = vpop.permute.xlu0 %1017
      %1019 = vrot.lane.b32.xlu0 %v988, 104
      %v1020 = vpop.permute.xlu0 %1019
      %1021 = vrot.lane.b32.xlu0 %v990, 104
      %v1022 = vpop.permute.xlu0 %1021
      %1023 = vrot.lane.b32.xlu0 %v992, 104
      %v1024 = vpop.permute.xlu0 %1023
      %1025 = vrot.lane.b32.xlu0 %v994, 104
      %v1026 = vpop.permute.xlu0 %1025
      %1027 = vrot.lane.b32.xlu0 %v996, 104
      %v1028 = vpop.permute.xlu0 %1027
      %1029 = vrot.lane.b32.xlu0 %v998, 104
      %v1030 = vpop.permute.xlu0 %1029
      %1031 = vrot.lane.b32.xlu0 %v1000, 104
      %v1032 = vpop.permute.xlu0 %1031
      %1033 = vrot.lane.b32.xlu0 %v999, 104
      %v1034 = vpop.permute.xlu0 %1033
      %v1052 = vadd.f32 %v950, %v1002
      %v1053 = vadd.f32 %v951, %v1004
      %v1054 = vadd.f32 %v952, %v1006
      %v1055 = vadd.f32 %v953, %v1008
      %v1056 = vadd.f32 %v954, %v1010
      %v1057 = vadd.f32 %v955, %v1012
      %v1058 = vadd.f32 %v956, %v1014
      %v1059 = vadd.f32 %v957, %v1016
      %v1060 = vadd.f32 %v958, %v1018
      %v1061 = vadd.f32 %v959, %v1020
      %v1062 = vadd.f32 %v960, %v1022
      %v1063 = vadd.f32 %v961, %v1024
      %v1064 = vadd.f32 %v962, %v1026
      %v1065 = vadd.f32 %v963, %v1028
      %v1066 = vadd.f32 %v964, %v1030
      %v1067 = vadd.f32 %v965, %v1032
      %v1068 = vadd.f32 %v966, %v1034
      %vm1070 = vcmask 1040384
      %v1071 = vrot.slane %v610, 7
      %v1072 = vrot.slane %v612, 7
      %v1073 = vsel %vm1070, %v1071, %v1072
      %v1074 = vrot.slane %v615, 7
      %v1075 = vsel %vm1070, %v1072, %v1074
      %v1076 = vrot.slane %v617, 7
      %v1077 = vsel %vm1070, %v1074, %v1076
      %v1078 = vrot.slane %v620, 7
      %v1079 = vsel %vm1070, %v1076, %v1078
      %v1080 = vrot.slane %v622, 7
      %v1081 = vsel %vm1070, %v1078, %v1080
      %v1082 = vrot.slane %v625, 7
      %v1083 = vsel %vm1070, %v1080, %v1082
      %v1084 = vrot.slane %v627, 7
      %v1085 = vsel %vm1070, %v1082, %v1084
      %v1086 = vrot.slane %v630, 7
      %v1087 = vsel %vm1070, %v1084, %v1086
      %v1088 = vrot.slane %v632, 7
      %v1089 = vsel %vm1070, %v1086, %v1088
      %v1090 = vrot.slane %v635, 7
      %v1091 = vsel %vm1070, %v1088, %v1090
      %v1092 = vrot.slane %v637, 7
      %v1093 = vsel %vm1070, %v1090, %v1092
      %v1094 = vrot.slane %v640, 7
      %v1095 = vsel %vm1070, %v1092, %v1094
      %v1096 = vrot.slane %v642, 7
      %v1097 = vsel %vm1070, %v1094, %v1096
      %v1098 = vrot.slane %v645, 7
      %v1099 = vsel %vm1070, %v1096, %v1098
      %v1100 = vrot.slane %v647, 7
      %v1101 = vsel %vm1070, %v1098, %v1100
      %v1102 = vrot.slane %v650, 7
      %v1103 = vsel %vm1070, %v1100, %v1102
      %v1104 = vrot.slane %v652, 7
      %v1105 = vsel %vm1070, %v1102, %v1104
      %1106 = vrot.lane.b32.xlu0 %v1073, 96
      %v1107 = vpop.permute.xlu0 %1106
      %1108 = vrot.lane.b32.xlu0 %v1075, 96
      %v1109 = vpop.permute.xlu0 %1108
      %1110 = vrot.lane.b32.xlu0 %v1077, 96
      %v1111 = vpop.permute.xlu0 %1110
      %1112 = vrot.lane.b32.xlu0 %v1079, 96
      %v1113 = vpop.permute.xlu0 %1112
      %1114 = vrot.lane.b32.xlu0 %v1081, 96
      %v1115 = vpop.permute.xlu0 %1114
      %1116 = vrot.lane.b32.xlu0 %v1083, 96
      %v1117 = vpop.permute.xlu0 %1116
      %1118 = vrot.lane.b32.xlu0 %v1085, 96
      %v1119 = vpop.permute.xlu0 %1118
      %1120 = vrot.lane.b32.xlu0 %v1087, 96
      %v1121 = vpop.permute.xlu0 %1120
      %1122 = vrot.lane.b32.xlu0 %v1089, 96
      %v1123 = vpop.permute.xlu0 %1122
      %1124 = vrot.lane.b32.xlu0 %v1091, 96
      %v1125 = vpop.permute.xlu0 %1124
      %1126 = vrot.lane.b32.xlu0 %v1093, 96
      %v1127 = vpop.permute.xlu0 %1126
      %1128 = vrot.lane.b32.xlu0 %v1095, 96
      %v1129 = vpop.permute.xlu0 %1128
      %1130 = vrot.lane.b32.xlu0 %v1097, 96
      %v1131 = vpop.permute.xlu0 %1130
      %1132 = vrot.lane.b32.xlu0 %v1099, 96
      %v1133 = vpop.permute.xlu0 %1132
      %1134 = vrot.lane.b32.xlu0 %v1101, 96
      %v1135 = vpop.permute.xlu0 %1134
      %1136 = vrot.lane.b32.xlu0 %v1103, 96
      %v1137 = vpop.permute.xlu0 %1136
      %1138 = vrot.lane.b32.xlu0 %v1105, 96
      %v1139 = vpop.permute.xlu0 %1138
      %v1157 = vadd.f32 %v1052, %v1107
      %v1158 = vadd.f32 %v1053, %v1109
      %v1159 = vadd.f32 %v1054, %v1111
      %v1160 = vadd.f32 %v1055, %v1113
      %v1161 = vadd.f32 %v1056, %v1115
      %v1162 = vadd.f32 %v1057, %v1117
      %v1163 = vadd.f32 %v1058, %v1119
      %v1164 = vadd.f32 %v1059, %v1121
      %v1165 = vadd.f32 %v1060, %v1123
      %v1166 = vadd.f32 %v1061, %v1125
      %v1167 = vadd.f32 %v1062, %v1127
      %v1168 = vadd.f32 %v1063, %v1129
      %v1169 = vadd.f32 %v1064, %v1131
      %v1170 = vadd.f32 %v1065, %v1133
      %v1171 = vadd.f32 %v1066, %v1135
      %v1172 = vadd.f32 %v1067, %v1137
      %v1173 = vadd.f32 %v1068, %v1139
      %1174 = vrot.lane.b32.xlu0 %v612, 88
      %v1175 = vpop.permute.xlu0 %1174
      %1176 = vrot.lane.b32.xlu0 %v615, 88
      %v1177 = vpop.permute.xlu0 %1176
      %1178 = vrot.lane.b32.xlu0 %v617, 88
      %v1179 = vpop.permute.xlu0 %1178
      %1180 = vrot.lane.b32.xlu0 %v620, 88
      %v1181 = vpop.permute.xlu0 %1180
      %1182 = vrot.lane.b32.xlu0 %v622, 88
      %v1183 = vpop.permute.xlu0 %1182
      %1184 = vrot.lane.b32.xlu0 %v625, 88
      %v1185 = vpop.permute.xlu0 %1184
      %1186 = vrot.lane.b32.xlu0 %v627, 88
      %v1187 = vpop.permute.xlu0 %1186
      %1188 = vrot.lane.b32.xlu0 %v630, 88
      %v1189 = vpop.permute.xlu0 %1188
      %1190 = vrot.lane.b32.xlu0 %v632, 88
      %v1191 = vpop.permute.xlu0 %1190
      %1192 = vrot.lane.b32.xlu0 %v635, 88
      %v1193 = vpop.permute.xlu0 %1192
      %1194 = vrot.lane.b32.xlu0 %v637, 88
      %v1195 = vpop.permute.xlu0 %1194
      %1196 = vrot.lane.b32.xlu0 %v640, 88
      %v1197 = vpop.permute.xlu0 %1196
      %1198 = vrot.lane.b32.xlu0 %v642, 88
      %v1199 = vpop.permute.xlu0 %1198
      %1200 = vrot.lane.b32.xlu0 %v645, 88
      %v1201 = vpop.permute.xlu0 %1200
      %1202 = vrot.lane.b32.xlu0 %v647, 88
      %v1203 = vpop.permute.xlu0 %1202
      %1204 = vrot.lane.b32.xlu0 %v650, 88
      %v1205 = vpop.permute.xlu0 %1204
      %1206 = vrot.lane.b32.xlu0 %v652, 88
      %v1207 = vpop.permute.xlu0 %1206
      %v1225 = vadd.f32 %v1157, %v1175
      %v1226 = vadd.f32 %v1158, %v1177
      %v1227 = vadd.f32 %v1159, %v1179
      %v1228 = vadd.f32 %v1160, %v1181
      %v1229 = vadd.f32 %v1161, %v1183
      %v1230 = vadd.f32 %v1162, %v1185
      %v1231 = vadd.f32 %v1163, %v1187
      %v1232 = vadd.f32 %v1164, %v1189
      %v1233 = vadd.f32 %v1165, %v1191
      %v1234 = vadd.f32 %v1166, %v1193
      %v1235 = vadd.f32 %v1167, %v1195
      %v1236 = vadd.f32 %v1168, %v1197
      %v1237 = vadd.f32 %v1169, %v1199
      %v1238 = vadd.f32 %v1170, %v1201
      %v1239 = vadd.f32 %v1171, %v1203
      %v1240 = vadd.f32 %v1172, %v1205
      %v1241 = vadd.f32 %v1173, %v1207
      %vm1242 = vcmask 1043456
      %v1243 = vrot.slane %v612, 4
      %v1244 = vrot.slane %v615, 4
      %v1245 = vsel %vm1242, %v1243, %v1244
      %v1246 = vrot.slane %v617, 4
      %v1247 = vsel %vm1242, %v1244, %v1246
      %v1248 = vrot.slane %v620, 4
      %v1249 = vsel %vm1242, %v1246, %v1248
      %v1250 = vrot.slane %v622, 4
      %v1251 = vsel %vm1242, %v1248, %v1250
      %v1252 = vrot.slane %v625, 4
      %v1253 = vsel %vm1242, %v1250, %v1252
      %v1254 = vrot.slane %v627, 4
      %v1255 = vsel %vm1242, %v1252, %v1254
      %v1256 = vrot.slane %v630, 4
      %v1257 = vsel %vm1242, %v1254, %v1256
      %v1258 = vrot.slane %v632, 4
      %v1259 = vsel %vm1242, %v1256, %v1258
      %v1260 = vrot.slane %v635, 4
      %v1261 = vsel %vm1242, %v1258, %v1260
      %v1262 = vrot.slane %v637, 4
      %v1263 = vsel %vm1242, %v1260, %v1262
      %v1264 = vrot.slane %v640, 4
      %v1265 = vsel %vm1242, %v1262, %v1264
      %v1266 = vrot.slane %v642, 4
      %v1267 = vsel %vm1242, %v1264, %v1266
      %v1268 = vrot.slane %v645, 4
      %v1269 = vsel %vm1242, %v1266, %v1268
      %v1270 = vrot.slane %v647, 4
      %v1271 = vsel %vm1242, %v1268, %v1270
      %v1272 = vrot.slane %v650, 4
      %v1273 = vsel %vm1242, %v1270, %v1272
      %v1274 = vrot.slane %v652, 4
      %v1275 = vsel %vm1242, %v1272, %v1274
      %1276 = vrot.lane.b32.xlu0 %v1245, 80
      %v1277 = vpop.permute.xlu0 %1276
      %1278 = vrot.lane.b32.xlu0 %v1247, 80
      %v1279 = vpop.permute.xlu0 %1278
      %1280 = vrot.lane.b32.xlu0 %v1249, 80
      %v1281 = vpop.permute.xlu0 %1280
      %1282 = vrot.lane.b32.xlu0 %v1251, 80
      %v1283 = vpop.permute.xlu0 %1282
      %1284 = vrot.lane.b32.xlu0 %v1253, 80
      %v1285 = vpop.permute.xlu0 %1284
      %1286 = vrot.lane.b32.xlu0 %v1255, 80
      %v1287 = vpop.permute.xlu0 %1286
      %1288 = vrot.lane.b32.xlu0 %v1257, 80
      %v1289 = vpop.permute.xlu0 %1288
      %1290 = vrot.lane.b32.xlu0 %v1259, 80
      %v1291 = vpop.permute.xlu0 %1290
      %1292 = vrot.lane.b32.xlu0 %v1261, 80
      %v1293 = vpop.permute.xlu0 %1292
      %1294 = vrot.lane.b32.xlu0 %v1263, 80
      %v1295 = vpop.permute.xlu0 %1294
      %1296 = vrot.lane.b32.xlu0 %v1265, 80
      %v1297 = vpop.permute.xlu0 %1296
      %1298 = vrot.lane.b32.xlu0 %v1267, 80
      %v1299 = vpop.permute.xlu0 %1298
      %1300 = vrot.lane.b32.xlu0 %v1269, 80
      %v1301 = vpop.permute.xlu0 %1300
      %1302 = vrot.lane.b32.xlu0 %v1271, 80
      %v1303 = vpop.permute.xlu0 %1302
      %1304 = vrot.lane.b32.xlu0 %v1273, 80
      %v1305 = vpop.permute.xlu0 %1304
      %1306 = vrot.lane.b32.xlu0 %v1275, 80
      %v1307 = vpop.permute.xlu0 %1306
      %1308 = vrot.lane.b32.xlu0 %v1274, 80
      %v1309 = vpop.permute.xlu0 %1308
      %v1327 = vadd.f32 %v1225, %v1277
      %v1328 = vadd.f32 %v1226, %v1279
      %v1329 = vadd.f32 %v1227, %v1281
      %v1330 = vadd.f32 %v1228, %v1283
      %v1331 = vadd.f32 %v1229, %v1285
      %v1332 = vadd.f32 %v1230, %v1287
      %v1333 = vadd.f32 %v1231, %v1289
      %v1334 = vadd.f32 %v1232, %v1291
      %v1335 = vadd.f32 %v1233, %v1293
      %v1336 = vadd.f32 %v1234, %v1295
      %v1337 = vadd.f32 %v1235, %v1297
      %v1338 = vadd.f32 %v1236, %v1299
      %v1339 = vadd.f32 %v1237, %v1301
      %v1340 = vadd.f32 %v1238, %v1303
      %v1341 = vadd.f32 %v1239, %v1305
      %v1342 = vadd.f32 %v1240, %v1307
      %v1343 = vadd.f32 %v1241, %v1309
      %vm1344 = vcmask 1042432
      %v1345 = vrot.slane %v612, 5
      %v1346 = vrot.slane %v615, 5
      %v1347 = vsel %vm1344, %v1345, %v1346
      %v1348 = vrot.slane %v617, 5
      %v1349 = vsel %vm1344, %v1346, %v1348
      %v1350 = vrot.slane %v620, 5
      %v1351 = vsel %vm1344, %v1348, %v1350
      %v1352 = vrot.slane %v622, 5
      %v1353 = vsel %vm1344, %v1350, %v1352
      %v1354 = vrot.slane %v625, 5
      %v1355 = vsel %vm1344, %v1352, %v1354
      %v1356 = vrot.slane %v627, 5
      %v1357 = vsel %vm1344, %v1354, %v1356
      %v1358 = vrot.slane %v630, 5
      %v1359 = vsel %vm1344, %v1356, %v1358
      %v1360 = vrot.slane %v632, 5
      %v1361 = vsel %vm1344, %v1358, %v1360
      %v1362 = vrot.slane %v635, 5
      %v1363 = vsel %vm1344, %v1360, %v1362
      %v1364 = vrot.slane %v637, 5
      %v1365 = vsel %vm1344, %v1362, %v1364
      %v1366 = vrot.slane %v640, 5
      %v1367 = vsel %vm1344, %v1364, %v1366
      %v1368 = vrot.slane %v642, 5
      %v1369 = vsel %vm1344, %v1366, %v1368
      %v1370 = vrot.slane %v645, 5
      %v1371 = vsel %vm1344, %v1368, %v1370
      %v1372 = vrot.slane %v647, 5
      %v1373 = vsel %vm1344, %v1370, %v1372
      %v1374 = vrot.slane %v650, 5
      %v1375 = vsel %vm1344, %v1372, %v1374
      %v1376 = vrot.slane %v652, 5
      %v1377 = vsel %vm1344, %v1374, %v1376
      %1378 = vrot.lane.b32.xlu0 %v1347, 72
      %v1379 = vpop.permute.xlu0 %1378
      %1380 = vrot.lane.b32.xlu0 %v1349, 72
      %v1381 = vpop.permute.xlu0 %1380
      %1382 = vrot.lane.b32.xlu0 %v1351, 72
      %v1383 = vpop.permute.xlu0 %1382
      %1384 = vrot.lane.b32.xlu0 %v1353, 72
      %v1385 = vpop.permute.xlu0 %1384
      %1386 = vrot.lane.b32.xlu0 %v1355, 72
      %v1387 = vpop.permute.xlu0 %1386
      %1388 = vrot.lane.b32.xlu0 %v1357, 72
      %v1389 = vpop.permute.xlu0 %1388
      %1390 = vrot.lane.b32.xlu0 %v1359, 72
      %v1391 = vpop.permute.xlu0 %1390
      %1392 = vrot.lane.b32.xlu0 %v1361, 72
      %v1393 = vpop.permute.xlu0 %1392
      %1394 = vrot.lane.b32.xlu0 %v1363, 72
      %v1395 = vpop.permute.xlu0 %1394
      %1396 = vrot.lane.b32.xlu0 %v1365, 72
      %v1397 = vpop.permute.xlu0 %1396
      %1398 = vrot.lane.b32.xlu0 %v1367, 72
      %v1399 = vpop.permute.xlu0 %1398
      %1400 = vrot.lane.b32.xlu0 %v1369, 72
      %v1401 = vpop.permute.xlu0 %1400
      %1402 = vrot.lane.b32.xlu0 %v1371, 72
      %v1403 = vpop.permute.xlu0 %1402
      %1404 = vrot.lane.b32.xlu0 %v1373, 72
      %v1405 = vpop.permute.xlu0 %1404
      %1406 = vrot.lane.b32.xlu0 %v1375, 72
      %v1407 = vpop.permute.xlu0 %1406
      %1408 = vrot.lane.b32.xlu0 %v1377, 72
      %v1409 = vpop.permute.xlu0 %1408
      %1410 = vrot.lane.b32.xlu0 %v1376, 72
      %v1411 = vpop.permute.xlu0 %1410
      %v1429 = vadd.f32 %v1327, %v1379
      %v1430 = vadd.f32 %v1328, %v1381
      %v1431 = vadd.f32 %v1329, %v1383
      %v1432 = vadd.f32 %v1330, %v1385
      %v1433 = vadd.f32 %v1331, %v1387
      %v1434 = vadd.f32 %v1332, %v1389
      %v1435 = vadd.f32 %v1333, %v1391
      %v1436 = vadd.f32 %v1334, %v1393
      %v1437 = vadd.f32 %v1335, %v1395
      %v1438 = vadd.f32 %v1336, %v1397
      %v1439 = vadd.f32 %v1337, %v1399
      %v1440 = vadd.f32 %v1338, %v1401
      %v1441 = vadd.f32 %v1339, %v1403
      %v1442 = vadd.f32 %v1340, %v1405
      %v1443 = vadd.f32 %v1341, %v1407
      %v1444 = vadd.f32 %v1342, %v1409
      %v1445 = vadd.f32 %v1343, %v1411
      %v1446 = vrot.slane %v652, 6
      %v1447 = vsel %vm967, %v999, %v1446
      %1448 = vrot.lane.b32.xlu0 %v972, 64
      %v1449 = vpop.permute.xlu0 %1448
      %1450 = vrot.lane.b32.xlu0 %v974, 64
      %v1451 = vpop.permute.xlu0 %1450
      %1452 = vrot.lane.b32.xlu0 %v976, 64
      %v1453 = vpop.permute.xlu0 %1452
      %1454 = vrot.lane.b32.xlu0 %v978, 64
      %v1455 = vpop.permute.xlu0 %1454
      %1456 = vrot.lane.b32.xlu0 %v980, 64
      %v1457 = vpop.permute.xlu0 %1456
      %1458 = vrot.lane.b32.xlu0 %v982, 64
      %v1459 = vpop.permute.xlu0 %1458
      %1460 = vrot.lane.b32.xlu0 %v984, 64
      %v1461 = vpop.permute.xlu0 %1460
      %1462 = vrot.lane.b32.xlu0 %v986, 64
      %v1463 = vpop.permute.xlu0 %1462
      %1464 = vrot.lane.b32.xlu0 %v988, 64
      %v1465 = vpop.permute.xlu0 %1464
      %1466 = vrot.lane.b32.xlu0 %v990, 64
      %v1467 = vpop.permute.xlu0 %1466
      %1468 = vrot.lane.b32.xlu0 %v992, 64
      %v1469 = vpop.permute.xlu0 %1468
      %1470 = vrot.lane.b32.xlu0 %v994, 64
      %v1471 = vpop.permute.xlu0 %1470
      %1472 = vrot.lane.b32.xlu0 %v996, 64
      %v1473 = vpop.permute.xlu0 %1472
      %1474 = vrot.lane.b32.xlu0 %v998, 64
      %v1475 = vpop.permute.xlu0 %1474
      %1476 = vrot.lane.b32.xlu0 %v1000, 64
      %v1477 = vpop.permute.xlu0 %1476
      %1478 = vrot.lane.b32.xlu0 %v1447, 64
      %v1479 = vpop.permute.xlu0 %1478
      %1480 = vrot.lane.b32.xlu0 %v1446, 64
      %v1481 = vpop.permute.xlu0 %1480
      %v1499 = vadd.f32 %v1429, %v1449
      %v1500 = vadd.f32 %v1430, %v1451
      %v1501 = vadd.f32 %v1431, %v1453
      %v1502 = vadd.f32 %v1432, %v1455
      %v1503 = vadd.f32 %v1433, %v1457
      %v1504 = vadd.f32 %v1434, %v1459
      %v1505 = vadd.f32 %v1435, %v1461
      %v1506 = vadd.f32 %v1436, %v1463
      %v1507 = vadd.f32 %v1437, %v1465
      %v1508 = vadd.f32 %v1438, %v1467
      %v1509 = vadd.f32 %v1439, %v1469
      %v1510 = vadd.f32 %v1440, %v1471
      %v1511 = vadd.f32 %v1441, %v1473
      %v1512 = vadd.f32 %v1442, %v1475
      %v1513 = vadd.f32 %v1443, %v1477
      %v1514 = vadd.f32 %v1444, %v1479
      %v1515 = vadd.f32 %v1445, %v1481
      %v1519 = vrot.slane %v655, 4
      %v1520 = vsel %vm1242, %v1274, %v1519
      %v1521 = vrot.slane %v657, 4
      %v1522 = vsel %vm1242, %v1519, %v1521
      %v1523 = vrot.slane %v660, 4
      %v1524 = vsel %vm1242, %v1521, %v1523
      %1525 = vrot.lane.b32.xlu0 %v1251, 56
      %v1526 = vpop.permute.xlu0 %1525
      %1527 = vrot.lane.b32.xlu0 %v1253, 56
      %v1528 = vpop.permute.xlu0 %1527
      %1529 = vrot.lane.b32.xlu0 %v1255, 56
      %v1530 = vpop.permute.xlu0 %1529
      %1531 = vrot.lane.b32.xlu0 %v1257, 56
      %v1532 = vpop.permute.xlu0 %1531
      %1533 = vrot.lane.b32.xlu0 %v1259, 56
      %v1534 = vpop.permute.xlu0 %1533
      %1535 = vrot.lane.b32.xlu0 %v1261, 56
      %v1536 = vpop.permute.xlu0 %1535
      %1537 = vrot.lane.b32.xlu0 %v1263, 56
      %v1538 = vpop.permute.xlu0 %1537
      %1539 = vrot.lane.b32.xlu0 %v1265, 56
      %v1540 = vpop.permute.xlu0 %1539
      %1541 = vrot.lane.b32.xlu0 %v1267, 56
      %v1542 = vpop.permute.xlu0 %1541
      %1543 = vrot.lane.b32.xlu0 %v1269, 56
      %v1544 = vpop.permute.xlu0 %1543
      %1545 = vrot.lane.b32.xlu0 %v1271, 56
      %v1546 = vpop.permute.xlu0 %1545
      %1547 = vrot.lane.b32.xlu0 %v1273, 56
      %v1548 = vpop.permute.xlu0 %1547
      %1549 = vrot.lane.b32.xlu0 %v1275, 56
      %v1550 = vpop.permute.xlu0 %1549
      %1551 = vrot.lane.b32.xlu0 %v1520, 56
      %v1552 = vpop.permute.xlu0 %1551
      %1553 = vrot.lane.b32.xlu0 %v1522, 56
      %v1554 = vpop.permute.xlu0 %1553
      %1555 = vrot.lane.b32.xlu0 %v1524, 56
      %v1556 = vpop.permute.xlu0 %1555
      %1557 = vrot.lane.b32.xlu0 %v1523, 56
      %v1558 = vpop.permute.xlu0 %1557
      %v1576 = vadd.f32 %v1499, %v1526
      %v1577 = vadd.f32 %v1500, %v1528
      %v1578 = vadd.f32 %v1501, %v1530
      %v1579 = vadd.f32 %v1502, %v1532
      %v1580 = vadd.f32 %v1503, %v1534
      %v1581 = vadd.f32 %v1504, %v1536
      %v1582 = vadd.f32 %v1505, %v1538
      %v1583 = vadd.f32 %v1506, %v1540
      %v1584 = vadd.f32 %v1507, %v1542
      %v1585 = vadd.f32 %v1508, %v1544
      %v1586 = vadd.f32 %v1509, %v1546
      %v1587 = vadd.f32 %v1510, %v1548
      %v1588 = vadd.f32 %v1511, %v1550
      %v1589 = vadd.f32 %v1512, %v1552
      %v1590 = vadd.f32 %v1513, %v1554
      %v1591 = vadd.f32 %v1514, %v1556
      %v1592 = vadd.f32 %v1515, %v1558
      %v1593 = vrot.slane %v655, 5
      %v1594 = vsel %vm1344, %v1376, %v1593
      %v1595 = vrot.slane %v657, 5
      %v1596 = vsel %vm1344, %v1593, %v1595
      %v1597 = vrot.slane %v660, 5
      %v1598 = vsel %vm1344, %v1595, %v1597
      %1599 = vrot.lane.b32.xlu0 %v1353, 48
      %v1600 = vpop.permute.xlu0 %1599
      %1601 = vrot.lane.b32.xlu0 %v1355, 48
      %v1602 = vpop.permute.xlu0 %1601
      %1603 = vrot.lane.b32.xlu0 %v1357, 48
      %v1604 = vpop.permute.xlu0 %1603
      %1605 = vrot.lane.b32.xlu0 %v1359, 48
      %v1606 = vpop.permute.xlu0 %1605
      %1607 = vrot.lane.b32.xlu0 %v1361, 48
      %v1608 = vpop.permute.xlu0 %1607
      %1609 = vrot.lane.b32.xlu0 %v1363, 48
      %v1610 = vpop.permute.xlu0 %1609
      %1611 = vrot.lane.b32.xlu0 %v1365, 48
      %v1612 = vpop.permute.xlu0 %1611
      %1613 = vrot.lane.b32.xlu0 %v1367, 48
      %v1614 = vpop.permute.xlu0 %1613
      %1615 = vrot.lane.b32.xlu0 %v1369, 48
      %v1616 = vpop.permute.xlu0 %1615
      %1617 = vrot.lane.b32.xlu0 %v1371, 48
      %v1618 = vpop.permute.xlu0 %1617
      %1619 = vrot.lane.b32.xlu0 %v1373, 48
      %v1620 = vpop.permute.xlu0 %1619
      %1621 = vrot.lane.b32.xlu0 %v1375, 48
      %v1622 = vpop.permute.xlu0 %1621
      %1623 = vrot.lane.b32.xlu0 %v1377, 48
      %v1624 = vpop.permute.xlu0 %1623
      %1625 = vrot.lane.b32.xlu0 %v1594, 48
      %v1626 = vpop.permute.xlu0 %1625
      %1627 = vrot.lane.b32.xlu0 %v1596, 48
      %v1628 = vpop.permute.xlu0 %1627
      %1629 = vrot.lane.b32.xlu0 %v1598, 48
      %v1630 = vpop.permute.xlu0 %1629
      %1631 = vrot.lane.b32.xlu0 %v1597, 48
      %v1632 = vpop.permute.xlu0 %1631
      %v1650 = vadd.f32 %v1576, %v1600
      %v1651 = vadd.f32 %v1577, %v1602
      %v1652 = vadd.f32 %v1578, %v1604
      %v1653 = vadd.f32 %v1579, %v1606
      %v1654 = vadd.f32 %v1580, %v1608
      %v1655 = vadd.f32 %v1581, %v1610
      %v1656 = vadd.f32 %v1582, %v1612
      %v1657 = vadd.f32 %v1583, %v1614
      %v1658 = vadd.f32 %v1584, %v1616
      %v1659 = vadd.f32 %v1585, %v1618
      %v1660 = vadd.f32 %v1586, %v1620
      %v1661 = vadd.f32 %v1587, %v1622
      %v1662 = vadd.f32 %v1588, %v1624
      %v1663 = vadd.f32 %v1589, %v1626
      %v1664 = vadd.f32 %v1590, %v1628
      %v1665 = vadd.f32 %v1591, %v1630
      %v1666 = vadd.f32 %v1592, %v1632
      %v1667 = vrot.slane %v655, 6
      %v1668 = vsel %vm967, %v1446, %v1667
      %v1669 = vrot.slane %v657, 6
      %v1670 = vsel %vm967, %v1667, %v1669
      %v1671 = vrot.slane %v660, 6
      %v1672 = vsel %vm967, %v1669, %v1671
      %1673 = vrot.lane.b32.xlu0 %v978, 40
      %v1674 = vpop.permute.xlu0 %1673
      %1675 = vrot.lane.b32.xlu0 %v980, 40
      %v1676 = vpop.permute.xlu0 %1675
      %1677 = vrot.lane.b32.xlu0 %v982, 40
      %v1678 = vpop.permute.xlu0 %1677
      %1679 = vrot.lane.b32.xlu0 %v984, 40
      %v1680 = vpop.permute.xlu0 %1679
      %1681 = vrot.lane.b32.xlu0 %v986, 40
      %v1682 = vpop.permute.xlu0 %1681
      %1683 = vrot.lane.b32.xlu0 %v988, 40
      %v1684 = vpop.permute.xlu0 %1683
      %1685 = vrot.lane.b32.xlu0 %v990, 40
      %v1686 = vpop.permute.xlu0 %1685
      %1687 = vrot.lane.b32.xlu0 %v992, 40
      %v1688 = vpop.permute.xlu0 %1687
      %1689 = vrot.lane.b32.xlu0 %v994, 40
      %v1690 = vpop.permute.xlu0 %1689
      %1691 = vrot.lane.b32.xlu0 %v996, 40
      %v1692 = vpop.permute.xlu0 %1691
      %1693 = vrot.lane.b32.xlu0 %v998, 40
      %v1694 = vpop.permute.xlu0 %1693
      %1695 = vrot.lane.b32.xlu0 %v1000, 40
      %v1696 = vpop.permute.xlu0 %1695
      %1697 = vrot.lane.b32.xlu0 %v1447, 40
      %v1698 = vpop.permute.xlu0 %1697
      %1699 = vrot.lane.b32.xlu0 %v1668, 40
      %v1700 = vpop.permute.xlu0 %1699
      %1701 = vrot.lane.b32.xlu0 %v1670, 40
      %v1702 = vpop.permute.xlu0 %1701
      %1703 = vrot.lane.b32.xlu0 %v1672, 40
      %v1704 = vpop.permute.xlu0 %1703
      %1705 = vrot.lane.b32.xlu0 %v1671, 40
      %v1706 = vpop.permute.xlu0 %1705
      %v1724 = vadd.f32 %v1650, %v1674
      %v1725 = vadd.f32 %v1651, %v1676
      %v1726 = vadd.f32 %v1652, %v1678
      %v1727 = vadd.f32 %v1653, %v1680
      %v1728 = vadd.f32 %v1654, %v1682
      %v1729 = vadd.f32 %v1655, %v1684
      %v1730 = vadd.f32 %v1656, %v1686
      %v1731 = vadd.f32 %v1657, %v1688
      %v1732 = vadd.f32 %v1658, %v1690
      %v1733 = vadd.f32 %v1659, %v1692
      %v1734 = vadd.f32 %v1660, %v1694
      %v1735 = vadd.f32 %v1661, %v1696
      %v1736 = vadd.f32 %v1662, %v1698
      %v1737 = vadd.f32 %v1663, %v1700
      %v1738 = vadd.f32 %v1664, %v1702
      %v1739 = vadd.f32 %v1665, %v1704
      %v1740 = vadd.f32 %v1666, %v1706
      %v1742 = vrot.slane %v652, 2
      %v1743 = vsel %vm865, %v897, %v1742
      %v1744 = vrot.slane %v655, 2
      %v1745 = vsel %vm865, %v1742, %v1744
      %v1746 = vrot.slane %v657, 2
      %v1747 = vsel %vm865, %v1744, %v1746
      %v1748 = vrot.slane %v660, 2
      %v1749 = vsel %vm865, %v1746, %v1748
      %v1750 = vrot.slane %v662, 2
      %v1751 = vsel %vm865, %v1748, %v1750
      %1752 = vrot.lane.b32.xlu0 %v878, 32
      %v1753 = vpop.permute.xlu0 %1752
      %1754 = vrot.lane.b32.xlu0 %v880, 32
      %v1755 = vpop.permute.xlu0 %1754
      %1756 = vrot.lane.b32.xlu0 %v882, 32
      %v1757 = vpop.permute.xlu0 %1756
      %1758 = vrot.lane.b32.xlu0 %v884, 32
      %v1759 = vpop.permute.xlu0 %1758
      %1760 = vrot.lane.b32.xlu0 %v886, 32
      %v1761 = vpop.permute.xlu0 %1760
      %1762 = vrot.lane.b32.xlu0 %v888, 32
      %v1763 = vpop.permute.xlu0 %1762
      %1764 = vrot.lane.b32.xlu0 %v890, 32
      %v1765 = vpop.permute.xlu0 %1764
      %1766 = vrot.lane.b32.xlu0 %v892, 32
      %v1767 = vpop.permute.xlu0 %1766
      %1768 = vrot.lane.b32.xlu0 %v894, 32
      %v1769 = vpop.permute.xlu0 %1768
      %1770 = vrot.lane.b32.xlu0 %v896, 32
      %v1771 = vpop.permute.xlu0 %1770
      %1772 = vrot.lane.b32.xlu0 %v898, 32
      %v1773 = vpop.permute.xlu0 %1772
      %1774 = vrot.lane.b32.xlu0 %v1743, 32
      %v1775 = vpop.permute.xlu0 %1774
      %1776 = vrot.lane.b32.xlu0 %v1745, 32
      %v1777 = vpop.permute.xlu0 %1776
      %1778 = vrot.lane.b32.xlu0 %v1747, 32
      %v1779 = vpop.permute.xlu0 %1778
      %1780 = vrot.lane.b32.xlu0 %v1749, 32
      %v1781 = vpop.permute.xlu0 %1780
      %1782 = vrot.lane.b32.xlu0 %v1751, 32
      %v1783 = vpop.permute.xlu0 %1782
      %1784 = vrot.lane.b32.xlu0 %v1750, 32
      %v1785 = vpop.permute.xlu0 %1784
      %v1803 = vadd.f32 %v1724, %v1753
      %v1804 = vadd.f32 %v1725, %v1755
      %v1805 = vadd.f32 %v1726, %v1757
      %v1806 = vadd.f32 %v1727, %v1759
      %v1807 = vadd.f32 %v1728, %v1761
      %v1808 = vadd.f32 %v1729, %v1763
      %v1809 = vadd.f32 %v1730, %v1765
      %v1810 = vadd.f32 %v1731, %v1767
      %v1811 = vadd.f32 %v1732, %v1769
      %v1812 = vadd.f32 %v1733, %v1771
      %v1813 = vadd.f32 %v1734, %v1773
      %v1814 = vadd.f32 %v1735, %v1775
      %v1815 = vadd.f32 %v1736, %v1777
      %v1816 = vadd.f32 %v1737, %v1779
      %v1817 = vadd.f32 %v1738, %v1781
      %v1818 = vadd.f32 %v1739, %v1783
      %v1819 = vadd.f32 %v1740, %v1785
      %vm1820 = vcmask 1044480
      %v1821 = vrot.slane %v622, 3
      %v1822 = vrot.slane %v625, 3
      %v1823 = vsel %vm1820, %v1821, %v1822
      %v1824 = vrot.slane %v627, 3
      %v1825 = vsel %vm1820, %v1822, %v1824
      %v1826 = vrot.slane %v630, 3
      %v1827 = vsel %vm1820, %v1824, %v1826
      %v1828 = vrot.slane %v632, 3
      %v1829 = vsel %vm1820, %v1826, %v1828
      %v1830 = vrot.slane %v635, 3
      %v1831 = vsel %vm1820, %v1828, %v1830
      %v1832 = vrot.slane %v637, 3
      %v1833 = vsel %vm1820, %v1830, %v1832
      %v1834 = vrot.slane %v640, 3
      %v1835 = vsel %vm1820, %v1832, %v1834
      %v1836 = vrot.slane %v642, 3
      %v1837 = vsel %vm1820, %v1834, %v1836
      %v1838 = vrot.slane %v645, 3
      %v1839 = vsel %vm1820, %v1836, %v1838
      %v1840 = vrot.slane %v647, 3
      %v1841 = vsel %vm1820, %v1838, %v1840
      %v1842 = vrot.slane %v650, 3
      %v1843 = vsel %vm1820, %v1840, %v1842
      %v1844 = vrot.slane %v652, 3
      %v1845 = vsel %vm1820, %v1842, %v1844
      %v1846 = vrot.slane %v655, 3
      %v1847 = vsel %vm1820, %v1844, %v1846
      %v1848 = vrot.slane %v657, 3
      %v1849 = vsel %vm1820, %v1846, %v1848
      %v1850 = vrot.slane %v660, 3
      %v1851 = vsel %vm1820, %v1848, %v1850
      %v1852 = vrot.slane %v662, 3
      %v1853 = vsel %vm1820, %v1850, %v1852
      %1854 = vrot.lane.b32.xlu0 %v1823, 24
      %v1855 = vpop.permute.xlu0 %1854
      %1856 = vrot.lane.b32.xlu0 %v1825, 24
      %v1857 = vpop.permute.xlu0 %1856
      %1858 = vrot.lane.b32.xlu0 %v1827, 24
      %v1859 = vpop.permute.xlu0 %1858
      %1860 = vrot.lane.b32.xlu0 %v1829, 24
      %v1861 = vpop.permute.xlu0 %1860
      %1862 = vrot.lane.b32.xlu0 %v1831, 24
      %v1863 = vpop.permute.xlu0 %1862
      %1864 = vrot.lane.b32.xlu0 %v1833, 24
      %v1865 = vpop.permute.xlu0 %1864
      %1866 = vrot.lane.b32.xlu0 %v1835, 24
      %v1867 = vpop.permute.xlu0 %1866
      %1868 = vrot.lane.b32.xlu0 %v1837, 24
      %v1869 = vpop.permute.xlu0 %1868
      %1870 = vrot.lane.b32.xlu0 %v1839, 24
      %v1871 = vpop.permute.xlu0 %1870
      %1872 = vrot.lane.b32.xlu0 %v1841, 24
      %v1873 = vpop.permute.xlu0 %1872
      %1874 = vrot.lane.b32.xlu0 %v1843, 24
      %v1875 = vpop.permute.xlu0 %1874
      %1876 = vrot.lane.b32.xlu0 %v1845, 24
      %v1877 = vpop.permute.xlu0 %1876
      %1878 = vrot.lane.b32.xlu0 %v1847, 24
      %v1879 = vpop.permute.xlu0 %1878
      %1880 = vrot.lane.b32.xlu0 %v1849, 24
      %v1881 = vpop.permute.xlu0 %1880
      %1882 = vrot.lane.b32.xlu0 %v1851, 24
      %v1883 = vpop.permute.xlu0 %1882
      %1884 = vrot.lane.b32.xlu0 %v1853, 24
      %v1885 = vpop.permute.xlu0 %1884
      %1886 = vrot.lane.b32.xlu0 %v1852, 24
      %v1887 = vpop.permute.xlu0 %1886
      %v1905 = vadd.f32 %v1803, %v1855
      %v1906 = vadd.f32 %v1804, %v1857
      %v1907 = vadd.f32 %v1805, %v1859
      %v1908 = vadd.f32 %v1806, %v1861
      %v1909 = vadd.f32 %v1807, %v1863
      %v1910 = vadd.f32 %v1808, %v1865
      %v1911 = vadd.f32 %v1809, %v1867
      %v1912 = vadd.f32 %v1810, %v1869
      %v1913 = vadd.f32 %v1811, %v1871
      %v1914 = vadd.f32 %v1812, %v1873
      %v1915 = vadd.f32 %v1813, %v1875
      %v1916 = vadd.f32 %v1814, %v1877
      %v1917 = vadd.f32 %v1815, %v1879
      %v1918 = vadd.f32 %v1816, %v1881
      %v1919 = vadd.f32 %v1817, %v1883
      %v1920 = vadd.f32 %v1818, %v1885
      %v1921 = vadd.f32 %v1819, %v1887
      %v1922 = vrot.slane %v662, 4
      %v1923 = vsel %vm1242, %v1523, %v1922
      %1924 = vrot.lane.b32.xlu0 %v1253, 16
      %v1925 = vpop.permute.xlu0 %1924
      %1926 = vrot.lane.b32.xlu0 %v1255, 16
      %v1927 = vpop.permute.xlu0 %1926
      %1928 = vrot.lane.b32.xlu0 %v1257, 16
      %v1929 = vpop.permute.xlu0 %1928
      %1930 = vrot.lane.b32.xlu0 %v1259, 16
      %v1931 = vpop.permute.xlu0 %1930
      %1932 = vrot.lane.b32.xlu0 %v1261, 16
      %v1933 = vpop.permute.xlu0 %1932
      %1934 = vrot.lane.b32.xlu0 %v1263, 16
      %v1935 = vpop.permute.xlu0 %1934
      %1936 = vrot.lane.b32.xlu0 %v1265, 16
      %v1937 = vpop.permute.xlu0 %1936
      %1938 = vrot.lane.b32.xlu0 %v1267, 16
      %v1939 = vpop.permute.xlu0 %1938
      %1940 = vrot.lane.b32.xlu0 %v1269, 16
      %v1941 = vpop.permute.xlu0 %1940
      %1942 = vrot.lane.b32.xlu0 %v1271, 16
      %v1943 = vpop.permute.xlu0 %1942
      %1944 = vrot.lane.b32.xlu0 %v1273, 16
      %v1945 = vpop.permute.xlu0 %1944
      %1946 = vrot.lane.b32.xlu0 %v1275, 16
      %v1947 = vpop.permute.xlu0 %1946
      %1948 = vrot.lane.b32.xlu0 %v1520, 16
      %v1949 = vpop.permute.xlu0 %1948
      %1950 = vrot.lane.b32.xlu0 %v1522, 16
      %v1951 = vpop.permute.xlu0 %1950
      %1952 = vrot.lane.b32.xlu0 %v1524, 16
      %v1953 = vpop.permute.xlu0 %1952
      %1954 = vrot.lane.b32.xlu0 %v1923, 16
      %v1955 = vpop.permute.xlu0 %1954
      %1956 = vrot.lane.b32.xlu0 %v1922, 16
      %v1957 = vpop.permute.xlu0 %1956
      %v1975 = vadd.f32 %v1905, %v1925
      %v1976 = vadd.f32 %v1906, %v1927
      %v1977 = vadd.f32 %v1907, %v1929
      %v1978 = vadd.f32 %v1908, %v1931
      %v1979 = vadd.f32 %v1909, %v1933
      %v1980 = vadd.f32 %v1910, %v1935
      %v1981 = vadd.f32 %v1911, %v1937
      %v1982 = vadd.f32 %v1912, %v1939
      %v1983 = vadd.f32 %v1913, %v1941
      %v1984 = vadd.f32 %v1914, %v1943
      %v1985 = vadd.f32 %v1915, %v1945
      %v1986 = vadd.f32 %v1916, %v1947
      %v1987 = vadd.f32 %v1917, %v1949
      %v1988 = vadd.f32 %v1918, %v1951
      %v1989 = vadd.f32 %v1919, %v1953
      %v1990 = vadd.f32 %v1920, %v1955
      %v1991 = vadd.f32 %v1921, %v1957
      %1993 = vrot.lane.b32.xlu0 %v625, 8
      %v1994 = vpop.permute.xlu0 %1993
      %1995 = vrot.lane.b32.xlu0 %v627, 8
      %v1996 = vpop.permute.xlu0 %1995
      %1997 = vrot.lane.b32.xlu0 %v630, 8
      %v1998 = vpop.permute.xlu0 %1997
      %1999 = vrot.lane.b32.xlu0 %v632, 8
      %v2000 = vpop.permute.xlu0 %1999
      %2001 = vrot.lane.b32.xlu0 %v635, 8
      %v2002 = vpop.permute.xlu0 %2001
      %2003 = vrot.lane.b32.xlu0 %v637, 8
      %v2004 = vpop.permute.xlu0 %2003
      %2005 = vrot.lane.b32.xlu0 %v640, 8
      %v2006 = vpop.permute.xlu0 %2005
      %2007 = vrot.lane.b32.xlu0 %v642, 8
      %v2008 = vpop.permute.xlu0 %2007
      %2009 = vrot.lane.b32.xlu0 %v645, 8
      %v2010 = vpop.permute.xlu0 %2009
      %2011 = vrot.lane.b32.xlu0 %v647, 8
      %v2012 = vpop.permute.xlu0 %2011
      %2013 = vrot.lane.b32.xlu0 %v650, 8
      %v2014 = vpop.permute.xlu0 %2013
      %2015 = vrot.lane.b32.xlu0 %v652, 8
      %v2016 = vpop.permute.xlu0 %2015
      %2017 = vrot.lane.b32.xlu0 %v655, 8
      %v2018 = vpop.permute.xlu0 %2017
      %2019 = vrot.lane.b32.xlu0 %v657, 8
      %v2020 = vpop.permute.xlu0 %2019
      %2021 = vrot.lane.b32.xlu0 %v660, 8
      %v2022 = vpop.permute.xlu0 %2021
      %2023 = vrot.lane.b32.xlu0 %v662, 8
      %v2024 = vpop.permute.xlu0 %2023
      %2025 = vrot.lane.b32.xlu0 %v665, 8
      %v2026 = vpop.permute.xlu0 %2025
      %v2044 = vadd.f32 %v1975, %v1994
      %v2045 = vadd.f32 %v1976, %v1996
      %v2046 = vadd.f32 %v1977, %v1998
      %v2047 = vadd.f32 %v1978, %v2000
      %v2048 = vadd.f32 %v1979, %v2002
      %v2049 = vadd.f32 %v1980, %v2004
      %v2050 = vadd.f32 %v1981, %v2006
      %v2051 = vadd.f32 %v1982, %v2008
      %v2052 = vadd.f32 %v1983, %v2010
      %v2053 = vadd.f32 %v1984, %v2012
      %v2054 = vadd.f32 %v1985, %v2014
      %v2055 = vadd.f32 %v1986, %v2016
      %v2056 = vadd.f32 %v1987, %v2018
      %v2057 = vadd.f32 %v1988, %v2020
      %v2058 = vadd.f32 %v1989, %v2022
      %v2059 = vadd.f32 %v1990, %v2024
      %v2060 = vadd.f32 %v1991, %v2026
      %v2078 = vrot.slane %v693, 1
      %v2079 = vrot.slane %v695, 1
      %v2080 = vsel %vm763, %v2078, %v2079
      %v2081 = vrot.slane %v698, 1
      %v2082 = vsel %vm763, %v2079, %v2081
      %v2083 = vrot.slane %v700, 1
      %v2084 = vsel %vm763, %v2081, %v2083
      %v2085 = vrot.slane %v703, 1
      %v2086 = vsel %vm763, %v2083, %v2085
      %v2087 = vrot.slane %v705, 1
      %v2088 = vsel %vm763, %v2085, %v2087
      %v2089 = vrot.slane %v708, 1
      %v2090 = vsel %vm763, %v2087, %v2089
      %v2091 = vrot.slane %v710, 1
      %v2092 = vsel %vm763, %v2089, %v2091
      %v2093 = vrot.slane %v713, 1
      %v2094 = vsel %vm763, %v2091, %v2093
      %v2095 = vrot.slane %v715, 1
      %v2096 = vsel %vm763, %v2093, %v2095
      %v2097 = vrot.slane %v718, 1
      %v2098 = vsel %vm763, %v2095, %v2097
      %v2099 = vrot.slane %v720, 1
      %v2100 = vsel %vm763, %v2097, %v2099
      %v2101 = vrot.slane %v723, 1
      %v2102 = vsel %vm763, %v2099, %v2101
      %v2103 = vrot.slane %v725, 1
      %v2104 = vsel %vm763, %v2101, %v2103
      %v2105 = vrot.slane %v728, 1
      %v2106 = vsel %vm763, %v2103, %v2105
      %v2107 = vrot.slane %v730, 1
      %v2108 = vsel %vm763, %v2105, %v2107
      %v2109 = vrot.slane %v733, 1
      %v2110 = vsel %vm763, %v2107, %v2109
      %v2128 = vadd.f32 %v2044, %v2080
      %v2129 = vadd.f32 %v2045, %v2082
      %v2130 = vadd.f32 %v2046, %v2084
      %v2131 = vadd.f32 %v2047, %v2086
      %v2132 = vadd.f32 %v2048, %v2088
      %v2133 = vadd.f32 %v2049, %v2090
      %v2134 = vadd.f32 %v2050, %v2092
      %v2135 = vadd.f32 %v2051, %v2094
      %v2136 = vadd.f32 %v2052, %v2096
      %v2137 = vadd.f32 %v2053, %v2098
      %v2138 = vadd.f32 %v2054, %v2100
      %v2139 = vadd.f32 %v2055, %v2102
      %v2140 = vadd.f32 %v2056, %v2104
      %v2141 = vadd.f32 %v2057, %v2106
      %v2142 = vadd.f32 %v2058, %v2108
      %v2143 = vadd.f32 %v2059, %v2110
      %v2144 = vadd.f32 %v2060, %v2109
      %v2145 = vrot.slane %v693, 2
      %v2146 = vrot.slane %v695, 2
      %v2147 = vsel %vm865, %v2145, %v2146
      %v2148 = vrot.slane %v698, 2
      %v2149 = vsel %vm865, %v2146, %v2148
      %v2150 = vrot.slane %v700, 2
      %v2151 = vsel %vm865, %v2148, %v2150
      %v2152 = vrot.slane %v703, 2
      %v2153 = vsel %vm865, %v2150, %v2152
      %v2154 = vrot.slane %v705, 2
      %v2155 = vsel %vm865, %v2152, %v2154
      %v2156 = vrot.slane %v708, 2
      %v2157 = vsel %vm865, %v2154, %v2156
      %v2158 = vrot.slane %v710, 2
      %v2159 = vsel %vm865, %v2156, %v2158
      %v2160 = vrot.slane %v713, 2
      %v2161 = vsel %vm865, %v2158, %v2160
      %v2162 = vrot.slane %v715, 2
      %v2163 = vsel %vm865, %v2160, %v2162
      %v2164 = vrot.slane %v718, 2
      %v2165 = vsel %vm865, %v2162, %v2164
      %v2166 = vrot.slane %v720, 2
      %v2167 = vsel %vm865, %v2164, %v2166
      %v2168 = vrot.slane %v723, 2
      %v2169 = vsel %vm865, %v2166, %v2168
      %v2170 = vrot.slane %v725, 2
      %v2171 = vsel %vm865, %v2168, %v2170
      %v2172 = vrot.slane %v728, 2
      %v2173 = vsel %vm865, %v2170, %v2172
      %v2174 = vrot.slane %v730, 2
      %v2175 = vsel %vm865, %v2172, %v2174
      %v2176 = vrot.slane %v733, 2
      %v2177 = vsel %vm865, %v2174, %v2176
      %2178 = vrot.lane.b32.xlu0 %v2147, 120
      %v2179 = vpop.permute.xlu0 %2178
      %2180 = vrot.lane.b32.xlu0 %v2149, 120
      %v2181 = vpop.permute.xlu0 %2180
      %2182 = vrot.lane.b32.xlu0 %v2151, 120
      %v2183 = vpop.permute.xlu0 %2182
      %2184 = vrot.lane.b32.xlu0 %v2153, 120
      %v2185 = vpop.permute.xlu0 %2184
      %2186 = vrot.lane.b32.xlu0 %v2155, 120
      %v2187 = vpop.permute.xlu0 %2186
      %2188 = vrot.lane.b32.xlu0 %v2157, 120
      %v2189 = vpop.permute.xlu0 %2188
      %2190 = vrot.lane.b32.xlu0 %v2159, 120
      %v2191 = vpop.permute.xlu0 %2190
      %2192 = vrot.lane.b32.xlu0 %v2161, 120
      %v2193 = vpop.permute.xlu0 %2192
      %2194 = vrot.lane.b32.xlu0 %v2163, 120
      %v2195 = vpop.permute.xlu0 %2194
      %2196 = vrot.lane.b32.xlu0 %v2165, 120
      %v2197 = vpop.permute.xlu0 %2196
      %2198 = vrot.lane.b32.xlu0 %v2167, 120
      %v2199 = vpop.permute.xlu0 %2198
      %2200 = vrot.lane.b32.xlu0 %v2169, 120
      %v2201 = vpop.permute.xlu0 %2200
      %2202 = vrot.lane.b32.xlu0 %v2171, 120
      %v2203 = vpop.permute.xlu0 %2202
      %2204 = vrot.lane.b32.xlu0 %v2173, 120
      %v2205 = vpop.permute.xlu0 %2204
      %2206 = vrot.lane.b32.xlu0 %v2175, 120
      %v2207 = vpop.permute.xlu0 %2206
      %2208 = vrot.lane.b32.xlu0 %v2177, 120
      %v2209 = vpop.permute.xlu0 %2208
      %2210 = vrot.lane.b32.xlu0 %v2176, 120
      %v2211 = vpop.permute.xlu0 %2210
      %v2229 = vadd.f32 %v2128, %v2179
      %v2230 = vadd.f32 %v2129, %v2181
      %v2231 = vadd.f32 %v2130, %v2183
      %v2232 = vadd.f32 %v2131, %v2185
      %v2233 = vadd.f32 %v2132, %v2187
      %v2234 = vadd.f32 %v2133, %v2189
      %v2235 = vadd.f32 %v2134, %v2191
      %v2236 = vadd.f32 %v2135, %v2193
      %v2237 = vadd.f32 %v2136, %v2195
      %v2238 = vadd.f32 %v2137, %v2197
      %v2239 = vadd.f32 %v2138, %v2199
      %v2240 = vadd.f32 %v2139, %v2201
      %v2241 = vadd.f32 %v2140, %v2203
      %v2242 = vadd.f32 %v2141, %v2205
      %v2243 = vadd.f32 %v2142, %v2207
      %v2244 = vadd.f32 %v2143, %v2209
      %v2245 = vadd.f32 %v2144, %v2211
      %2249 = vrot.lane.b32.xlu0 %v700, 112
      %v2250 = vpop.permute.xlu0 %2249
      %2251 = vrot.lane.b32.xlu0 %v703, 112
      %v2252 = vpop.permute.xlu0 %2251
      %2253 = vrot.lane.b32.xlu0 %v705, 112
      %v2254 = vpop.permute.xlu0 %2253
      %2255 = vrot.lane.b32.xlu0 %v708, 112
      %v2256 = vpop.permute.xlu0 %2255
      %2257 = vrot.lane.b32.xlu0 %v710, 112
      %v2258 = vpop.permute.xlu0 %2257
      %2259 = vrot.lane.b32.xlu0 %v713, 112
      %v2260 = vpop.permute.xlu0 %2259
      %2261 = vrot.lane.b32.xlu0 %v715, 112
      %v2262 = vpop.permute.xlu0 %2261
      %2263 = vrot.lane.b32.xlu0 %v718, 112
      %v2264 = vpop.permute.xlu0 %2263
      %2265 = vrot.lane.b32.xlu0 %v720, 112
      %v2266 = vpop.permute.xlu0 %2265
      %2267 = vrot.lane.b32.xlu0 %v723, 112
      %v2268 = vpop.permute.xlu0 %2267
      %2269 = vrot.lane.b32.xlu0 %v725, 112
      %v2270 = vpop.permute.xlu0 %2269
      %2271 = vrot.lane.b32.xlu0 %v728, 112
      %v2272 = vpop.permute.xlu0 %2271
      %2273 = vrot.lane.b32.xlu0 %v730, 112
      %v2274 = vpop.permute.xlu0 %2273
      %2275 = vrot.lane.b32.xlu0 %v733, 112
      %v2276 = vpop.permute.xlu0 %2275
      %2277 = vrot.lane.b32.xlu0 %v735, 112
      %v2278 = vpop.permute.xlu0 %2277
      %2279 = vrot.lane.b32.xlu0 %v738, 112
      %v2280 = vpop.permute.xlu0 %2279
      %2281 = vrot.lane.b32.xlu0 %v740, 112
      %v2282 = vpop.permute.xlu0 %2281
      %v2300 = vadd.f32 %v2229, %v2250
      %v2301 = vadd.f32 %v2230, %v2252
      %v2302 = vadd.f32 %v2231, %v2254
      %v2303 = vadd.f32 %v2232, %v2256
      %v2304 = vadd.f32 %v2233, %v2258
      %v2305 = vadd.f32 %v2234, %v2260
      %v2306 = vadd.f32 %v2235, %v2262
      %v2307 = vadd.f32 %v2236, %v2264
      %v2308 = vadd.f32 %v2237, %v2266
      %v2309 = vadd.f32 %v2238, %v2268
      %v2310 = vadd.f32 %v2239, %v2270
      %v2311 = vadd.f32 %v2240, %v2272
      %v2312 = vadd.f32 %v2241, %v2274
      %v2313 = vadd.f32 %v2242, %v2276
      %v2314 = vadd.f32 %v2243, %v2278
      %v2315 = vadd.f32 %v2244, %v2280
      %v2316 = vadd.f32 %v2245, %v2282
      %v2317 = vrot.slane %v735, 1
      %v2318 = vsel %vm763, %v2109, %v2317
      %v2319 = vrot.slane %v738, 1
      %v2320 = vsel %vm763, %v2317, %v2319
      %v2321 = vrot.slane %v740, 1
      %v2322 = vsel %vm763, %v2319, %v2321
      %2323 = vrot.lane.b32.xlu0 %v2086, 104
      %v2324 = vpop.permute.xlu0 %2323
      %2325 = vrot.lane.b32.xlu0 %v2088, 104
      %v2326 = vpop.permute.xlu0 %2325
      %2327 = vrot.lane.b32.xlu0 %v2090, 104
      %v2328 = vpop.permute.xlu0 %2327
      %2329 = vrot.lane.b32.xlu0 %v2092, 104
      %v2330 = vpop.permute.xlu0 %2329
      %2331 = vrot.lane.b32.xlu0 %v2094, 104
      %v2332 = vpop.permute.xlu0 %2331
      %2333 = vrot.lane.b32.xlu0 %v2096, 104
      %v2334 = vpop.permute.xlu0 %2333
      %2335 = vrot.lane.b32.xlu0 %v2098, 104
      %v2336 = vpop.permute.xlu0 %2335
      %2337 = vrot.lane.b32.xlu0 %v2100, 104
      %v2338 = vpop.permute.xlu0 %2337
      %2339 = vrot.lane.b32.xlu0 %v2102, 104
      %v2340 = vpop.permute.xlu0 %2339
      %2341 = vrot.lane.b32.xlu0 %v2104, 104
      %v2342 = vpop.permute.xlu0 %2341
      %2343 = vrot.lane.b32.xlu0 %v2106, 104
      %v2344 = vpop.permute.xlu0 %2343
      %2345 = vrot.lane.b32.xlu0 %v2108, 104
      %v2346 = vpop.permute.xlu0 %2345
      %2347 = vrot.lane.b32.xlu0 %v2110, 104
      %v2348 = vpop.permute.xlu0 %2347
      %2349 = vrot.lane.b32.xlu0 %v2318, 104
      %v2350 = vpop.permute.xlu0 %2349
      %2351 = vrot.lane.b32.xlu0 %v2320, 104
      %v2352 = vpop.permute.xlu0 %2351
      %2353 = vrot.lane.b32.xlu0 %v2322, 104
      %v2354 = vpop.permute.xlu0 %2353
      %2355 = vrot.lane.b32.xlu0 %v2321, 104
      %v2356 = vpop.permute.xlu0 %2355
      %v2374 = vadd.f32 %v2300, %v2324
      %v2375 = vadd.f32 %v2301, %v2326
      %v2376 = vadd.f32 %v2302, %v2328
      %v2377 = vadd.f32 %v2303, %v2330
      %v2378 = vadd.f32 %v2304, %v2332
      %v2379 = vadd.f32 %v2305, %v2334
      %v2380 = vadd.f32 %v2306, %v2336
      %v2381 = vadd.f32 %v2307, %v2338
      %v2382 = vadd.f32 %v2308, %v2340
      %v2383 = vadd.f32 %v2309, %v2342
      %v2384 = vadd.f32 %v2310, %v2344
      %v2385 = vadd.f32 %v2311, %v2346
      %v2386 = vadd.f32 %v2312, %v2348
      %v2387 = vadd.f32 %v2313, %v2350
      %v2388 = vadd.f32 %v2314, %v2352
      %v2389 = vadd.f32 %v2315, %v2354
      %v2390 = vadd.f32 %v2316, %v2356
      %v2391 = vrot.slane %v735, 2
      %v2392 = vsel %vm865, %v2176, %v2391
      %v2393 = vrot.slane %v738, 2
      %v2394 = vsel %vm865, %v2391, %v2393
      %v2395 = vrot.slane %v740, 2
      %v2396 = vsel %vm865, %v2393, %v2395
      %2397 = vrot.lane.b32.xlu0 %v2153, 96
      %v2398 = vpop.permute.xlu0 %2397
      %2399 = vrot.lane.b32.xlu0 %v2155, 96
      %v2400 = vpop.permute.xlu0 %2399
      %2401 = vrot.lane.b32.xlu0 %v2157, 96
      %v2402 = vpop.permute.xlu0 %2401
      %2403 = vrot.lane.b32.xlu0 %v2159, 96
      %v2404 = vpop.permute.xlu0 %2403
      %2405 = vrot.lane.b32.xlu0 %v2161, 96
      %v2406 = vpop.permute.xlu0 %2405
      %2407 = vrot.lane.b32.xlu0 %v2163, 96
      %v2408 = vpop.permute.xlu0 %2407
      %2409 = vrot.lane.b32.xlu0 %v2165, 96
      %v2410 = vpop.permute.xlu0 %2409
      %2411 = vrot.lane.b32.xlu0 %v2167, 96
      %v2412 = vpop.permute.xlu0 %2411
      %2413 = vrot.lane.b32.xlu0 %v2169, 96
      %v2414 = vpop.permute.xlu0 %2413
      %2415 = vrot.lane.b32.xlu0 %v2171, 96
      %v2416 = vpop.permute.xlu0 %2415
      %2417 = vrot.lane.b32.xlu0 %v2173, 96
      %v2418 = vpop.permute.xlu0 %2417
      %2419 = vrot.lane.b32.xlu0 %v2175, 96
      %v2420 = vpop.permute.xlu0 %2419
      %2421 = vrot.lane.b32.xlu0 %v2177, 96
      %v2422 = vpop.permute.xlu0 %2421
      %2423 = vrot.lane.b32.xlu0 %v2392, 96
      %v2424 = vpop.permute.xlu0 %2423
      %2425 = vrot.lane.b32.xlu0 %v2394, 96
      %v2426 = vpop.permute.xlu0 %2425
      %2427 = vrot.lane.b32.xlu0 %v2396, 96
      %v2428 = vpop.permute.xlu0 %2427
      %2429 = vrot.lane.b32.xlu0 %v2395, 96
      %v2430 = vpop.permute.xlu0 %2429
      %v2448 = vadd.f32 %v2374, %v2398
      %v2449 = vadd.f32 %v2375, %v2400
      %v2450 = vadd.f32 %v2376, %v2402
      %v2451 = vadd.f32 %v2377, %v2404
      %v2452 = vadd.f32 %v2378, %v2406
      %v2453 = vadd.f32 %v2379, %v2408
      %v2454 = vadd.f32 %v2380, %v2410
      %v2455 = vadd.f32 %v2381, %v2412
      %v2456 = vadd.f32 %v2382, %v2414
      %v2457 = vadd.f32 %v2383, %v2416
      %v2458 = vadd.f32 %v2384, %v2418
      %v2459 = vadd.f32 %v2385, %v2420
      %v2460 = vadd.f32 %v2386, %v2422
      %v2461 = vadd.f32 %v2387, %v2424
      %v2462 = vadd.f32 %v2388, %v2426
      %v2463 = vadd.f32 %v2389, %v2428
      %v2464 = vadd.f32 %v2390, %v2430
      %v2465 = vrot.slane %v700, 6
      %v2466 = vrot.slane %v703, 6
      %v2467 = vsel %vm967, %v2465, %v2466
      %v2468 = vrot.slane %v705, 6
      %v2469 = vsel %vm967, %v2466, %v2468
      %v2470 = vrot.slane %v708, 6
      %v2471 = vsel %vm967, %v2468, %v2470
      %v2472 = vrot.slane %v710, 6
      %v2473 = vsel %vm967, %v2470, %v2472
      %v2474 = vrot.slane %v713, 6
      %v2475 = vsel %vm967, %v2472, %v2474
      %v2476 = vrot.slane %v715, 6
      %v2477 = vsel %vm967, %v2474, %v2476
      %v2478 = vrot.slane %v718, 6
      %v2479 = vsel %vm967, %v2476, %v2478
      %v2480 = vrot.slane %v720, 6
      %v2481 = vsel %vm967, %v2478, %v2480
      %v2482 = vrot.slane %v723, 6
      %v2483 = vsel %vm967, %v2480, %v2482
      %v2484 = vrot.slane %v725, 6
      %v2485 = vsel %vm967, %v2482, %v2484
      %v2486 = vrot.slane %v728, 6
      %v2487 = vsel %vm967, %v2484, %v2486
      %v2488 = vrot.slane %v730, 6
      %v2489 = vsel %vm967, %v2486, %v2488
      %v2490 = vrot.slane %v733, 6
      %v2491 = vsel %vm967, %v2488, %v2490
      %v2492 = vrot.slane %v735, 6
      %v2493 = vsel %vm967, %v2490, %v2492
      %v2494 = vrot.slane %v738, 6
      %v2495 = vsel %vm967, %v2492, %v2494
      %v2496 = vrot.slane %v740, 6
      %v2497 = vsel %vm967, %v2494, %v2496
      %2498 = vrot.lane.b32.xlu0 %v2467, 88
      %v2499 = vpop.permute.xlu0 %2498
      %2500 = vrot.lane.b32.xlu0 %v2469, 88
      %v2501 = vpop.permute.xlu0 %2500
      %2502 = vrot.lane.b32.xlu0 %v2471, 88
      %v2503 = vpop.permute.xlu0 %2502
      %2504 = vrot.lane.b32.xlu0 %v2473, 88
      %v2505 = vpop.permute.xlu0 %2504
      %2506 = vrot.lane.b32.xlu0 %v2475, 88
      %v2507 = vpop.permute.xlu0 %2506
      %2508 = vrot.lane.b32.xlu0 %v2477, 88
      %v2509 = vpop.permute.xlu0 %2508
      %2510 = vrot.lane.b32.xlu0 %v2479, 88
      %v2511 = vpop.permute.xlu0 %2510
      %2512 = vrot.lane.b32.xlu0 %v2481, 88
      %v2513 = vpop.permute.xlu0 %2512
      %2514 = vrot.lane.b32.xlu0 %v2483, 88
      %v2515 = vpop.permute.xlu0 %2514
      %2516 = vrot.lane.b32.xlu0 %v2485, 88
      %v2517 = vpop.permute.xlu0 %2516
      %2518 = vrot.lane.b32.xlu0 %v2487, 88
      %v2519 = vpop.permute.xlu0 %2518
      %2520 = vrot.lane.b32.xlu0 %v2489, 88
      %v2521 = vpop.permute.xlu0 %2520
      %2522 = vrot.lane.b32.xlu0 %v2491, 88
      %v2523 = vpop.permute.xlu0 %2522
      %2524 = vrot.lane.b32.xlu0 %v2493, 88
      %v2525 = vpop.permute.xlu0 %2524
      %2526 = vrot.lane.b32.xlu0 %v2495, 88
      %v2527 = vpop.permute.xlu0 %2526
      %2528 = vrot.lane.b32.xlu0 %v2497, 88
      %v2529 = vpop.permute.xlu0 %2528
      %2530 = vrot.lane.b32.xlu0 %v2496, 88
      %v2531 = vpop.permute.xlu0 %2530
      %v2549 = vadd.f32 %v2448, %v2499
      %v2550 = vadd.f32 %v2449, %v2501
      %v2551 = vadd.f32 %v2450, %v2503
      %v2552 = vadd.f32 %v2451, %v2505
      %v2553 = vadd.f32 %v2452, %v2507
      %v2554 = vadd.f32 %v2453, %v2509
      %v2555 = vadd.f32 %v2454, %v2511
      %v2556 = vadd.f32 %v2455, %v2513
      %v2557 = vadd.f32 %v2456, %v2515
      %v2558 = vadd.f32 %v2457, %v2517
      %v2559 = vadd.f32 %v2458, %v2519
      %v2560 = vadd.f32 %v2459, %v2521
      %v2561 = vadd.f32 %v2460, %v2523
      %v2562 = vadd.f32 %v2461, %v2525
      %v2563 = vadd.f32 %v2462, %v2527
      %v2564 = vadd.f32 %v2463, %v2529
      %v2565 = vadd.f32 %v2464, %v2531
      %v2567 = vrot.slane %v700, 7
      %v2568 = vrot.slane %v703, 7
      %v2569 = vsel %vm1070, %v2567, %v2568
      %v2570 = vrot.slane %v705, 7
      %v2571 = vsel %vm1070, %v2568, %v2570
      %v2572 = vrot.slane %v708, 7
      %v2573 = vsel %vm1070, %v2570, %v2572
      %v2574 = vrot.slane %v710, 7
      %v2575 = vsel %vm1070, %v2572, %v2574
      %v2576 = vrot.slane %v713, 7
      %v2577 = vsel %vm1070, %v2574, %v2576
      %v2578 = vrot.slane %v715, 7
      %v2579 = vsel %vm1070, %v2576, %v2578
      %v2580 = vrot.slane %v718, 7
      %v2581 = vsel %vm1070, %v2578, %v2580
      %v2582 = vrot.slane %v720, 7
      %v2583 = vsel %vm1070, %v2580, %v2582
      %v2584 = vrot.slane %v723, 7
      %v2585 = vsel %vm1070, %v2582, %v2584
      %v2586 = vrot.slane %v725, 7
      %v2587 = vsel %vm1070, %v2584, %v2586
      %v2588 = vrot.slane %v728, 7
      %v2589 = vsel %vm1070, %v2586, %v2588
      %v2590 = vrot.slane %v730, 7
      %v2591 = vsel %vm1070, %v2588, %v2590
      %v2592 = vrot.slane %v733, 7
      %v2593 = vsel %vm1070, %v2590, %v2592
      %v2594 = vrot.slane %v735, 7
      %v2595 = vsel %vm1070, %v2592, %v2594
      %v2596 = vrot.slane %v738, 7
      %v2597 = vsel %vm1070, %v2594, %v2596
      %v2598 = vrot.slane %v740, 7
      %v2599 = vsel %vm1070, %v2596, %v2598
      %v2600 = vrot.slane %v743, 7
      %v2601 = vsel %vm1070, %v2598, %v2600
      %2602 = vrot.lane.b32.xlu0 %v2569, 80
      %v2603 = vpop.permute.xlu0 %2602
      %2604 = vrot.lane.b32.xlu0 %v2571, 80
      %v2605 = vpop.permute.xlu0 %2604
      %2606 = vrot.lane.b32.xlu0 %v2573, 80
      %v2607 = vpop.permute.xlu0 %2606
      %2608 = vrot.lane.b32.xlu0 %v2575, 80
      %v2609 = vpop.permute.xlu0 %2608
      %2610 = vrot.lane.b32.xlu0 %v2577, 80
      %v2611 = vpop.permute.xlu0 %2610
      %2612 = vrot.lane.b32.xlu0 %v2579, 80
      %v2613 = vpop.permute.xlu0 %2612
      %2614 = vrot.lane.b32.xlu0 %v2581, 80
      %v2615 = vpop.permute.xlu0 %2614
      %2616 = vrot.lane.b32.xlu0 %v2583, 80
      %v2617 = vpop.permute.xlu0 %2616
      %2618 = vrot.lane.b32.xlu0 %v2585, 80
      %v2619 = vpop.permute.xlu0 %2618
      %2620 = vrot.lane.b32.xlu0 %v2587, 80
      %v2621 = vpop.permute.xlu0 %2620
      %2622 = vrot.lane.b32.xlu0 %v2589, 80
      %v2623 = vpop.permute.xlu0 %2622
      %2624 = vrot.lane.b32.xlu0 %v2591, 80
      %v2625 = vpop.permute.xlu0 %2624
      %2626 = vrot.lane.b32.xlu0 %v2593, 80
      %v2627 = vpop.permute.xlu0 %2626
      %2628 = vrot.lane.b32.xlu0 %v2595, 80
      %v2629 = vpop.permute.xlu0 %2628
      %2630 = vrot.lane.b32.xlu0 %v2597, 80
      %v2631 = vpop.permute.xlu0 %2630
      %2632 = vrot.lane.b32.xlu0 %v2599, 80
      %v2633 = vpop.permute.xlu0 %2632
      %2634 = vrot.lane.b32.xlu0 %v2601, 80
      %v2635 = vpop.permute.xlu0 %2634
      %v2653 = vadd.f32 %v2549, %v2603
      %v2654 = vadd.f32 %v2550, %v2605
      %v2655 = vadd.f32 %v2551, %v2607
      %v2656 = vadd.f32 %v2552, %v2609
      %v2657 = vadd.f32 %v2553, %v2611
      %v2658 = vadd.f32 %v2554, %v2613
      %v2659 = vadd.f32 %v2555, %v2615
      %v2660 = vadd.f32 %v2556, %v2617
      %v2661 = vadd.f32 %v2557, %v2619
      %v2662 = vadd.f32 %v2558, %v2621
      %v2663 = vadd.f32 %v2559, %v2623
      %v2664 = vadd.f32 %v2560, %v2625
      %v2665 = vadd.f32 %v2561, %v2627
      %v2666 = vadd.f32 %v2562, %v2629
      %v2667 = vadd.f32 %v2563, %v2631
      %v2668 = vadd.f32 %v2564, %v2633
      %v2669 = vadd.f32 %v2565, %v2635
      %2670 = vrot.lane.b32.xlu0 %v703, 72
      %v2671 = vpop.permute.xlu0 %2670
      %2672 = vrot.lane.b32.xlu0 %v705, 72
      %v2673 = vpop.permute.xlu0 %2672
      %2674 = vrot.lane.b32.xlu0 %v708, 72
      %v2675 = vpop.permute.xlu0 %2674
      %2676 = vrot.lane.b32.xlu0 %v710, 72
      %v2677 = vpop.permute.xlu0 %2676
      %2678 = vrot.lane.b32.xlu0 %v713, 72
      %v2679 = vpop.permute.xlu0 %2678
      %2680 = vrot.lane.b32.xlu0 %v715, 72
      %v2681 = vpop.permute.xlu0 %2680
      %2682 = vrot.lane.b32.xlu0 %v718, 72
      %v2683 = vpop.permute.xlu0 %2682
      %2684 = vrot.lane.b32.xlu0 %v720, 72
      %v2685 = vpop.permute.xlu0 %2684
      %2686 = vrot.lane.b32.xlu0 %v723, 72
      %v2687 = vpop.permute.xlu0 %2686
      %2688 = vrot.lane.b32.xlu0 %v725, 72
      %v2689 = vpop.permute.xlu0 %2688
      %2690 = vrot.lane.b32.xlu0 %v728, 72
      %v2691 = vpop.permute.xlu0 %2690
      %2692 = vrot.lane.b32.xlu0 %v730, 72
      %v2693 = vpop.permute.xlu0 %2692
      %2694 = vrot.lane.b32.xlu0 %v733, 72
      %v2695 = vpop.permute.xlu0 %2694
      %2696 = vrot.lane.b32.xlu0 %v735, 72
      %v2697 = vpop.permute.xlu0 %2696
      %2698 = vrot.lane.b32.xlu0 %v738, 72
      %v2699 = vpop.permute.xlu0 %2698
      %2700 = vrot.lane.b32.xlu0 %v740, 72
      %v2701 = vpop.permute.xlu0 %2700
      %2702 = vrot.lane.b32.xlu0 %v743, 72
      %v2703 = vpop.permute.xlu0 %2702
      %v2721 = vadd.f32 %v2653, %v2671
      %v2722 = vadd.f32 %v2654, %v2673
      %v2723 = vadd.f32 %v2655, %v2675
      %v2724 = vadd.f32 %v2656, %v2677
      %v2725 = vadd.f32 %v2657, %v2679
      %v2726 = vadd.f32 %v2658, %v2681
      %v2727 = vadd.f32 %v2659, %v2683
      %v2728 = vadd.f32 %v2660, %v2685
      %v2729 = vadd.f32 %v2661, %v2687
      %v2730 = vadd.f32 %v2662, %v2689
      %v2731 = vadd.f32 %v2663, %v2691
      %v2732 = vadd.f32 %v2664, %v2693
      %v2733 = vadd.f32 %v2665, %v2695
      %v2734 = vadd.f32 %v2666, %v2697
      %v2735 = vadd.f32 %v2667, %v2699
      %v2736 = vadd.f32 %v2668, %v2701
      %v2737 = vadd.f32 %v2669, %v2703
      %v2738 = vrot.slane %v703, 4
      %v2739 = vrot.slane %v705, 4
      %v2740 = vsel %vm1242, %v2738, %v2739
      %v2741 = vrot.slane %v708, 4
      %v2742 = vsel %vm1242, %v2739, %v2741
      %v2743 = vrot.slane %v710, 4
      %v2744 = vsel %vm1242, %v2741, %v2743
      %v2745 = vrot.slane %v713, 4
      %v2746 = vsel %vm1242, %v2743, %v2745
      %v2747 = vrot.slane %v715, 4
      %v2748 = vsel %vm1242, %v2745, %v2747
      %v2749 = vrot.slane %v718, 4
      %v2750 = vsel %vm1242, %v2747, %v2749
      %v2751 = vrot.slane %v720, 4
      %v2752 = vsel %vm1242, %v2749, %v2751
      %v2753 = vrot.slane %v723, 4
      %v2754 = vsel %vm1242, %v2751, %v2753
      %v2755 = vrot.slane %v725, 4
      %v2756 = vsel %vm1242, %v2753, %v2755
      %v2757 = vrot.slane %v728, 4
      %v2758 = vsel %vm1242, %v2755, %v2757
      %v2759 = vrot.slane %v730, 4
      %v2760 = vsel %vm1242, %v2757, %v2759
      %v2761 = vrot.slane %v733, 4
      %v2762 = vsel %vm1242, %v2759, %v2761
      %v2763 = vrot.slane %v735, 4
      %v2764 = vsel %vm1242, %v2761, %v2763
      %v2765 = vrot.slane %v738, 4
      %v2766 = vsel %vm1242, %v2763, %v2765
      %v2767 = vrot.slane %v740, 4
      %v2768 = vsel %vm1242, %v2765, %v2767
      %v2769 = vrot.slane %v743, 4
      %v2770 = vsel %vm1242, %v2767, %v2769
      %2771 = vrot.lane.b32.xlu0 %v2740, 64
      %v2772 = vpop.permute.xlu0 %2771
      %2773 = vrot.lane.b32.xlu0 %v2742, 64
      %v2774 = vpop.permute.xlu0 %2773
      %2775 = vrot.lane.b32.xlu0 %v2744, 64
      %v2776 = vpop.permute.xlu0 %2775
      %2777 = vrot.lane.b32.xlu0 %v2746, 64
      %v2778 = vpop.permute.xlu0 %2777
      %2779 = vrot.lane.b32.xlu0 %v2748, 64
      %v2780 = vpop.permute.xlu0 %2779
      %2781 = vrot.lane.b32.xlu0 %v2750, 64
      %v2782 = vpop.permute.xlu0 %2781
      %2783 = vrot.lane.b32.xlu0 %v2752, 64
      %v2784 = vpop.permute.xlu0 %2783
      %2785 = vrot.lane.b32.xlu0 %v2754, 64
      %v2786 = vpop.permute.xlu0 %2785
      %2787 = vrot.lane.b32.xlu0 %v2756, 64
      %v2788 = vpop.permute.xlu0 %2787
      %2789 = vrot.lane.b32.xlu0 %v2758, 64
      %v2790 = vpop.permute.xlu0 %2789
      %2791 = vrot.lane.b32.xlu0 %v2760, 64
      %v2792 = vpop.permute.xlu0 %2791
      %2793 = vrot.lane.b32.xlu0 %v2762, 64
      %v2794 = vpop.permute.xlu0 %2793
      %2795 = vrot.lane.b32.xlu0 %v2764, 64
      %v2796 = vpop.permute.xlu0 %2795
      %2797 = vrot.lane.b32.xlu0 %v2766, 64
      %v2798 = vpop.permute.xlu0 %2797
      %2799 = vrot.lane.b32.xlu0 %v2768, 64
      %v2800 = vpop.permute.xlu0 %2799
      %2801 = vrot.lane.b32.xlu0 %v2770, 64
      %v2802 = vpop.permute.xlu0 %2801
      %2803 = vrot.lane.b32.xlu0 %v2769, 64
      %v2804 = vpop.permute.xlu0 %2803
      %v2822 = vadd.f32 %v2721, %v2772
      %v2823 = vadd.f32 %v2722, %v2774
      %v2824 = vadd.f32 %v2723, %v2776
      %v2825 = vadd.f32 %v2724, %v2778
      %v2826 = vadd.f32 %v2725, %v2780
      %v2827 = vadd.f32 %v2726, %v2782
      %v2828 = vadd.f32 %v2727, %v2784
      %v2829 = vadd.f32 %v2728, %v2786
      %v2830 = vadd.f32 %v2729, %v2788
      %v2831 = vadd.f32 %v2730, %v2790
      %v2832 = vadd.f32 %v2731, %v2792
      %v2833 = vadd.f32 %v2732, %v2794
      %v2834 = vadd.f32 %v2733, %v2796
      %v2835 = vadd.f32 %v2734, %v2798
      %v2836 = vadd.f32 %v2735, %v2800
      %v2837 = vadd.f32 %v2736, %v2802
      %v2838 = vadd.f32 %v2737, %v2804
      %v2839 = vrot.slane %v703, 5
      %v2840 = vrot.slane %v705, 5
      %v2841 = vsel %vm1344, %v2839, %v2840
      %v2842 = vrot.slane %v708, 5
      %v2843 = vsel %vm1344, %v2840, %v2842
      %v2844 = vrot.slane %v710, 5
      %v2845 = vsel %vm1344, %v2842, %v2844
      %v2846 = vrot.slane %v713, 5
      %v2847 = vsel %vm1344, %v2844, %v2846
      %v2848 = vrot.slane %v715, 5
      %v2849 = vsel %vm1344, %v2846, %v2848
      %v2850 = vrot.slane %v718, 5
      %v2851 = vsel %vm1344, %v2848, %v2850
      %v2852 = vrot.slane %v720, 5
      %v2853 = vsel %vm1344, %v2850, %v2852
      %v2854 = vrot.slane %v723, 5
      %v2855 = vsel %vm1344, %v2852, %v2854
      %v2856 = vrot.slane %v725, 5
      %v2857 = vsel %vm1344, %v2854, %v2856
      %v2858 = vrot.slane %v728, 5
      %v2859 = vsel %vm1344, %v2856, %v2858
      %v2860 = vrot.slane %v730, 5
      %v2861 = vsel %vm1344, %v2858, %v2860
      %v2862 = vrot.slane %v733, 5
      %v2863 = vsel %vm1344, %v2860, %v2862
      %v2864 = vrot.slane %v735, 5
      %v2865 = vsel %vm1344, %v2862, %v2864
      %v2866 = vrot.slane %v738, 5
      %v2867 = vsel %vm1344, %v2864, %v2866
      %v2868 = vrot.slane %v740, 5
      %v2869 = vsel %vm1344, %v2866, %v2868
      %v2870 = vrot.slane %v743, 5
      %v2871 = vsel %vm1344, %v2868, %v2870
      %2872 = vrot.lane.b32.xlu0 %v2841, 56
      %v2873 = vpop.permute.xlu0 %2872
      %2874 = vrot.lane.b32.xlu0 %v2843, 56
      %v2875 = vpop.permute.xlu0 %2874
      %2876 = vrot.lane.b32.xlu0 %v2845, 56
      %v2877 = vpop.permute.xlu0 %2876
      %2878 = vrot.lane.b32.xlu0 %v2847, 56
      %v2879 = vpop.permute.xlu0 %2878
      %2880 = vrot.lane.b32.xlu0 %v2849, 56
      %v2881 = vpop.permute.xlu0 %2880
      %2882 = vrot.lane.b32.xlu0 %v2851, 56
      %v2883 = vpop.permute.xlu0 %2882
      %2884 = vrot.lane.b32.xlu0 %v2853, 56
      %v2885 = vpop.permute.xlu0 %2884
      %2886 = vrot.lane.b32.xlu0 %v2855, 56
      %v2887 = vpop.permute.xlu0 %2886
      %2888 = vrot.lane.b32.xlu0 %v2857, 56
      %v2889 = vpop.permute.xlu0 %2888
      %2890 = vrot.lane.b32.xlu0 %v2859, 56
      %v2891 = vpop.permute.xlu0 %2890
      %2892 = vrot.lane.b32.xlu0 %v2861, 56
      %v2893 = vpop.permute.xlu0 %2892
      %2894 = vrot.lane.b32.xlu0 %v2863, 56
      %v2895 = vpop.permute.xlu0 %2894
      %2896 = vrot.lane.b32.xlu0 %v2865, 56
      %v2897 = vpop.permute.xlu0 %2896
      %2898 = vrot.lane.b32.xlu0 %v2867, 56
      %v2899 = vpop.permute.xlu0 %2898
      %2900 = vrot.lane.b32.xlu0 %v2869, 56
      %v2901 = vpop.permute.xlu0 %2900
      %2902 = vrot.lane.b32.xlu0 %v2871, 56
      %v2903 = vpop.permute.xlu0 %2902
      %2904 = vrot.lane.b32.xlu0 %v2870, 56
      %v2905 = vpop.permute.xlu0 %2904
      %v2923 = vadd.f32 %v2822, %v2873
      %v2924 = vadd.f32 %v2823, %v2875
      %v2925 = vadd.f32 %v2824, %v2877
      %v2926 = vadd.f32 %v2825, %v2879
      %v2927 = vadd.f32 %v2826, %v2881
      %v2928 = vadd.f32 %v2827, %v2883
      %v2929 = vadd.f32 %v2828, %v2885
      %v2930 = vadd.f32 %v2829, %v2887
      %v2931 = vadd.f32 %v2830, %v2889
      %v2932 = vadd.f32 %v2831, %v2891
      %v2933 = vadd.f32 %v2832, %v2893
      %v2934 = vadd.f32 %v2833, %v2895
      %v2935 = vadd.f32 %v2834, %v2897
      %v2936 = vadd.f32 %v2835, %v2899
      %v2937 = vadd.f32 %v2836, %v2901
      %v2938 = vadd.f32 %v2837, %v2903
      %v2939 = vadd.f32 %v2838, %v2905
      %v2940 = vrot.slane %v743, 6
      %v2941 = vsel %vm967, %v2496, %v2940
      %2942 = vrot.lane.b32.xlu0 %v2469, 48
      %v2943 = vpop.permute.xlu0 %2942
      %2944 = vrot.lane.b32.xlu0 %v2471, 48
      %v2945 = vpop.permute.xlu0 %2944
      %2946 = vrot.lane.b32.xlu0 %v2473, 48
      %v2947 = vpop.permute.xlu0 %2946
      %2948 = vrot.lane.b32.xlu0 %v2475, 48
      %v2949 = vpop.permute.xlu0 %2948
      %2950 = vrot.lane.b32.xlu0 %v2477, 48
      %v2951 = vpop.permute.xlu0 %2950
      %2952 = vrot.lane.b32.xlu0 %v2479, 48
      %v2953 = vpop.permute.xlu0 %2952
      %2954 = vrot.lane.b32.xlu0 %v2481, 48
      %v2955 = vpop.permute.xlu0 %2954
      %2956 = vrot.lane.b32.xlu0 %v2483, 48
      %v2957 = vpop.permute.xlu0 %2956
      %2958 = vrot.lane.b32.xlu0 %v2485, 48
      %v2959 = vpop.permute.xlu0 %2958
      %2960 = vrot.lane.b32.xlu0 %v2487, 48
      %v2961 = vpop.permute.xlu0 %2960
      %2962 = vrot.lane.b32.xlu0 %v2489, 48
      %v2963 = vpop.permute.xlu0 %2962
      %2964 = vrot.lane.b32.xlu0 %v2491, 48
      %v2965 = vpop.permute.xlu0 %2964
      %2966 = vrot.lane.b32.xlu0 %v2493, 48
      %v2967 = vpop.permute.xlu0 %2966
      %2968 = vrot.lane.b32.xlu0 %v2495, 48
      %v2969 = vpop.permute.xlu0 %2968
      %2970 = vrot.lane.b32.xlu0 %v2497, 48
      %v2971 = vpop.permute.xlu0 %2970
      %2972 = vrot.lane.b32.xlu0 %v2941, 48
      %v2973 = vpop.permute.xlu0 %2972
      %2974 = vrot.lane.b32.xlu0 %v2940, 48
      %v2975 = vpop.permute.xlu0 %2974
      %v2993 = vadd.f32 %v2923, %v2943
      %v2994 = vadd.f32 %v2924, %v2945
      %v2995 = vadd.f32 %v2925, %v2947
      %v2996 = vadd.f32 %v2926, %v2949
      %v2997 = vadd.f32 %v2927, %v2951
      %v2998 = vadd.f32 %v2928, %v2953
      %v2999 = vadd.f32 %v2929, %v2955
      %v3000 = vadd.f32 %v2930, %v2957
      %v3001 = vadd.f32 %v2931, %v2959
      %v3002 = vadd.f32 %v2932, %v2961
      %v3003 = vadd.f32 %v2933, %v2963
      %v3004 = vadd.f32 %v2934, %v2965
      %v3005 = vadd.f32 %v2935, %v2967
      %v3006 = vadd.f32 %v2936, %v2969
      %v3007 = vadd.f32 %v2937, %v2971
      %v3008 = vadd.f32 %v2938, %v2973
      %v3009 = vadd.f32 %v2939, %v2975
      %vm3010 = vcmask 64512
      %3011 = vst.msk [vmem:[%s224] sm:$0xff] %vm3010, %v2993
      %3012 = vst.msk [vmem:[%s224 + $0x8] sm:$0xff] %vm3010, %v2994
      %3013 = vst.msk [vmem:[%s224 + $0x10] sm:$0xff] %vm3010, %v2995
      %3014 = vst.msk [vmem:[%s224 + $0x18] sm:$0xff] %vm3010, %v2996
      %3015 = vst.msk [vmem:[%s224 + $0x20] sm:$0xff] %vm3010, %v2997
      %3016 = vst.msk [vmem:[%s224 + $0x28] sm:$0xff] %vm3010, %v2998
      %3017 = vst.msk [vmem:[%s224 + $0x30] sm:$0xff] %vm3010, %v2999
      %3018 = vst.msk [vmem:[%s224 + $0x38] sm:$0xff] %vm3010, %v3000
      %3019 = vst.msk [vmem:[%s224 + $0x40] sm:$0xff] %vm3010, %v3001
      %3020 = vst.msk [vmem:[%s224 + $0x48] sm:$0xff] %vm3010, %v3002
      %3021 = vst.msk [vmem:[%s224 + $0x50] sm:$0xff] %vm3010, %v3003
      %3022 = vst.msk [vmem:[%s224 + $0x58] sm:$0xff] %vm3010, %v3004
      %3023 = vst.msk [vmem:[%s224 + $0x60] sm:$0xff] %vm3010, %v3005
      %3024 = vst.msk [vmem:[%s224 + $0x68] sm:$0xff] %vm3010, %v3006
      %3025 = vst.msk [vmem:[%s224 + $0x70] sm:$0xff] %vm3010, %v3007
      %3026 = vst.msk [vmem:[%s224 + $0x78] sm:$0xff] %vm3010, %v3008
      %vm3027 = vcmask 58368
      %3028 = vst.msk [vmem:[%s224 + $0x80] sm:$0x3] %vm3027, %v3009
      %p3029 = scmp.lt.s32.totalorder %s16, 1
      %s3030 = scalar_select %p3029, %s16, 1
      %s3031 = smul.addr %s3030, 17
      %s3032 = smul.addr %s3031, 8
      %s3033 = scalar_lea.vmem %s5, %s3032
      // Predicated region
      $region41: #{densenet_forward.13} parent=39 // pred_check
        %p3034 = pneg %p144
      $region42: #{densenet_forward.13} parent=39 // pred_check_branch
        %3036 = sbr.rel (%p3034) target = $region44
      $region43: #{densenet_forward.13} parent=39 // pred_region
        _
      $region44: #{densenet_forward.13} parent=39 // pred_fallthru
        _
    $region40: #{densenet_forward.13} parent=5 // pred_fallthru
      _
    %p3037 = scmp.le.s32.totalorder 2, %s11
    // Predicated region
    $region45: #{densenet_forward.13} parent=5 // pred_check
      %p3038 = pneg %p3037
    $region46: #{densenet_forward.13} parent=5 // pred_check_branch
      %3040 = sbr.rel (%p3038) target = $region48
    $region47: #{densenet_forward.13} parent=5 // pred_region
      %s3041 = ssub.s32 %s11, 2
      // Predicated region
      $region49: #{densenet_forward.13} parent=47 // pred_check
        %p3042 = pneg %p150
      $region50: #{densenet_forward.13} parent=47 // pred_check_branch
        %3044 = sbr.rel (%p3042) target = $region52
      $region51: #{densenet_forward.13} parent=47 // pred_region
        %p3045 = scmp.lt.s32.totalorder %s17, 1
        %s3046 = scalar_select %p3045, %s17, 1
        %s3047 = smul.addr %s3046, 17
        %s3048 = smul.addr %s3047, 8
        %s3049 = scalar_lea.vmem %s5, %s3048
      $region52: #{densenet_forward.13} parent=47 // pred_fallthru
        _
    $region48: #{densenet_forward.13} parent=5 // pred_fallthru
      _
  $region6: #{densenet_forward.13} parent=0 // loop_footer
    %s15 = sadd.s32 1, %s11
  $region7: #{densenet_forward.13} parent=0 // loop_footer_branch
    %10 = sbr.rel target = $region3
  $region8: #{densenet_forward.13} parent=0 // loop_exit
    _

// kernel: densenet_forward.14
$region0: #{densenet_forward.14}
  #allocation0 [shape = 'u32[]', space=smem, size = 0x4, offset = 0x4, fixed_abs, tag = 'smem constant byte address 0x4 - core index']
  #allocation1 [shape = 'u32[72,128]{1,0:T(1,128)}', space=vmem, size = 0x9000, scoped, tag = 'internal scratch']
  #allocation2 [shape = 'f32[128,16]{1,0:T(8,128)}', space=vmem, size = 0x10000, scoped, tag = 'scratch operand']
  %s0 = inlined_call_operand.vmem [shape: f32[128,24], index: 0, kind: input, shape index: {}]
  %s1 = inlined_call_operand.vmem [shape: f32[1,24], index: 1, kind: input, shape index: {}]
  %s2 = inlined_call_operand.vmem [shape: f32[1,24], index: 2, kind: input, shape index: {}]
  %s3 = inlined_call_operand.vmem [shape: bf16[24,16], index: 3, kind: input, shape index: {}]
  %s4 = inlined_call_operand.vmem [shape: f32[128,16], index: 4, kind: output, shape index: {}]
  %s5 = sld [smem:[#allocation0]]
  $region34: #{densenet_forward.14} parent=0
    _
  %s7 = ssub.s32 1, %s5
  %s8 = scalar_select 0, %s7, %s5
  // Predicated region
  $region2: #{densenet_forward.14} parent=0 // pred_check
    _
  $region3: #{densenet_forward.14} parent=0 // pred_check_branch
    %10 = sbr.rel (0) target = $region5
  $region4: #{densenet_forward.14} parent=0 // pred_region
    _
  $region5: #{densenet_forward.14} parent=0 // pred_fallthru
    _
  // Predicated region
  $region6: #{densenet_forward.14} parent=0 // pred_check
    _
  $region7: #{densenet_forward.14} parent=0 // pred_check_branch
    %12 = sbr.rel (0) target = $region9
  $region8: #{densenet_forward.14} parent=0 // pred_region
    _
  $region9: #{densenet_forward.14} parent=0 // pred_fallthru
    _
  // Predicated region
  $region10: #{densenet_forward.14} parent=0 // pred_check
    _
  $region11: #{densenet_forward.14} parent=0 // pred_check_branch
    %14 = sbr.rel (0) target = $region13
  $region12: #{densenet_forward.14} parent=0 // pred_region
    _
  $region13: #{densenet_forward.14} parent=0 // pred_fallthru
    _
  // Predicated region
  $region14: #{densenet_forward.14} parent=0 // pred_check
    _
  $region15: #{densenet_forward.14} parent=0 // pred_check_branch
    %16 = sbr.rel (0) target = $region17
  $region16: #{densenet_forward.14} parent=0 // pred_region
    _
  $region17: #{densenet_forward.14} parent=0 // pred_fallthru
    _
  %p18 = scmp.eq.s32.totalorder 0, 0
  // Predicated region
  $region18: #{densenet_forward.14} parent=0 // pred_check
    %p19 = pneg %p18
  $region19: #{densenet_forward.14} parent=0 // pred_check_branch
    %21 = sbr.rel (%p19) target = $region21
  $region20: #{densenet_forward.14} parent=0 // pred_region
    %vm22 = vcmask 130048
    %23 = vst.msk [vmem:[#allocation2] sm:$0xff] %vm22, 0.0
    %24 = vst.msk [vmem:[#allocation2 + $0x8] sm:$0xff] %vm22, 0.0
    %25 = vst.msk [vmem:[#allocation2 + $0x10] sm:$0xff] %vm22, 0.0
    %26 = vst.msk [vmem:[#allocation2 + $0x18] sm:$0xff] %vm22, 0.0
    %27 = vst.msk [vmem:[#allocation2 + $0x20] sm:$0xff] %vm22, 0.0
    %28 = vst.msk [vmem:[#allocation2 + $0x28] sm:$0xff] %vm22, 0.0
    %29 = vst.msk [vmem:[#allocation2 + $0x30] sm:$0xff] %vm22, 0.0
    %30 = vst.msk [vmem:[#allocation2 + $0x38] sm:$0xff] %vm22, 0.0
    %31 = vst.msk [vmem:[#allocation2 + $0x40] sm:$0xff] %vm22, 0.0
    %32 = vst.msk [vmem:[#allocation2 + $0x48] sm:$0xff] %vm22, 0.0
    %33 = vst.msk [vmem:[#allocation2 + $0x50] sm:$0xff] %vm22, 0.0
    %34 = vst.msk [vmem:[#allocation2 + $0x58] sm:$0xff] %vm22, 0.0
    %35 = vst.msk [vmem:[#allocation2 + $0x60] sm:$0xff] %vm22, 0.0
    %36 = vst.msk [vmem:[#allocation2 + $0x68] sm:$0xff] %vm22, 0.0
    %37 = vst.msk [vmem:[#allocation2 + $0x70] sm:$0xff] %vm22, 0.0
    %38 = vst.msk [vmem:[#allocation2 + $0x78] sm:$0xff] %vm22, 0.0
  $region21: #{densenet_forward.14} parent=0 // pred_fallthru
    _
  %v39 = vld [vmem:[%s0] sm:$0xff]
  %v40 = vld [vmem:[%s0 + $0x8] sm:$0xff]
  %v41 = vld [vmem:[%s0 + $0x10] sm:$0xff]
  %v42 = vld [vmem:[%s0 + $0x18] sm:$0xff]
  %v43 = vld [vmem:[%s0 + $0x20] sm:$0xff]
  %v44 = vld [vmem:[%s0 + $0x28] sm:$0xff]
  %v45 = vld [vmem:[%s0 + $0x30] sm:$0xff]
  %v46 = vld [vmem:[%s0 + $0x38] sm:$0xff]
  %v47 = vld [vmem:[%s0 + $0x40] sm:$0xff]
  %v48 = vld [vmem:[%s0 + $0x48] sm:$0xff]
  %v49 = vld [vmem:[%s0 + $0x50] sm:$0xff]
  %v50 = vld [vmem:[%s0 + $0x58] sm:$0xff]
  %v51 = vld [vmem:[%s0 + $0x60] sm:$0xff]
  %v52 = vld [vmem:[%s0 + $0x68] sm:$0xff]
  %v53 = vld [vmem:[%s0 + $0x70] sm:$0xff]
  %v54 = vld [vmem:[%s0 + $0x78] sm:$0xff]
  %v55 = vld [vmem:[%s1] sm:$0x1]
  %v57 = vperm.slane %v55, 0
  %v59 = vmul.f32 %v39, %v57
  %v60 = vmul.f32 %v40, %v57
  %v61 = vmul.f32 %v41, %v57
  %v62 = vmul.f32 %v42, %v57
  %v63 = vmul.f32 %v43, %v57
  %v64 = vmul.f32 %v44, %v57
  %v65 = vmul.f32 %v45, %v57
  %v66 = vmul.f32 %v46, %v57
  %v67 = vmul.f32 %v47, %v57
  %v68 = vmul.f32 %v48, %v57
  %v69 = vmul.f32 %v49, %v57
  %v70 = vmul.f32 %v50, %v57
  %v71 = vmul.f32 %v51, %v57
  %v72 = vmul.f32 %v52, %v57
  %v73 = vmul.f32 %v53, %v57
  %v74 = vmul.f32 %v54, %v57
  %v75 = vld [vmem:[%s2] sm:$0x1]
  %v77 = vperm.slane %v75, 0
  %v79 = vadd.f32 %v59, %v77
  %v80 = vadd.f32 %v60, %v77
  %v81 = vadd.f32 %v61, %v77
  %v82 = vadd.f32 %v62, %v77
  %v83 = vadd.f32 %v63, %v77
  %v84 = vadd.f32 %v64, %v77
  %v85 = vadd.f32 %v65, %v77
  %v86 = vadd.f32 %v66, %v77
  %v87 = vadd.f32 %v67, %v77
  %v88 = vadd.f32 %v68, %v77
  %v89 = vadd.f32 %v69, %v77
  %v90 = vadd.f32 %v70, %v77
  %v91 = vadd.f32 %v71, %v77
  %v92 = vadd.f32 %v72, %v77
  %v93 = vadd.f32 %v73, %v77
  %v94 = vadd.f32 %v74, %v77
  %v95 = vmax.f32 %v79, 0.0
  %v96 = vmax.f32 %v80, 0.0
  %v97 = vmax.f32 %v81, 0.0
  %v98 = vmax.f32 %v82, 0.0
  %v99 = vmax.f32 %v83, 0.0
  %v100 = vmax.f32 %v84, 0.0
  %v101 = vmax.f32 %v85, 0.0
  %v102 = vmax.f32 %v86, 0.0
  %v103 = vmax.f32 %v87, 0.0
  %v104 = vmax.f32 %v88, 0.0
  %v105 = vmax.f32 %v89, 0.0
  %v106 = vmax.f32 %v90, 0.0
  %v107 = vmax.f32 %v91, 0.0
  %v108 = vmax.f32 %v92, 0.0
  %v109 = vmax.f32 %v93, 0.0
  %v110 = vmax.f32 %v94, 0.0
  %v111 = vpack.c.bf16 %v96, %v95
  %v112 = vpack.c.bf16 %v98, %v97
  %v113 = vpack.c.bf16 %v100, %v99
  %v114 = vpack.c.bf16 %v102, %v101
  %v115 = vpack.c.bf16 %v104, %v103
  %v116 = vpack.c.bf16 %v106, %v105
  %v117 = vpack.c.bf16 %v108, %v107
  %v118 = vpack.c.bf16 %v110, %v109
  %v119 = vld [vmem:[#allocation2] sm:$0xff]
  %v120 = vld [vmem:[#allocation2 + $0x8] sm:$0xff]
  %v121 = vld [vmem:[#allocation2 + $0x10] sm:$0xff]
  %v122 = vld [vmem:[#allocation2 + $0x18] sm:$0xff]
  %v123 = vld [vmem:[#allocation2 + $0x20] sm:$0xff]
  %v124 = vld [vmem:[#allocation2 + $0x28] sm:$0xff]
  %v125 = vld [vmem:[#allocation2 + $0x30] sm:$0xff]
  %v126 = vld [vmem:[#allocation2 + $0x38] sm:$0xff]
  %v127 = vld [vmem:[#allocation2 + $0x40] sm:$0xff]
  %v128 = vld [vmem:[#allocation2 + $0x48] sm:$0xff]
  %v129 = vld [vmem:[#allocation2 + $0x50] sm:$0xff]
  %v130 = vld [vmem:[#allocation2 + $0x58] sm:$0xff]
  %v131 = vld [vmem:[#allocation2 + $0x60] sm:$0xff]
  %v132 = vld [vmem:[#allocation2 + $0x68] sm:$0xff]
  %v133 = vld [vmem:[#allocation2 + $0x70] sm:$0xff]
  %v134 = vld [vmem:[#allocation2 + $0x78] sm:$0xff]
  %v135 = vld [vmem:[%s3] sm:$0xf]
  %v136 = vld [vmem:[%s3 + $0x4] sm:$0xf]
  %v137 = vld [vmem:[%s3 + $0x8] sm:$0xf]
  %v141 = vunpack.c.l.b16 %v135
  %v142 = vunpack.c.l.b16 %v136
  %v143 = vunpack.c.l.b16 %v137
  %v144 = vpack.c.b16 %v142, %v141
  %v145 = vpack.c.b16 %v143, %v143
  %vm147 = vcmask 195584
  %v149 = vsel %vm147, %v111, 0
  %v152 = vsel %vm147, %v112, 0
  %v155 = vsel %vm147, %v113, 0
  %v158 = vsel %vm147, %v114, 0
  %v161 = vsel %vm147, %v115, 0
  %v164 = vsel %vm147, %v116, 0
  %v167 = vsel %vm147, %v117, 0
  %v170 = vsel %vm147, %v118, 0
  %vm172 = vcmask 1043456
  %v174 = vsel %vm172, %v145, 0
  %176 = vmatpush.bf16.msra.mxu0 0
  %177 = vmatpush.bf16.msra.mxu0 0
  %178 = vmatpush.bf16.msra.mxu0 0
  %179 = vmatpush.bf16.msra.mxu0 0
  %180 = vmatpush.bf16.msra.mxu0 0
  %181 = vmatpush.bf16.msra.mxu0 0
  %182 = vmatpush.bf16.msra.mxu0 %v174
  %183 = vmatpush.bf16.msra.mxu0 %v144
  %184 = vmatmul.bf16.gmra.mxu0 %v149
  %v185 = vpop.f32.mrf.mxu0
  %v186 = vadd.f32 0.0, %v185
  %v187 = vpop.f32.mrf.mxu0
  %v188 = vadd.f32 0.0, %v187
  %189 = vmatmul.bf16.gmra.mxu0 %v152
  %v190 = vpop.f32.mrf.mxu0
  %v191 = vadd.f32 0.0, %v190
  %v192 = vpop.f32.mrf.mxu0
  %v193 = vadd.f32 0.0, %v192
  %194 = vmatmul.bf16.gmra.mxu0 %v155
  %v195 = vpop.f32.mrf.mxu0
  %v196 = vadd.f32 0.0, %v195
  %v197 = vpop.f32.mrf.mxu0
  %v198 = vadd.f32 0.0, %v197
  %199 = vmatmul.bf16.gmra.mxu0 %v158
  %v200 = vpop.f32.mrf.mxu0
  %v201 = vadd.f32 0.0, %v200
  %v202 = vpop.f32.mrf.mxu0
  %v203 = vadd.f32 0.0, %v202
  %204 = vmatmul.bf16.gmra.mxu0 %v161
  %v205 = vpop.f32.mrf.mxu0
  %v206 = vadd.f32 0.0, %v205
  %v207 = vpop.f32.mrf.mxu0
  %v208 = vadd.f32 0.0, %v207
  %209 = vmatmul.bf16.gmra.mxu0 %v164
  %v210 = vpop.f32.mrf.mxu0
  %v211 = vadd.f32 0.0, %v210
  %v212 = vpop.f32.mrf.mxu0
  %v213 = vadd.f32 0.0, %v212
  %214 = vmatmul.bf16.gmra.mxu0 %v167
  %v215 = vpop.f32.mrf.mxu0
  %v216 = vadd.f32 0.0, %v215
  %v217 = vpop.f32.mrf.mxu0
  %v218 = vadd.f32 0.0, %v217
  %219 = vmatmul.bf16.gmra.mxu0 %v170
  %v220 = vpop.f32.mrf.mxu0
  %v221 = vadd.f32 0.0, %v220
  %v222 = vpop.f32.mrf.mxu0
  %v223 = vadd.f32 0.0, %v222
  %224 = vdwg.mxu0
  %v225 = vadd.f32 %v119, %v186
  %v226 = vadd.f32 %v120, %v188
  %v227 = vadd.f32 %v121, %v191
  %v228 = vadd.f32 %v122, %v193
  %v229 = vadd.f32 %v123, %v196
  %v230 = vadd.f32 %v124, %v198
  %v231 = vadd.f32 %v125, %v201
  %v232 = vadd.f32 %v126, %v203
  %v233 = vadd.f32 %v127, %v206
  %v234 = vadd.f32 %v128, %v208
  %v235 = vadd.f32 %v129, %v211
  %v236 = vadd.f32 %v130, %v213
  %v237 = vadd.f32 %v131, %v216
  %v238 = vadd.f32 %v132, %v218
  %v239 = vadd.f32 %v133, %v221
  %v240 = vadd.f32 %v134, %v223
  %vm241 = vcmask 130048
  %242 = vst.msk [vmem:[#allocation2] sm:$0xff] %vm241, %v225
  %243 = vst.msk [vmem:[#allocation2 + $0x8] sm:$0xff] %vm241, %v226
  %244 = vst.msk [vmem:[#allocation2 + $0x10] sm:$0xff] %vm241, %v227
  %245 = vst.msk [vmem:[#allocation2 + $0x18] sm:$0xff] %vm241, %v228
  %246 = vst.msk [vmem:[#allocation2 + $0x20] sm:$0xff] %vm241, %v229
  %247 = vst.msk [vmem:[#allocation2 + $0x28] sm:$0xff] %vm241, %v230
  %248 = vst.msk [vmem:[#allocation2 + $0x30] sm:$0xff] %vm241, %v231
  %249 = vst.msk [vmem:[#allocation2 + $0x38] sm:$0xff] %vm241, %v232
  %250 = vst.msk [vmem:[#allocation2 + $0x40] sm:$0xff] %vm241, %v233
  %251 = vst.msk [vmem:[#allocation2 + $0x48] sm:$0xff] %vm241, %v234
  %252 = vst.msk [vmem:[#allocation2 + $0x50] sm:$0xff] %vm241, %v235
  %253 = vst.msk [vmem:[#allocation2 + $0x58] sm:$0xff] %vm241, %v236
  %254 = vst.msk [vmem:[#allocation2 + $0x60] sm:$0xff] %vm241, %v237
  %255 = vst.msk [vmem:[#allocation2 + $0x68] sm:$0xff] %vm241, %v238
  %256 = vst.msk [vmem:[#allocation2 + $0x70] sm:$0xff] %vm241, %v239
  %257 = vst.msk [vmem:[#allocation2 + $0x78] sm:$0xff] %vm241, %v240
  // Predicated region
  $region22: #{densenet_forward.14} parent=0 // pred_check
    %p258 = pneg %p18
  $region23: #{densenet_forward.14} parent=0 // pred_check_branch
    %260 = sbr.rel (%p258) target = $region25
  $region24: #{densenet_forward.14} parent=0 // pred_region
    %v261 = vld [vmem:[#allocation2] sm:$0xff]
    %v262 = vld [vmem:[#allocation2 + $0x8] sm:$0xff]
    %v263 = vld [vmem:[#allocation2 + $0x10] sm:$0xff]
    %v264 = vld [vmem:[#allocation2 + $0x18] sm:$0xff]
    %v265 = vld [vmem:[#allocation2 + $0x20] sm:$0xff]
    %v266 = vld [vmem:[#allocation2 + $0x28] sm:$0xff]
    %v267 = vld [vmem:[#allocation2 + $0x30] sm:$0xff]
    %v268 = vld [vmem:[#allocation2 + $0x38] sm:$0xff]
    %v269 = vld [vmem:[#allocation2 + $0x40] sm:$0xff]
    %v270 = vld [vmem:[#allocation2 + $0x48] sm:$0xff]
    %v271 = vld [vmem:[#allocation2 + $0x50] sm:$0xff]
    %v272 = vld [vmem:[#allocation2 + $0x58] sm:$0xff]
    %v273 = vld [vmem:[#allocation2 + $0x60] sm:$0xff]
    %v274 = vld [vmem:[#allocation2 + $0x68] sm:$0xff]
    %v275 = vld [vmem:[#allocation2 + $0x70] sm:$0xff]
    %v276 = vld [vmem:[#allocation2 + $0x78] sm:$0xff]
    %277 = vst.msk [vmem:[%s4] sm:$0xff] %vm241, %v261
    %278 = vst.msk [vmem:[%s4 + $0x8] sm:$0xff] %vm241, %v262
    %279 = vst.msk [vmem:[%s4 + $0x10] sm:$0xff] %vm241, %v263
    %280 = vst.msk [vmem:[%s4 + $0x18] sm:$0xff] %vm241, %v264
    %281 = vst.msk [vmem:[%s4 + $0x20] sm:$0xff] %vm241, %v265
    %282 = vst.msk [vmem:[%s4 + $0x28] sm:$0xff] %vm241, %v266
    %283 = vst.msk [vmem:[%s4 + $0x30] sm:$0xff] %vm241, %v267
    %284 = vst.msk [vmem:[%s4 + $0x38] sm:$0xff] %vm241, %v268
    %285 = vst.msk [vmem:[%s4 + $0x40] sm:$0xff] %vm241, %v269
    %286 = vst.msk [vmem:[%s4 + $0x48] sm:$0xff] %vm241, %v270
    %287 = vst.msk [vmem:[%s4 + $0x50] sm:$0xff] %vm241, %v271
    %288 = vst.msk [vmem:[%s4 + $0x58] sm:$0xff] %vm241, %v272
    %289 = vst.msk [vmem:[%s4 + $0x60] sm:$0xff] %vm241, %v273
    %290 = vst.msk [vmem:[%s4 + $0x68] sm:$0xff] %vm241, %v274
    %291 = vst.msk [vmem:[%s4 + $0x70] sm:$0xff] %vm241, %v275
    %292 = vst.msk [vmem:[%s4 + $0x78] sm:$0xff] %vm241, %v276
  $region25: #{densenet_forward.14} parent=0 // pred_fallthru
    _
  // Predicated region
  $region26: #{densenet_forward.14} parent=0 // pred_check
    _
  $region27: #{densenet_forward.14} parent=0 // pred_check_branch
    %294 = sbr.rel (0) target = $region29
  $region28: #{densenet_forward.14} parent=0 // pred_region
    _
  $region29: #{densenet_forward.14} parent=0 // pred_fallthru
    _
  // Predicated region
  $region30: #{densenet_forward.14} parent=0 // pred_check
    _
  $region31: #{densenet_forward.14} parent=0 // pred_check_branch
    %296 = sbr.rel (0) target = $region33
  $region32: #{densenet_forward.14} parent=0 // pred_region
    _
  $region33: #{densenet_forward.14} parent=0 // pred_fallthru
    _

// kernel: densenet_forward.16
$region0: #{densenet_forward.16}
  #allocation0 [shape = 'u32[]', space=smem, size = 0x4, offset = 0x4, fixed_abs, tag = 'smem constant byte address 0x4 - core index']
  #allocation1 [shape = 'u32[72,128]{1,0:T(1,128)}', space=vmem, size = 0x9000, scoped, tag = 'internal scratch']
  #allocation2 [shape = 'f32[128,16]{1,0:T(8,128)}', space=vmem, size = 0x10000, scoped, tag = 'scratch operand']
  %s0 = inlined_call_operand.vmem [shape: f32[128,32], index: 0, kind: input, shape index: {}]
  %s1 = inlined_call_operand.vmem [shape: f32[1,32], index: 1, kind: input, shape index: {}]
  %s2 = inlined_call_operand.vmem [shape: f32[1,32], index: 2, kind: input, shape index: {}]
  %s3 = inlined_call_operand.vmem [shape: bf16[32,16], index: 3, kind: input, shape index: {}]
  %s4 = inlined_call_operand.vmem [shape: f32[128,16], index: 4, kind: output, shape index: {}]
  %s5 = sld [smem:[#allocation0]]
  $region34: #{densenet_forward.16} parent=0
    _
  %s7 = ssub.s32 1, %s5
  %s8 = scalar_select 0, %s7, %s5
  // Predicated region
  $region2: #{densenet_forward.16} parent=0 // pred_check
    _
  $region3: #{densenet_forward.16} parent=0 // pred_check_branch
    %10 = sbr.rel (0) target = $region5
  $region4: #{densenet_forward.16} parent=0 // pred_region
    _
  $region5: #{densenet_forward.16} parent=0 // pred_fallthru
    _
  // Predicated region
  $region6: #{densenet_forward.16} parent=0 // pred_check
    _
  $region7: #{densenet_forward.16} parent=0 // pred_check_branch
    %12 = sbr.rel (0) target = $region9
  $region8: #{densenet_forward.16} parent=0 // pred_region
    _
  $region9: #{densenet_forward.16} parent=0 // pred_fallthru
    _
  // Predicated region
  $region10: #{densenet_forward.16} parent=0 // pred_check
    _
  $region11: #{densenet_forward.16} parent=0 // pred_check_branch
    %14 = sbr.rel (0) target = $region13
  $region12: #{densenet_forward.16} parent=0 // pred_region
    _
  $region13: #{densenet_forward.16} parent=0 // pred_fallthru
    _
  // Predicated region
  $region14: #{densenet_forward.16} parent=0 // pred_check
    _
  $region15: #{densenet_forward.16} parent=0 // pred_check_branch
    %16 = sbr.rel (0) target = $region17
  $region16: #{densenet_forward.16} parent=0 // pred_region
    _
  $region17: #{densenet_forward.16} parent=0 // pred_fallthru
    _
  %p18 = scmp.eq.s32.totalorder 0, 0
  // Predicated region
  $region18: #{densenet_forward.16} parent=0 // pred_check
    %p19 = pneg %p18
  $region19: #{densenet_forward.16} parent=0 // pred_check_branch
    %21 = sbr.rel (%p19) target = $region21
  $region20: #{densenet_forward.16} parent=0 // pred_region
    %vm22 = vcmask 130048
    %23 = vst.msk [vmem:[#allocation2] sm:$0xff] %vm22, 0.0
    %24 = vst.msk [vmem:[#allocation2 + $0x8] sm:$0xff] %vm22, 0.0
    %25 = vst.msk [vmem:[#allocation2 + $0x10] sm:$0xff] %vm22, 0.0
    %26 = vst.msk [vmem:[#allocation2 + $0x18] sm:$0xff] %vm22, 0.0
    %27 = vst.msk [vmem:[#allocation2 + $0x20] sm:$0xff] %vm22, 0.0
    %28 = vst.msk [vmem:[#allocation2 + $0x28] sm:$0xff] %vm22, 0.0
    %29 = vst.msk [vmem:[#allocation2 + $0x30] sm:$0xff] %vm22, 0.0
    %30 = vst.msk [vmem:[#allocation2 + $0x38] sm:$0xff] %vm22, 0.0
    %31 = vst.msk [vmem:[#allocation2 + $0x40] sm:$0xff] %vm22, 0.0
    %32 = vst.msk [vmem:[#allocation2 + $0x48] sm:$0xff] %vm22, 0.0
    %33 = vst.msk [vmem:[#allocation2 + $0x50] sm:$0xff] %vm22, 0.0
    %34 = vst.msk [vmem:[#allocation2 + $0x58] sm:$0xff] %vm22, 0.0
    %35 = vst.msk [vmem:[#allocation2 + $0x60] sm:$0xff] %vm22, 0.0
    %36 = vst.msk [vmem:[#allocation2 + $0x68] sm:$0xff] %vm22, 0.0
    %37 = vst.msk [vmem:[#allocation2 + $0x70] sm:$0xff] %vm22, 0.0
    %38 = vst.msk [vmem:[#allocation2 + $0x78] sm:$0xff] %vm22, 0.0
  $region21: #{densenet_forward.16} parent=0 // pred_fallthru
    _
  %v39 = vld [vmem:[%s0] sm:$0xff]
  %v40 = vld [vmem:[%s0 + $0x8] sm:$0xff]
  %v41 = vld [vmem:[%s0 + $0x10] sm:$0xff]
  %v42 = vld [vmem:[%s0 + $0x18] sm:$0xff]
  %v43 = vld [vmem:[%s0 + $0x20] sm:$0xff]
  %v44 = vld [vmem:[%s0 + $0x28] sm:$0xff]
  %v45 = vld [vmem:[%s0 + $0x30] sm:$0xff]
  %v46 = vld [vmem:[%s0 + $0x38] sm:$0xff]
  %v47 = vld [vmem:[%s0 + $0x40] sm:$0xff]
  %v48 = vld [vmem:[%s0 + $0x48] sm:$0xff]
  %v49 = vld [vmem:[%s0 + $0x50] sm:$0xff]
  %v50 = vld [vmem:[%s0 + $0x58] sm:$0xff]
  %v51 = vld [vmem:[%s0 + $0x60] sm:$0xff]
  %v52 = vld [vmem:[%s0 + $0x68] sm:$0xff]
  %v53 = vld [vmem:[%s0 + $0x70] sm:$0xff]
  %v54 = vld [vmem:[%s0 + $0x78] sm:$0xff]
  %v55 = vld [vmem:[%s1] sm:$0x1]
  %v57 = vperm.slane %v55, 0
  %v59 = vmul.f32 %v39, %v57
  %v60 = vmul.f32 %v40, %v57
  %v61 = vmul.f32 %v41, %v57
  %v62 = vmul.f32 %v42, %v57
  %v63 = vmul.f32 %v43, %v57
  %v64 = vmul.f32 %v44, %v57
  %v65 = vmul.f32 %v45, %v57
  %v66 = vmul.f32 %v46, %v57
  %v67 = vmul.f32 %v47, %v57
  %v68 = vmul.f32 %v48, %v57
  %v69 = vmul.f32 %v49, %v57
  %v70 = vmul.f32 %v50, %v57
  %v71 = vmul.f32 %v51, %v57
  %v72 = vmul.f32 %v52, %v57
  %v73 = vmul.f32 %v53, %v57
  %v74 = vmul.f32 %v54, %v57
  %v75 = vld [vmem:[%s2] sm:$0x1]
  %v77 = vperm.slane %v75, 0
  %v79 = vadd.f32 %v59, %v77
  %v80 = vadd.f32 %v60, %v77
  %v81 = vadd.f32 %v61, %v77
  %v82 = vadd.f32 %v62, %v77
  %v83 = vadd.f32 %v63, %v77
  %v84 = vadd.f32 %v64, %v77
  %v85 = vadd.f32 %v65, %v77
  %v86 = vadd.f32 %v66, %v77
  %v87 = vadd.f32 %v67, %v77
  %v88 = vadd.f32 %v68, %v77
  %v89 = vadd.f32 %v69, %v77
  %v90 = vadd.f32 %v70, %v77
  %v91 = vadd.f32 %v71, %v77
  %v92 = vadd.f32 %v72, %v77
  %v93 = vadd.f32 %v73, %v77
  %v94 = vadd.f32 %v74, %v77
  %v95 = vmax.f32 %v79, 0.0
  %v96 = vmax.f32 %v80, 0.0
  %v97 = vmax.f32 %v81, 0.0
  %v98 = vmax.f32 %v82, 0.0
  %v99 = vmax.f32 %v83, 0.0
  %v100 = vmax.f32 %v84, 0.0
  %v101 = vmax.f32 %v85, 0.0
  %v102 = vmax.f32 %v86, 0.0
  %v103 = vmax.f32 %v87, 0.0
  %v104 = vmax.f32 %v88, 0.0
  %v105 = vmax.f32 %v89, 0.0
  %v106 = vmax.f32 %v90, 0.0
  %v107 = vmax.f32 %v91, 0.0
  %v108 = vmax.f32 %v92, 0.0
  %v109 = vmax.f32 %v93, 0.0
  %v110 = vmax.f32 %v94, 0.0
  %v111 = vpack.c.bf16 %v96, %v95
  %v112 = vpack.c.bf16 %v98, %v97
  %v113 = vpack.c.bf16 %v100, %v99
  %v114 = vpack.c.bf16 %v102, %v101
  %v115 = vpack.c.bf16 %v104, %v103
  %v116 = vpack.c.bf16 %v106, %v105
  %v117 = vpack.c.bf16 %v108, %v107
  %v118 = vpack.c.bf16 %v110, %v109
  %v119 = vld [vmem:[#allocation2] sm:$0xff]
  %v120 = vld [vmem:[#allocation2 + $0x8] sm:$0xff]
  %v121 = vld [vmem:[#allocation2 + $0x10] sm:$0xff]
  %v122 = vld [vmem:[#allocation2 + $0x18] sm:$0xff]
  %v123 = vld [vmem:[#allocation2 + $0x20] sm:$0xff]
  %v124 = vld [vmem:[#allocation2 + $0x28] sm:$0xff]
  %v125 = vld [vmem:[#allocation2 + $0x30] sm:$0xff]
  %v126 = vld [vmem:[#allocation2 + $0x38] sm:$0xff]
  %v127 = vld [vmem:[#allocation2 + $0x40] sm:$0xff]
  %v128 = vld [vmem:[#allocation2 + $0x48] sm:$0xff]
  %v129 = vld [vmem:[#allocation2 + $0x50] sm:$0xff]
  %v130 = vld [vmem:[#allocation2 + $0x58] sm:$0xff]
  %v131 = vld [vmem:[#allocation2 + $0x60] sm:$0xff]
  %v132 = vld [vmem:[#allocation2 + $0x68] sm:$0xff]
  %v133 = vld [vmem:[#allocation2 + $0x70] sm:$0xff]
  %v134 = vld [vmem:[#allocation2 + $0x78] sm:$0xff]
  %v135 = vld [vmem:[%s3] sm:$0xf]
  %v136 = vld [vmem:[%s3 + $0x4] sm:$0xf]
  %v137 = vld [vmem:[%s3 + $0x8] sm:$0xf]
  %v138 = vld [vmem:[%s3 + $0xc] sm:$0xf]
  %v143 = vunpack.c.l.b16 %v135
  %v144 = vunpack.c.l.b16 %v136
  %v145 = vunpack.c.l.b16 %v137
  %v146 = vunpack.c.l.b16 %v138
  %v147 = vpack.c.b16 %v144, %v143
  %v148 = vpack.c.b16 %v146, %v145
  %vm151 = vcmask 261120
  %v153 = vsel %vm151, %v111, 0
  %v156 = vsel %vm151, %v112, 0
  %v159 = vsel %vm151, %v113, 0
  %v162 = vsel %vm151, %v114, 0
  %v165 = vsel %vm151, %v115, 0
  %v168 = vsel %vm151, %v116, 0
  %v171 = vsel %vm151, %v117, 0
  %v174 = vsel %vm151, %v118, 0
  %176 = vmatpush.bf16.msra.mxu0 0
  %177 = vmatpush.bf16.msra.mxu0 0
  %178 = vmatpush.bf16.msra.mxu0 0
  %179 = vmatpush.bf16.msra.mxu0 0
  %180 = vmatpush.bf16.msra.mxu0 0
  %181 = vmatpush.bf16.msra.mxu0 0
  %182 = vmatpush.bf16.msra.mxu0 %v148
  %183 = vmatpush.bf16.msra.mxu0 %v147
  %184 = vmatmul.bf16.gmra.mxu0 %v153
  %v185 = vpop.f32.mrf.mxu0
  %v186 = vadd.f32 0.0, %v185
  %v187 = vpop.f32.mrf.mxu0
  %v188 = vadd.f32 0.0, %v187
  %189 = vmatmul.bf16.gmra.mxu0 %v156
  %v190 = vpop.f32.mrf.mxu0
  %v191 = vadd.f32 0.0, %v190
  %v192 = vpop.f32.mrf.mxu0
  %v193 = vadd.f32 0.0, %v192
  %194 = vmatmul.bf16.gmra.mxu0 %v159
  %v195 = vpop.f32.mrf.mxu0
  %v196 = vadd.f32 0.0, %v195
  %v197 = vpop.f32.mrf.mxu0
  %v198 = vadd.f32 0.0, %v197
  %199 = vmatmul.bf16.gmra.mxu0 %v162
  %v200 = vpop.f32.mrf.mxu0
  %v201 = vadd.f32 0.0, %v200
  %v202 = vpop.f32.mrf.mxu0
  %v203 = vadd.f32 0.0, %v202
  %204 = vmatmul.bf16.gmra.mxu0 %v165
  %v205 = vpop.f32.mrf.mxu0
  %v206 = vadd.f32 0.0, %v205
  %v207 = vpop.f32.mrf.mxu0
  %v208 = vadd.f32 0.0, %v207
  %209 = vmatmul.bf16.gmra.mxu0 %v168
  %v210 = vpop.f32.mrf.mxu0
  %v211 = vadd.f32 0.0, %v210
  %v212 = vpop.f32.mrf.mxu0
  %v213 = vadd.f32 0.0, %v212
  %214 = vmatmul.bf16.gmra.mxu0 %v171
  %v215 = vpop.f32.mrf.mxu0
  %v216 = vadd.f32 0.0, %v215
  %v217 = vpop.f32.mrf.mxu0
  %v218 = vadd.f32 0.0, %v217
  %219 = vmatmul.bf16.gmra.mxu0 %v174
  %v220 = vpop.f32.mrf.mxu0
  %v221 = vadd.f32 0.0, %v220
  %v222 = vpop.f32.mrf.mxu0
  %v223 = vadd.f32 0.0, %v222
  %224 = vdwg.mxu0
  %v225 = vadd.f32 %v119, %v186
  %v226 = vadd.f32 %v120, %v188
  %v227 = vadd.f32 %v121, %v191
  %v228 = vadd.f32 %v122, %v193
  %v229 = vadd.f32 %v123, %v196
  %v230 = vadd.f32 %v124, %v198
  %v231 = vadd.f32 %v125, %v201
  %v232 = vadd.f32 %v126, %v203
  %v233 = vadd.f32 %v127, %v206
  %v234 = vadd.f32 %v128, %v208
  %v235 = vadd.f32 %v129, %v211
  %v236 = vadd.f32 %v130, %v213
  %v237 = vadd.f32 %v131, %v216
  %v238 = vadd.f32 %v132, %v218
  %v239 = vadd.f32 %v133, %v221
  %v240 = vadd.f32 %v134, %v223
  %vm241 = vcmask 130048
  %242 = vst.msk [vmem:[#allocation2] sm:$0xff] %vm241, %v225
  %243 = vst.msk [vmem:[#allocation2 + $0x8] sm:$0xff] %vm241, %v226
  %244 = vst.msk [vmem:[#allocation2 + $0x10] sm:$0xff] %vm241, %v227
  %245 = vst.msk [vmem:[#allocation2 + $0x18] sm:$0xff] %vm241, %v228
  %246 = vst.msk [vmem:[#allocation2 + $0x20] sm:$0xff] %vm241, %v229
  %247 = vst.msk [vmem:[#allocation2 + $0x28] sm:$0xff] %vm241, %v230
  %248 = vst.msk [vmem:[#allocation2 + $0x30] sm:$0xff] %vm241, %v231
  %249 = vst.msk [vmem:[#allocation2 + $0x38] sm:$0xff] %vm241, %v232
  %250 = vst.msk [vmem:[#allocation2 + $0x40] sm:$0xff] %vm241, %v233
  %251 = vst.msk [vmem:[#allocation2 + $0x48] sm:$0xff] %vm241, %v234
  %252 = vst.msk [vmem:[#allocation2 + $0x50] sm:$0xff] %vm241, %v235
  %253 = vst.msk [vmem:[#allocation2 + $0x58] sm:$0xff] %vm241, %v236
  %254 = vst.msk [vmem:[#allocation2 + $0x60] sm:$0xff] %vm241, %v237
  %255 = vst.msk [vmem:[#allocation2 + $0x68] sm:$0xff] %vm241, %v238
  %256 = vst.msk [vmem:[#allocation2 + $0x70] sm:$0xff] %vm241, %v239
  %257 = vst.msk [vmem:[#allocation2 + $0x78] sm:$0xff] %vm241, %v240
  // Predicated region
  $region22: #{densenet_forward.16} parent=0 // pred_check
    %p258 = pneg %p18
  $region23: #{densenet_forward.16} parent=0 // pred_check_branch
    %260 = sbr.rel (%p258) target = $region25
  $region24: #{densenet_forward.16} parent=0 // pred_region
    %v261 = vld [vmem:[#allocation2] sm:$0xff]
    %v262 = vld [vmem:[#allocation2 + $0x8] sm:$0xff]
    %v263 = vld [vmem:[#allocation2 + $0x10] sm:$0xff]
    %v264 = vld [vmem:[#allocation2 + $0x18] sm:$0xff]
    %v265 = vld [vmem:[#allocation2 + $0x20] sm:$0xff]
    %v266 = vld [vmem:[#allocation2 + $0x28] sm:$0xff]
    %v267 = vld [vmem:[#allocation2 + $0x30] sm:$0xff]
    %v268 = vld [vmem:[#allocation2 + $0x38] sm:$0xff]
    %v269 = vld [vmem:[#allocation2 + $0x40] sm:$0xff]
    %v270 = vld [vmem:[#allocation2 + $0x48] sm:$0xff]
    %v271 = vld [vmem:[#allocation2 + $0x50] sm:$0xff]
    %v272 = vld [vmem:[#allocation2 + $0x58] sm:$0xff]
    %v273 = vld [vmem:[#allocation2 + $0x60] sm:$0xff]
    %v274 = vld [vmem:[#allocation2 + $0x68] sm:$0xff]
    %v275 = vld [vmem:[#allocation2 + $0x70] sm:$0xff]
    %v276 = vld [vmem:[#allocation2 + $0x78] sm:$0xff]
    %277 = vst.msk [vmem:[%s4] sm:$0xff] %vm241, %v261
    %278 = vst.msk [vmem:[%s4 + $0x8] sm:$0xff] %vm241, %v262
    %279 = vst.msk [vmem:[%s4 + $0x10] sm:$0xff] %vm241, %v263
    %280 = vst.msk [vmem:[%s4 + $0x18] sm:$0xff] %vm241, %v264
    %281 = vst.msk [vmem:[%s4 + $0x20] sm:$0xff] %vm241, %v265
    %282 = vst.msk [vmem:[%s4 + $0x28] sm:$0xff] %vm241, %v266
    %283 = vst.msk [vmem:[%s4 + $0x30] sm:$0xff] %vm241, %v267
    %284 = vst.msk [vmem:[%s4 + $0x38] sm:$0xff] %vm241, %v268
    %285 = vst.msk [vmem:[%s4 + $0x40] sm:$0xff] %vm241, %v269
    %286 = vst.msk [vmem:[%s4 + $0x48] sm:$0xff] %vm241, %v270
    %287 = vst.msk [vmem:[%s4 + $0x50] sm:$0xff] %vm241, %v271
    %288 = vst.msk [vmem:[%s4 + $0x58] sm:$0xff] %vm241, %v272
    %289 = vst.msk [vmem:[%s4 + $0x60] sm:$0xff] %vm241, %v273
    %290 = vst.msk [vmem:[%s4 + $0x68] sm:$0xff] %vm241, %v274
    %291 = vst.msk [vmem:[%s4 + $0x70] sm:$0xff] %vm241, %v275
    %292 = vst.msk [vmem:[%s4 + $0x78] sm:$0xff] %vm241, %v276
  $region25: #{densenet_forward.16} parent=0 // pred_fallthru
    _
  // Predicated region
  $region26: #{densenet_forward.16} parent=0 // pred_check
    _
  $region27: #{densenet_forward.16} parent=0 // pred_check_branch
    %294 = sbr.rel (0) target = $region29
  $region28: #{densenet_forward.16} parent=0 // pred_region
    _
  $region29: #{densenet_forward.16} parent=0 // pred_fallthru
    _
  // Predicated region
  $region30: #{densenet_forward.16} parent=0 // pred_check
    _
  $region31: #{densenet_forward.16} parent=0 // pred_check_branch
    %296 = sbr.rel (0) target = $region33
  $region32: #{densenet_forward.16} parent=0 // pred_region
    _
  $region33: #{densenet_forward.16} parent=0 // pred_fallthru
    _

// kernel: densenet_forward.17
$region0: #{densenet_forward.17}
  #allocation0 [shape = 'u32[]', space=smem, size = 0x4, offset = 0x4, fixed_abs, tag = 'smem constant byte address 0x4 - core index']
  #allocation1 [shape = 'u32[72,128]{1,0:T(1,128)}', space=vmem, size = 0x9000, scoped, tag = 'internal scratch']
  #allocation2 [shape = 'f32[16,16]{1,0:T(8,128)}', space=vmem, size = 0x2000, scoped, tag = 'scratch operand']
  %s0 = inlined_call_operand.vmem [shape: f32[16,16], index: 0, kind: input, shape index: {}]
  %s1 = inlined_call_operand.vmem [shape: f32[1,16], index: 1, kind: input, shape index: {}]
  %s2 = inlined_call_operand.vmem [shape: f32[1,16], index: 2, kind: input, shape index: {}]
  %s3 = inlined_call_operand.vmem [shape: bf16[16,16], index: 3, kind: input, shape index: {}]
  %s4 = inlined_call_operand.vmem [shape: f32[16,16], index: 4, kind: output, shape index: {}]
  %s5 = sld [smem:[#allocation0]]
  $region34: #{densenet_forward.17} parent=0
    _
  %s7 = ssub.s32 1, %s5
  %s8 = scalar_select 0, %s7, %s5
  // Predicated region
  $region2: #{densenet_forward.17} parent=0 // pred_check
    _
  $region3: #{densenet_forward.17} parent=0 // pred_check_branch
    %10 = sbr.rel (0) target = $region5
  $region4: #{densenet_forward.17} parent=0 // pred_region
    _
  $region5: #{densenet_forward.17} parent=0 // pred_fallthru
    _
  // Predicated region
  $region6: #{densenet_forward.17} parent=0 // pred_check
    _
  $region7: #{densenet_forward.17} parent=0 // pred_check_branch
    %12 = sbr.rel (0) target = $region9
  $region8: #{densenet_forward.17} parent=0 // pred_region
    _
  $region9: #{densenet_forward.17} parent=0 // pred_fallthru
    _
  // Predicated region
  $region10: #{densenet_forward.17} parent=0 // pred_check
    _
  $region11: #{densenet_forward.17} parent=0 // pred_check_branch
    %14 = sbr.rel (0) target = $region13
  $region12: #{densenet_forward.17} parent=0 // pred_region
    _
  $region13: #{densenet_forward.17} parent=0 // pred_fallthru
    _
  // Predicated region
  $region14: #{densenet_forward.17} parent=0 // pred_check
    _
  $region15: #{densenet_forward.17} parent=0 // pred_check_branch
    %16 = sbr.rel (0) target = $region17
  $region16: #{densenet_forward.17} parent=0 // pred_region
    _
  $region17: #{densenet_forward.17} parent=0 // pred_fallthru
    _
  %p18 = scmp.eq.s32.totalorder 0, 0
  // Predicated region
  $region18: #{densenet_forward.17} parent=0 // pred_check
    %p19 = pneg %p18
  $region19: #{densenet_forward.17} parent=0 // pred_check_branch
    %21 = sbr.rel (%p19) target = $region21
  $region20: #{densenet_forward.17} parent=0 // pred_region
    %vm22 = vcmask 130048
    %23 = vst.msk [vmem:[#allocation2] sm:$0xff] %vm22, 0.0
    %24 = vst.msk [vmem:[#allocation2 + $0x8] sm:$0xff] %vm22, 0.0
  $region21: #{densenet_forward.17} parent=0 // pred_fallthru
    _
  %v25 = vld [vmem:[%s0] sm:$0xff]
  %v26 = vld [vmem:[%s0 + $0x8] sm:$0xff]
  %v27 = vld [vmem:[%s1] sm:$0x1]
  %v29 = vperm.slane %v27, 0
  %v31 = vmul.f32 %v25, %v29
  %v32 = vmul.f32 %v26, %v29
  %v33 = vld [vmem:[%s2] sm:$0x1]
  %v35 = vperm.slane %v33, 0
  %v37 = vadd.f32 %v31, %v35
  %v38 = vadd.f32 %v32, %v35
  %v39 = vmax.f32 %v37, 0.0
  %v40 = vmax.f32 %v38, 0.0
  %v41 = vpack.c.bf16 %v40, %v39
  %v42 = vld [vmem:[#allocation2] sm:$0xff]
  %v43 = vld [vmem:[#allocation2 + $0x8] sm:$0xff]
  %v44 = vld [vmem:[%s3] sm:$0xf]
  %v45 = vld [vmem:[%s3 + $0x4] sm:$0xf]
  %v48 = vunpack.c.l.b16 %v44
  %v49 = vunpack.c.l.b16 %v45
  %v50 = vpack.c.b16 %v49, %v48
  %vm52 = vcmask 130048
  %v54 = vsel %vm52, %v41, 0
  %56 = vmatpush.bf16.msra.mxu0 0
  %57 = vmatpush.bf16.msra.mxu0 0
  %58 = vmatpush.bf16.msra.mxu0 0
  %59 = vmatpush.bf16.msra.mxu0 0
  %60 = vmatpush.bf16.msra.mxu0 0
  %61 = vmatpush.bf16.msra.mxu0 0
  %62 = vmatpush.bf16.msra.mxu0 0
  %63 = vmatpush.bf16.msra.mxu0 %v50
  %64 = vmatmul.bf16.gmra.mxu0 %v54
  %v65 = vpop.f32.mrf.mxu0
  %v66 = vadd.f32 0.0, %v65
  %v67 = vpop.f32.mrf.mxu0
  %v68 = vadd.f32 0.0, %v67
  %69 = vdwg.mxu0
  %v70 = vadd.f32 %v42, %v66
  %v71 = vadd.f32 %v43, %v68
  %72 = vst.msk [vmem:[#allocation2] sm:$0xff] %vm52, %v70
  %73 = vst.msk [vmem:[#allocation2 + $0x8] sm:$0xff] %vm52, %v71
  // Predicated region
  $region22: #{densenet_forward.17} parent=0 // pred_check
    %p74 = pneg %p18
  $region23: #{densenet_forward.17} parent=0 // pred_check_branch
    %76 = sbr.rel (%p74) target = $region25
  $region24: #{densenet_forward.17} parent=0 // pred_region
    %v77 = vld [vmem:[#allocation2] sm:$0xff]
    %v78 = vld [vmem:[#allocation2 + $0x8] sm:$0xff]
    %79 = vst.msk [vmem:[%s4] sm:$0xff] %vm52, %v77
    %80 = vst.msk [vmem:[%s4 + $0x8] sm:$0xff] %vm52, %v78
  $region25: #{densenet_forward.17} parent=0 // pred_fallthru
    _
  // Predicated region
  $region26: #{densenet_forward.17} parent=0 // pred_check
    _
  $region27: #{densenet_forward.17} parent=0 // pred_check_branch
    %82 = sbr.rel (0) target = $region29
  $region28: #{densenet_forward.17} parent=0 // pred_region
    _
  $region29: #{densenet_forward.17} parent=0 // pred_fallthru
    _
  // Predicated region
  $region30: #{densenet_forward.17} parent=0 // pred_check
    _
  $region31: #{densenet_forward.17} parent=0 // pred_check_branch
    %84 = sbr.rel (0) target = $region33
  $region32: #{densenet_forward.17} parent=0 // pred_region
    _
  $region33: #{densenet_forward.17} parent=0 // pred_fallthru
    _

// kernel: densenet_forward.19
$region0: #{densenet_forward.19}
  #allocation0 [shape = 'u32[]', space=smem, size = 0x4, offset = 0x4, fixed_abs, tag = 'smem constant byte address 0x4 - core index']
  #allocation1 [shape = 'u32[72,128]{1,0:T(1,128)}', space=vmem, size = 0x9000, scoped, tag = 'internal scratch']
  #allocation2 [shape = 'f32[16,16]{1,0:T(8,128)}', space=vmem, size = 0x2000, scoped, tag = 'scratch operand']
  %s0 = inlined_call_operand.vmem [shape: f32[16,24], index: 0, kind: input, shape index: {}]
  %s1 = inlined_call_operand.vmem [shape: f32[1,24], index: 1, kind: input, shape index: {}]
  %s2 = inlined_call_operand.vmem [shape: f32[1,24], index: 2, kind: input, shape index: {}]
  %s3 = inlined_call_operand.vmem [shape: bf16[24,16], index: 3, kind: input, shape index: {}]
  %s4 = inlined_call_operand.vmem [shape: f32[16,16], index: 4, kind: output, shape index: {}]
  %s5 = sld [smem:[#allocation0]]
  $region34: #{densenet_forward.19} parent=0
    _
  %s7 = ssub.s32 1, %s5
  %s8 = scalar_select 0, %s7, %s5
  // Predicated region
  $region2: #{densenet_forward.19} parent=0 // pred_check
    _
  $region3: #{densenet_forward.19} parent=0 // pred_check_branch
    %10 = sbr.rel (0) target = $region5
  $region4: #{densenet_forward.19} parent=0 // pred_region
    _
  $region5: #{densenet_forward.19} parent=0 // pred_fallthru
    _
  // Predicated region
  $region6: #{densenet_forward.19} parent=0 // pred_check
    _
  $region7: #{densenet_forward.19} parent=0 // pred_check_branch
    %12 = sbr.rel (0) target = $region9
  $region8: #{densenet_forward.19} parent=0 // pred_region
    _
  $region9: #{densenet_forward.19} parent=0 // pred_fallthru
    _
  // Predicated region
  $region10: #{densenet_forward.19} parent=0 // pred_check
    _
  $region11: #{densenet_forward.19} parent=0 // pred_check_branch
    %14 = sbr.rel (0) target = $region13
  $region12: #{densenet_forward.19} parent=0 // pred_region
    _
  $region13: #{densenet_forward.19} parent=0 // pred_fallthru
    _
  // Predicated region
  $region14: #{densenet_forward.19} parent=0 // pred_check
    _
  $region15: #{densenet_forward.19} parent=0 // pred_check_branch
    %16 = sbr.rel (0) target = $region17
  $region16: #{densenet_forward.19} parent=0 // pred_region
    _
  $region17: #{densenet_forward.19} parent=0 // pred_fallthru
    _
  %p18 = scmp.eq.s32.totalorder 0, 0
  // Predicated region
  $region18: #{densenet_forward.19} parent=0 // pred_check
    %p19 = pneg %p18
  $region19: #{densenet_forward.19} parent=0 // pred_check_branch
    %21 = sbr.rel (%p19) target = $region21
  $region20: #{densenet_forward.19} parent=0 // pred_region
    %vm22 = vcmask 130048
    %23 = vst.msk [vmem:[#allocation2] sm:$0xff] %vm22, 0.0
    %24 = vst.msk [vmem:[#allocation2 + $0x8] sm:$0xff] %vm22, 0.0
  $region21: #{densenet_forward.19} parent=0 // pred_fallthru
    _
  %v25 = vld [vmem:[%s0] sm:$0xff]
  %v26 = vld [vmem:[%s0 + $0x8] sm:$0xff]
  %v27 = vld [vmem:[%s1] sm:$0x1]
  %v29 = vperm.slane %v27, 0
  %v31 = vmul.f32 %v25, %v29
  %v32 = vmul.f32 %v26, %v29
  %v33 = vld [vmem:[%s2] sm:$0x1]
  %v35 = vperm.slane %v33, 0
  %v37 = vadd.f32 %v31, %v35
  %v38 = vadd.f32 %v32, %v35
  %v39 = vmax.f32 %v37, 0.0
  %v40 = vmax.f32 %v38, 0.0
  %v41 = vpack.c.bf16 %v40, %v39
  %v42 = vld [vmem:[#allocation2] sm:$0xff]
  %v43 = vld [vmem:[#allocation2 + $0x8] sm:$0xff]
  %v44 = vld [vmem:[%s3] sm:$0xf]
  %v45 = vld [vmem:[%s3 + $0x4] sm:$0xf]
  %v46 = vld [vmem:[%s3 + $0x8] sm:$0xf]
  %v50 = vunpack.c.l.b16 %v44
  %v51 = vunpack.c.l.b16 %v45
  %v52 = vunpack.c.l.b16 %v46
  %v53 = vpack.c.b16 %v51, %v50
  %v54 = vpack.c.b16 %v52, %v52
  %vm56 = vcmask 195584
  %v58 = vsel %vm56, %v41, 0
  %vm60 = vcmask 1043456
  %v62 = vsel %vm60, %v54, 0
  %64 = vmatpush.bf16.msra.mxu0 0
  %65 = vmatpush.bf16.msra.mxu0 0
  %66 = vmatpush.bf16.msra.mxu0 0
  %67 = vmatpush.bf16.msra.mxu0 0
  %68 = vmatpush.bf16.msra.mxu0 0
  %69 = vmatpush.bf16.msra.mxu0 0
  %70 = vmatpush.bf16.msra.mxu0 %v62
  %71 = vmatpush.bf16.msra.mxu0 %v53
  %72 = vmatmul.bf16.gmra.mxu0 %v58
  %v73 = vpop.f32.mrf.mxu0
  %v74 = vadd.f32 0.0, %v73
  %v75 = vpop.f32.mrf.mxu0
  %v76 = vadd.f32 0.0, %v75
  %77 = vdwg.mxu0
  %v78 = vadd.f32 %v42, %v74
  %v79 = vadd.f32 %v43, %v76
  %vm80 = vcmask 130048
  %81 = vst.msk [vmem:[#allocation2] sm:$0xff] %vm80, %v78
  %82 = vst.msk [vmem:[#allocation2 + $0x8] sm:$0xff] %vm80, %v79
  // Predicated region
  $region22: #{densenet_forward.19} parent=0 // pred_check
    %p83 = pneg %p18
  $region23: #{densenet_forward.19} parent=0 // pred_check_branch
    %85 = sbr.rel (%p83) target = $region25
  $region24: #{densenet_forward.19} parent=0 // pred_region
    %v86 = vld [vmem:[#allocation2] sm:$0xff]
    %v87 = vld [vmem:[#allocation2 + $0x8] sm:$0xff]
    %88 = vst.msk [vmem:[%s4] sm:$0xff] %vm80, %v86
    %89 = vst.msk [vmem:[%s4 + $0x8] sm:$0xff] %vm80, %v87
  $region25: #{densenet_forward.19} parent=0 // pred_fallthru
    _
  // Predicated region
  $region26: #{densenet_forward.19} parent=0 // pred_check
    _
  $region27: #{densenet_forward.19} parent=0 // pred_check_branch
    %91 = sbr.rel (0) target = $region29
  $region28: #{densenet_forward.19} parent=0 // pred_region
    _
  $region29: #{densenet_forward.19} parent=0 // pred_fallthru
    _
  // Predicated region
  $region30: #{densenet_forward.19} parent=0 // pred_check
    _
  $region31: #{densenet_forward.19} parent=0 // pred_check_branch
    %93 = sbr.rel (0) target = $region33
  $region32: #{densenet_forward.19} parent=0 // pred_region
    _
  $region33: #{densenet_forward.19} parent=0 // pred_fallthru
    _

// kernel: densenet_forward.21
$region0: #{densenet_forward.21}
  #allocation0 [shape = 'u32[]', space=smem, size = 0x4, offset = 0x4, fixed_abs, tag = 'smem constant byte address 0x4 - core index']
  #allocation1 [shape = 'u32[72,128]{1,0:T(1,128)}', space=vmem, size = 0x9000, scoped, tag = 'internal scratch']
  %s0 = inlined_call_operand.vmem [shape: f32[2,8,32], index: 0, kind: input, shape index: {}]
  %s1 = inlined_call_operand.vmem [shape: f32[1,1,32], index: 1, kind: input, shape index: {}]
  %s2 = inlined_call_operand.vmem [shape: f32[1,1,32], index: 2, kind: input, shape index: {}]
  %s3 = inlined_call_operand.vmem [shape: f32[32,3], index: 3, kind: input, shape index: {}]
  %s4 = inlined_call_operand.vmem [shape: f32[1,3], index: 4, kind: input, shape index: {}]
  %s5 = inlined_call_operand.hbm [shape: f32[2,3], index: 5, kind: output, shape index: {}]
  %s6 = sld [smem:[#allocation0]]
  $region30: #{densenet_forward.21} parent=0
    _
  %s8 = ssub.s32 1, %s6
  %s9 = scalar_select 0, %s8, %s6
  $region1: #{densenet_forward.21} parent=0
    #allocation2 [shape = 'u8[1024]{0}', space=vmem, size = 0x400, scoped, tag = 'output window, operand 0, single buffered']
    #allocation3 [shape = 's32[1]{0}', space=sflag, size = 0x4, scoped, tag = 'scoped memory for densenet_forward.21']
    %10 = vsyncpa [#allocation3], 0
    // Predicated region
    $region2: #{densenet_forward.21} parent=1 // pred_check
      _
    $region3: #{densenet_forward.21} parent=1 // pred_check_branch
      %12 = sbr.rel (0) target = $region5
    $region4: #{densenet_forward.21} parent=1 // pred_region
      _
    $region5: #{densenet_forward.21} parent=1 // pred_fallthru
      _
    // Predicated region
    $region6: #{densenet_forward.21} parent=1 // pred_check
      _
    $region7: #{densenet_forward.21} parent=1 // pred_check_branch
      %14 = sbr.rel (0) target = $region9
    $region8: #{densenet_forward.21} parent=1 // pred_region
      _
    $region9: #{densenet_forward.21} parent=1 // pred_fallthru
      _
    // Predicated region
    $region10: #{densenet_forward.21} parent=1 // pred_check
      _
    $region11: #{densenet_forward.21} parent=1 // pred_check_branch
      %16 = sbr.rel (0) target = $region13
    $region12: #{densenet_forward.21} parent=1 // pred_region
      _
    $region13: #{densenet_forward.21} parent=1 // pred_fallthru
      _
    // Predicated region
    $region14: #{densenet_forward.21} parent=1 // pred_check
      _
    $region15: #{densenet_forward.21} parent=1 // pred_check_branch
      %18 = sbr.rel (0) target = $region17
    $region16: #{densenet_forward.21} parent=1 // pred_region
      _
    $region17: #{densenet_forward.21} parent=1 // pred_fallthru
      _
    // Predicated region
    $region18: #{densenet_forward.21} parent=1 // pred_check
      _
    $region19: #{densenet_forward.21} parent=1 // pred_check_branch
      %20 = sbr.rel (0) target = $region21
    $region20: #{densenet_forward.21} parent=1 // pred_region
      _
    $region21: #{densenet_forward.21} parent=1 // pred_fallthru
      _
    %v21 = vld [vmem:[%s0] sm:$0xff]
    %v22 = vld [vmem:[%s0 + $0x8] sm:$0xff]
    %v23 = vld [vmem:[%s1] sm:$0x1]
    %v25 = vperm.slane %v23, 0
    %v27 = vmul.f32 %v21, %v25
    %v28 = vmul.f32 %v22, %v25
    %v29 = vld [vmem:[%s2] sm:$0x1]
    %v31 = vperm.slane %v29, 0
    %v33 = vadd.f32 %v27, %v31
    %v34 = vadd.f32 %v28, %v31
    %v35 = vmax.f32 %v33, 0.0
    %v36 = vmax.f32 %v34, 0.0
    %vm37 = vcmask 261120
    %v38 = vsel %vm37, %v35, 0.0
    %v39 = vrot.slane %v38, 4
    %v40 = vadd.f32 %v38, %v39
    %v41 = vrot.slane %v40, 2
    %v42 = vadd.f32 %v40, %v41
    %v43 = vrot.slane %v42, 1
    %v44 = vadd.f32 %v42, %v43
    %v45 = vsel %vm37, %v36, 0.0
    %v46 = vrot.slane %v45, 4
    %v47 = vadd.f32 %v45, %v46
    %v48 = vrot.slane %v47, 2
    %v49 = vadd.f32 %v47, %v48
    %v50 = vrot.slane %v49, 1
    %v51 = vadd.f32 %v49, %v50
    %v52 = vrcp.pop 8.0
    %v53 = vmul.f32 8.0, %v52
    %v54 = vsub.f32 1.0, %v53
    %v55 = vmul.f32 %v52, %v54
    %v56 = vadd.f32 %v52, %v55
    %vm57 = vweird.f32 %v52
    %v58 = vsel %vm57, %v52, %v56
    %v59 = vmul.f32 %v44, %v58
    %v60 = vmul.f32 %v51, %v58
    %v61 = vld [vmem:[%s3] sm:$0xff]
    %v62 = vld [vmem:[%s3 + $0x8] sm:$0xff]
    %v63 = vld [vmem:[%s3 + $0x10] sm:$0xff]
    %v64 = vld [vmem:[%s3 + $0x18] sm:$0xff]
    %v65 = vld [vmem:[%s4] sm:$0x1]
    %v67 = vperm.slane %v65, 0
    %vm71 = vcmask 1041409
    %v72 = vsel %vm71, %v60, %v59
    %v73 = vsel %vm37, %v72, 0
    %75 = vmatpush.msra.mxu0 0.0
    %76 = vmatpush.msra.mxu0 0.0
    %77 = vmatpush.msra.mxu0 0.0
    %78 = vmatpush.msra.mxu0 0.0
    %79 = vmatpush.msra.mxu0 0.0
    %80 = vmatpush.msra.mxu0 0.0
    %81 = vmatpush.msra.mxu0 0.0
    %82 = vmatpush.msra.mxu0 0.0
    %83 = vmatpush.msra.mxu0 0.0
    %84 = vmatpush.msra.mxu0 0.0
    %85 = vmatpush.msra.mxu0 0.0
    %86 = vmatpush.msra.mxu0 0.0
    %87 = vmatpush.msra.mxu0 %v64
    %88 = vmatpush.msra.mxu0 %v63
    %89 = vmatpush.msra.mxu0 %v62
    %90 = vmatpush.msra.mxu0 %v61
    %91 = vmatmul.f32.gmra.mxu0 %v73
    %v92 = vpop.f32.mrf.mxu0
    %v93 = vadd.f32 %v67, %v92
    %94 = vdwg.mxu0
    %vm95 = vcmask 17408
    %96 = vst.msk [vmem:[#allocation2] sm:$0x3] %vm95, %v93
    // Predicated region
    $region22: #{densenet_forward.21} parent=1 // pred_check
      _
    $region23: #{densenet_forward.21} parent=1 // pred_check_branch
      %98 = sbr.rel (0) target = $region25
    $region24: #{densenet_forward.21} parent=1 // pred_region
      %100 = vsyncadd [#allocation3], 0
      %s102 = sshll.u32 [#allocation2], 4
      %s103 = int_to_ptr.vmem [resolvable:$true] %s102
      %s104 = sshll.u32 %s5, 4
      %s105 = int_to_ptr.hbm [resolvable:$true] %s104
      %107 = dma.vmem_to_hbm [thread:$0]  %s103, 32, %s105, [#allocation3]
    $region25: #{densenet_forward.21} parent=1 // pred_fallthru
      _
    // Predicated region
    $region26: #{densenet_forward.21} parent=1 // pred_check
      _
    $region27: #{densenet_forward.21} parent=1 // pred_check_branch
      %109 = sbr.rel (0) target = $region29
    $region28: #{densenet_forward.21} parent=1 // pred_region
      %111 = dma.done [#allocation3], 32
    $region29: #{densenet_forward.21} parent=1 // pred_fallthru
      _
    %112 = vsyncpa [#allocation3], 1

// kernel: densenet_forward.18
$region0: #{densenet_forward.18}
  #allocation0 [shape = 'u32[]', space=smem, size = 0x4, offset = 0x4, fixed_abs, tag = 'smem constant byte address 0x4 - core index']
  #allocation1 [shape = 'u32[72,128]{1,0:T(1,128)}', space=vmem, size = 0x9000, scoped, tag = 'internal scratch']
  %s0 = inlined_call_operand.vmem [shape: f32[2,64,16], index: 0, kind: input, shape index: {}]
  %s1 = inlined_call_operand.vmem [shape: f32[1,16], index: 1, kind: input, shape index: {}]
  %s2 = inlined_call_operand.vmem [shape: f32[1,16], index: 2, kind: input, shape index: {}]
  %s3 = inlined_call_operand.vmem [shape: f32[64,1], index: 3, kind: input, shape index: {}]
  %s4 = inlined_call_operand.vmem [shape: bf16[16,256], index: 4, kind: input, shape index: {}]
  %s5 = inlined_call_operand.vmem [shape: f32[2,22,8], index: 5, kind: output, shape index: {}]
  %s6 = sld [smem:[#allocation0]]
  $region53: #{densenet_forward.18} parent=0
    _
  %s8 = ssub.s32 1, %s6
  %s9 = scalar_select 0, %s8, %s6
  loop: start=0, step=1, limit=4
  $region2: #{densenet_forward.18} parent=0 // loop_pre_header
    _
  $region3: #{densenet_forward.18} parent=0 // loop_header
    %s11 = sphi 0, %s15
    %p12 = scmp.ge.s32.totalorder %s11, 4
    %s21 = sphi 0, %s23
    %s24 = sphi 0, %s21
    %s25 = sphi 0, %s24
    %s41 = sphi 0, %s25
    %s45 = sphi 0, %s45
    %s47 = sphi 0, %s45
    %s48 = sphi 0, %s47
    %s62 = sphi 0, %s48
    %s66 = sphi 0, %s66
    %s68 = sphi 0, %s66
    %s69 = sphi 0, %s68
    %s83 = sphi 0, %s69
    %s87 = sphi 0, %s87
    %s89 = sphi 0, %s87
    %s90 = sphi 0, %s89
    %s104 = sphi 0, %s90
    %s108 = sphi 0, %s108
    %s110 = sphi 0, %s108
    %s111 = sphi 0, %s110
    %s125 = sphi 0, %s111
    %s131 = sphi 0, %s133
    %s134 = sphi 0, %s131
    %s135 = sphi 0, %s134
    %s151 = sphi 0, %s135
  $region4: #{densenet_forward.18} parent=0 // loop_header_branch
    %14 = sbr.rel (%p12) target = $region8
  $region5: #{densenet_forward.18} parent=0 // loop_body
    %s16 = ssub.s32 %s11, 1
    %s17 = ssub.s32 %s11, 2
    %s18 = sadd.s32 %s11, 1
    %s19 = ssub.s32 %s11, %s18
    %p20 = scmp.eq.s32.totalorder %s19, 0
    %s22 = sadd.s32 %s21, 1
    %s23 = scalar_select %p20, %s21, %s22
    %p26 = pneg %p20
    %p27 = scmp.eq.s32.totalorder %s11, 1
    %p28 = por %p26, %p27
    %p29 = scmp.ne.s32.totalorder %s21, %s24
    %p30 = scmp.eq.s32.totalorder %s11, 0
    %p31 = por %p29, %p30
    %p32 = scmp.ne.s32.totalorder %s21, %s24
    %p33 = scmp.eq.s32.totalorder %s16, 1
    %p34 = por %p32, %p33
    %p35 = scmp.ne.s32.totalorder %s24, %s25
    %p36 = scmp.eq.s32.totalorder %s16, 0
    %p37 = por %p35, %p36
    %p38 = scmp.ne.s32.totalorder %s24, %s25
    %p39 = scmp.eq.s32.totalorder %s17, 1
    %p40 = por %p38, %p39
    %p42 = scmp.ne.s32.totalorder %s25, %s41
    %p43 = scmp.eq.s32.totalorder %s17, 0
    %p44 = por %p42, %p43
    %s46 = sadd.s32 %s45, 1
    %p49 = scmp.eq.s32.totalorder %s11, 1
    %p50 = scmp.ne.s32.totalorder %s45, %s47
    %p51 = scmp.eq.s32.totalorder %s11, 0
    %p52 = por %p50, %p51
    %p53 = scmp.ne.s32.totalorder %s45, %s47
    %p54 = scmp.eq.s32.totalorder %s16, 1
    %p55 = por %p53, %p54
    %p56 = scmp.ne.s32.totalorder %s47, %s48
    %p57 = scmp.eq.s32.totalorder %s16, 0
    %p58 = por %p56, %p57
    %p59 = scmp.ne.s32.totalorder %s47, %s48
    %p60 = scmp.eq.s32.totalorder %s17, 1
    %p61 = por %p59, %p60
    %p63 = scmp.ne.s32.totalorder %s48, %s62
    %p64 = scmp.eq.s32.totalorder %s17, 0
    %p65 = por %p63, %p64
    %s67 = sadd.s32 %s66, 1
    %p70 = scmp.eq.s32.totalorder %s11, 1
    %p71 = scmp.ne.s32.totalorder %s66, %s68
    %p72 = scmp.eq.s32.totalorder %s11, 0
    %p73 = por %p71, %p72
    %p74 = scmp.ne.s32.totalorder %s66, %s68
    %p75 = scmp.eq.s32.totalorder %s16, 1
    %p76 = por %p74, %p75
    %p77 = scmp.ne.s32.totalorder %s68, %s69
    %p78 = scmp.eq.s32.totalorder %s16, 0
    %p79 = por %p77, %p78
    %p80 = scmp.ne.s32.totalorder %s68, %s69
    %p81 = scmp.eq.s32.totalorder %s17, 1
    %p82 = por %p80, %p81
    %p84 = scmp.ne.s32.totalorder %s69, %s83
    %p85 = scmp.eq.s32.totalorder %s17, 0
    %p86 = por %p84, %p85
    %s88 = sadd.s32 %s87, 1
    %p91 = scmp.eq.s32.totalorder %s11, 1
    %p92 = scmp.ne.s32.totalorder %s87, %s89
    %p93 = scmp.eq.s32.totalorder %s11, 0
    %p94 = por %p92, %p93
    %p95 = scmp.ne.s32.totalorder %s87, %s89
    %p96 = scmp.eq.s32.totalorder %s16, 1
    %p97 = por %p95, %p96
    %p98 = scmp.ne.s32.totalorder %s89, %s90
    %p99 = scmp.eq.s32.totalorder %s16, 0
    %p100 = por %p98, %p99
    %p101 = scmp.ne.s32.totalorder %s89, %s90
    %p102 = scmp.eq.s32.totalorder %s17, 1
    %p103 = por %p101, %p102
    %p105 = scmp.ne.s32.totalorder %s90, %s104
    %p106 = scmp.eq.s32.totalorder %s17, 0
    %p107 = por %p105, %p106
    %s109 = sadd.s32 %s108, 1
    %p112 = scmp.eq.s32.totalorder %s11, 1
    %p113 = scmp.ne.s32.totalorder %s108, %s110
    %p114 = scmp.eq.s32.totalorder %s11, 0
    %p115 = por %p113, %p114
    %p116 = scmp.ne.s32.totalorder %s108, %s110
    %p117 = scmp.eq.s32.totalorder %s16, 1
    %p118 = por %p116, %p117
    %p119 = scmp.ne.s32.totalorder %s110, %s111
    %p120 = scmp.eq.s32.totalorder %s16, 0
    %p121 = por %p119, %p120
    %p122 = scmp.ne.s32.totalorder %s110, %s111
    %p123 = scmp.eq.s32.totalorder %s17, 1
    %p124 = por %p122, %p123
    %p126 = scmp.ne.s32.totalorder %s111, %s125
    %p127 = scmp.eq.s32.totalorder %s17, 0
    %p128 = por %p126, %p127
    %s129 = ssub.s32 %s11, %s18
    %p130 = scmp.eq.s32.totalorder %s129, 0
    %s132 = sadd.s32 %s131, 1
    %s133 = scalar_select %p130, %s131, %s132
    %p136 = pneg %p130
    %p137 = scmp.eq.s32.totalorder %s11, 1
    %p138 = por %p136, %p137
    %p139 = scmp.ne.s32.totalorder %s131, %s134
    %p140 = scmp.eq.s32.totalorder %s11, 0
    %p141 = por %p139, %p140
    %p142 = scmp.ne.s32.totalorder %s131, %s134
    %p143 = scmp.eq.s32.totalorder %s16, 1
    %p144 = por %p142, %p143
    %p145 = scmp.ne.s32.totalorder %s134, %s135
    %p146 = scmp.eq.s32.totalorder %s16, 0
    %p147 = por %p145, %p146
    %p148 = scmp.ne.s32.totalorder %s134, %s135
    %p149 = scmp.eq.s32.totalorder %s17, 1
    %p150 = por %p148, %p149
    %p152 = scmp.ne.s32.totalorder %s135, %s151
    %p153 = scmp.eq.s32.totalorder %s17, 0
    %p154 = por %p152, %p153
    %p155 = scmp.le.s32.totalorder 1, %s11
    %p156 = scmp.lt.s32.totalorder %s11, 3
    %p157 = pnand %p155, %p156
    %p158 = pneg %p157
    // Predicated region
    $region9: #{densenet_forward.18} parent=5 // pred_check
      _
    $region10: #{densenet_forward.18} parent=5 // pred_check_branch
      %160 = sbr.rel (%p157) target = $region12
    $region11: #{densenet_forward.18} parent=5 // pred_region
      %s161 = ssub.s32 %s11, 1
      // Predicated region
      $region13: #{densenet_forward.18} parent=11 // pred_check
        %p162 = pneg %p58
      $region14: #{densenet_forward.18} parent=11 // pred_check_branch
        %164 = sbr.rel (%p162) target = $region16
      $region15: #{densenet_forward.18} parent=11 // pred_region
        _
      $region16: #{densenet_forward.18} parent=11 // pred_fallthru
        _
      // Predicated region
      $region17: #{densenet_forward.18} parent=11 // pred_check
        %p165 = pneg %p79
      $region18: #{densenet_forward.18} parent=11 // pred_check_branch
        %167 = sbr.rel (%p165) target = $region20
      $region19: #{densenet_forward.18} parent=11 // pred_region
        _
      $region20: #{densenet_forward.18} parent=11 // pred_fallthru
        _
      // Predicated region
      $region21: #{densenet_forward.18} parent=11 // pred_check
        %p168 = pneg %p100
      $region22: #{densenet_forward.18} parent=11 // pred_check_branch
        %170 = sbr.rel (%p168) target = $region24
      $region23: #{densenet_forward.18} parent=11 // pred_region
        _
      $region24: #{densenet_forward.18} parent=11 // pred_fallthru
        _
      // Predicated region
      $region25: #{densenet_forward.18} parent=11 // pred_check
        %p171 = pneg %p121
      $region26: #{densenet_forward.18} parent=11 // pred_check_branch
        %173 = sbr.rel (%p171) target = $region28
      $region27: #{densenet_forward.18} parent=11 // pred_region
        _
      $region28: #{densenet_forward.18} parent=11 // pred_fallthru
        _
    $region12: #{densenet_forward.18} parent=5 // pred_fallthru
      _
    %p174 = scmp.lt.s32.totalorder %s11, 2
    // Predicated region
    $region29: #{densenet_forward.18} parent=5 // pred_check
      %p175 = pneg %p174
    $region30: #{densenet_forward.18} parent=5 // pred_check_branch
      %177 = sbr.rel (%p175) target = $region32
    $region31: #{densenet_forward.18} parent=5 // pred_region
      // Predicated region
      $region33: #{densenet_forward.18} parent=31 // pred_check
        %p178 = pneg %p31
      $region34: #{densenet_forward.18} parent=31 // pred_check_branch
        %180 = sbr.rel (%p178) target = $region36
      $region35: #{densenet_forward.18} parent=31 // pred_region
        %p181 = scmp.lt.s32.totalorder %s11, 1
        %s182 = scalar_select %p181, %s11, 1
        %s183 = smul.addr %s182, 8
        %s184 = smul.addr %s183, 8
        %s185 = scalar_lea.vmem %s0, %s184
      $region36: #{densenet_forward.18} parent=31 // pred_fallthru
        _
    $region32: #{densenet_forward.18} parent=5 // pred_fallthru
      _
    %p186 = scmp.le.s32.totalorder 1, %s11
    %p187 = scmp.lt.s32.totalorder %s11, 3
    %p188 = pnand %p186, %p187
    %p189 = pneg %p188
    // Predicated region
    $region37: #{densenet_forward.18} parent=5 // pred_check
      _
    $region38: #{densenet_forward.18} parent=5 // pred_check_branch
      %191 = sbr.rel (%p188) target = $region40
    $region39: #{densenet_forward.18} parent=5 // pred_region
      %s192 = ssub.s32 %s11, 1
      %p193 = scmp.lt.s32.totalorder %s16, 1
      %s194 = scalar_select %p193, %s16, 1
      %s195 = smul.addr %s194, 8
      %s196 = smul.addr %s195, 8
      %s197 = scalar_lea.vmem %s0, %s196
      %p198 = pneg %p37
      %p199 = pneg %p34
      %p200 = pneg %p58
      %p201 = pneg %p55
      %p202 = pneg %p79
      %p203 = pneg %p76
      %p204 = pneg %p100
      %p205 = pneg %p97
      %p206 = pneg %p121
      %p207 = pneg %p118
      %p208 = pneg %p147
      %p209 = pneg %p144
      %p210 = scmp.lt.s32.totalorder %s16, 1
      %s211 = scalar_select %p210, %s16, 1
      %s212 = smul.addr %s211, 3
      %s213 = smul.addr %s212, 8
      %s214 = scalar_lea.vmem %s5, %s213
      %p215 = scmp.lt.s32.totalorder %s16, 1
      %s216 = scalar_select %p215, %s16, 1
      %s217 = smul.addr %s216, 8
      %s218 = smul.addr %s217, 8
      %s219 = scalar_lea.vmem %s0, %s218
      %p220 = scmp.lt.s32.totalorder %s16, 1
      %s221 = scalar_select %p220, %s16, 1
      %s222 = smul.addr %s221, 3
      %s223 = smul.addr %s222, 8
      %s224 = scalar_lea.vmem %s5, %s223
      %v226 = vld [vmem:[%s219] sm:$0xff]
      %v227 = vld [vmem:[%s219 + $0x8] sm:$0xff]
      %v228 = vld [vmem:[%s219 + $0x10] sm:$0xff]
      %v229 = vld [vmem:[%s219 + $0x18] sm:$0xff]
      %v230 = vld [vmem:[%s219 + $0x20] sm:$0xff]
      %v231 = vld [vmem:[%s219 + $0x28] sm:$0xff]
      %v232 = vld [vmem:[%s219 + $0x30] sm:$0xff]
      %v233 = vld [vmem:[%s219 + $0x38] sm:$0xff]
      %v234 = vld [vmem:[%s1] sm:$0x1]
      %v236 = vperm.slane %v234, 0
      %v238 = vmul.f32 %v226, %v236
      %v239 = vmul.f32 %v227, %v236
      %v240 = vmul.f32 %v228, %v236
      %v241 = vmul.f32 %v229, %v236
      %v242 = vmul.f32 %v230, %v236
      %v243 = vmul.f32 %v231, %v236
      %v244 = vmul.f32 %v232, %v236
      %v245 = vmul.f32 %v233, %v236
      %v246 = vld [vmem:[%s2] sm:$0x1]
      %v248 = vperm.slane %v246, 0
      %v250 = vadd.f32 %v238, %v248
      %v251 = vadd.f32 %v239, %v248
      %v252 = vadd.f32 %v240, %v248
      %v253 = vadd.f32 %v241, %v248
      %v254 = vadd.f32 %v242, %v248
      %v255 = vadd.f32 %v243, %v248
      %v256 = vadd.f32 %v244, %v248
      %v257 = vadd.f32 %v245, %v248
      %v258 = vmax.f32 %v250, 0.0
      %v259 = vmax.f32 %v251, 0.0
      %v260 = vmax.f32 %v252, 0.0
      %v261 = vmax.f32 %v253, 0.0
      %v262 = vmax.f32 %v254, 0.0
      %v263 = vmax.f32 %v255, 0.0
      %v264 = vmax.f32 %v256, 0.0
      %v265 = vmax.f32 %v257, 0.0
      %v266 = vld [vmem:[%s3] sm:$0xff]
      %v267 = vld [vmem:[%s3 + $0x8] sm:$0xff]
      %v268 = vld [vmem:[%s3 + $0x10] sm:$0xff]
      %v269 = vld [vmem:[%s3 + $0x18] sm:$0xff]
      %v270 = vld [vmem:[%s3 + $0x20] sm:$0xff]
      %v271 = vld [vmem:[%s3 + $0x28] sm:$0xff]
      %v272 = vld [vmem:[%s3 + $0x30] sm:$0xff]
      %v273 = vld [vmem:[%s3 + $0x38] sm:$0xff]
      %275 = vset.pattern.permute.xlu0 0
      %276 = vperm.xlu0 %275, %v266
      %v277 = vpop.permute.xlu0 %276
      %280 = vset.pattern.permute.xlu0 0
      %281 = vperm.xlu0 %280, %v267
      %v282 = vpop.permute.xlu0 %281
      %285 = vset.pattern.permute.xlu0 0
      %286 = vperm.xlu0 %285, %v268
      %v287 = vpop.permute.xlu0 %286
      %290 = vset.pattern.permute.xlu0 0
      %291 = vperm.xlu0 %290, %v269
      %v292 = vpop.permute.xlu0 %291
      %295 = vset.pattern.permute.xlu0 0
      %296 = vperm.xlu0 %295, %v270
      %v297 = vpop.permute.xlu0 %296
      %300 = vset.pattern.permute.xlu0 0
      %301 = vperm.xlu0 %300, %v271
      %v302 = vpop.permute.xlu0 %301
      %305 = vset.pattern.permute.xlu0 0
      %306 = vperm.xlu0 %305, %v272
      %v307 = vpop.permute.xlu0 %306
      %310 = vset.pattern.permute.xlu0 0
      %311 = vperm.xlu0 %310, %v273
      %v312 = vpop.permute.xlu0 %311
      %v314 = vmul.f32 %v258, %v277
      %v315 = vmul.f32 %v259, %v282
      %v316 = vmul.f32 %v260, %v287
      %v317 = vmul.f32 %v261, %v292
      %v318 = vmul.f32 %v262, %v297
      %v319 = vmul.f32 %v263, %v302
      %v320 = vmul.f32 %v264, %v307
      %v321 = vmul.f32 %v265, %v312
      %v322 = vpack.c.bf16 %v315, %v314
      %v323 = vpack.c.bf16 %v317, %v316
      %v324 = vpack.c.bf16 %v319, %v318
      %v325 = vpack.c.bf16 %v321, %v320
      %v326 = vld [vmem:[%s4] sm:$0xff]
      %v327 = vld [vmem:[%s4 + $0x8] sm:$0xff]
      %v330 = vunpack.c.l.b16 %v326
      %v331 = vunpack.c.h.b16 %v326
      %v332 = vunpack.c.l.b16 %v327
      %v333 = vunpack.c.h.b16 %v327
      %v334 = vpack.c.b16 %v332, %v330
      %v335 = vpack.c.b16 %v333, %v331
      %vm338 = vcmask 130048
      %v340 = vsel %vm338, %v322, 0
      %v343 = vsel %vm338, %v323, 0
      %v346 = vsel %vm338, %v324, 0
      %v349 = vsel %vm338, %v325, 0
      %351 = vmatpush.bf16.msra.mxu0 0
      %352 = vmatpush.bf16.msra.mxu0 0
      %353 = vmatpush.bf16.msra.mxu0 0
      %354 = vmatpush.bf16.msra.mxu0 0
      %355 = vmatpush.bf16.msra.mxu0 0
      %356 = vmatpush.bf16.msra.mxu0 0
      %357 = vmatpush.bf16.msra.mxu0 0
      %358 = vmatpush.bf16.msra.mxu0 %v334
      %359 = vmatmul.bf16.gmra.mxu0 %v340
      %v360 = vpop.f32.mrf.mxu0
      %v361 = vadd.f32 0.0, %v360
      %v362 = vpop.f32.mrf.mxu0
      %v363 = vadd.f32 0.0, %v362
      %364 = vmatmul.bf16.gmra.mxu0 %v343
      %v365 = vpop.f32.mrf.mxu0
      %v366 = vadd.f32 0.0, %v365
      %v367 = vpop.f32.mrf.mxu0
      %v368 = vadd.f32 0.0, %v367
      %369 = vmatmul.bf16.gmra.mxu0 %v346
      %v370 = vpop.f32.mrf.mxu0
      %v371 = vadd.f32 0.0, %v370
      %v372 = vpop.f32.mrf.mxu0
      %v373 = vadd.f32 0.0, %v372
      %374 = vmatmul.bf16.gmra.mxu0 %v349
      %v375 = vpop.f32.mrf.mxu0
      %v376 = vpop.f32.mrf.mxu0
      %377 = vdwg.mxu0
      %378 = vmatpush.bf16.msra.mxu0 0
      %379 = vmatpush.bf16.msra.mxu0 0
      %380 = vmatpush.bf16.msra.mxu0 0
      %381 = vmatpush.bf16.msra.mxu0 0
      %382 = vmatpush.bf16.msra.mxu0 0
      %383 = vmatpush.bf16.msra.mxu0 0
      %384 = vmatpush.bf16.msra.mxu0 0
      %385 = vmatpush.bf16.msra.mxu0 %v335
      %386 = vmatmul.bf16.gmra.mxu0 %v340
      %v387 = vpop.f32.mrf.mxu0
      %v388 = vpop.f32.mrf.mxu0
      %389 = vmatmul.bf16.gmra.mxu0 %v343
      %v390 = vpop.f32.mrf.mxu0
      %v391 = vpop.f32.mrf.mxu0
      %v392 = vadd.f32 0.0, %v391
      %393 = vmatmul.bf16.gmra.mxu0 %v346
      %v394 = vpop.f32.mrf.mxu0
      %v395 = vadd.f32 0.0, %v394
      %v396 = vpop.f32.mrf.mxu0
      %v397 = vadd.f32 0.0, %v396
      %398 = vmatmul.bf16.gmra.mxu0 %v349
      %v399 = vpop.f32.mrf.mxu0
      %v400 = vadd.f32 0.0, %v399
      %v401 = vpop.f32.mrf.mxu0
      %v402 = vadd.f32 0.0, %v401
      %403 = vdwg.mxu0
      %vm407 = vcmask 1046528
      %v408 = vrot.slane %v361, 1
      %v409 = vrot.slane %v363, 1
      %v410 = vsel %vm407, %v408, %v409
      %v411 = vrot.slane %v366, 1
      %v412 = vsel %vm407, %v409, %v411
      %413 = vrot.lane.b32.xlu0 %v410, 120
      %v414 = vpop.permute.xlu0 %413
      %415 = vrot.lane.b32.xlu0 %v412, 120
      %v416 = vpop.permute.xlu0 %415
      %417 = vrot.lane.b32.xlu0 %v411, 120
      %v418 = vpop.permute.xlu0 %417
      %v422 = vadd.f32 %v361, %v414
      %v423 = vadd.f32 %v363, %v416
      %v424 = vadd.f32 %v366, %v418
      %vm425 = vcmask 1045504
      %v426 = vrot.slane %v361, 2
      %v427 = vrot.slane %v363, 2
      %v428 = vsel %vm425, %v426, %v427
      %v429 = vrot.slane %v366, 2
      %v430 = vsel %vm425, %v427, %v429
      %431 = vrot.lane.b32.xlu0 %v428, 112
      %v432 = vpop.permute.xlu0 %431
      %433 = vrot.lane.b32.xlu0 %v430, 112
      %v434 = vpop.permute.xlu0 %433
      %435 = vrot.lane.b32.xlu0 %v429, 112
      %v436 = vpop.permute.xlu0 %435
      %v440 = vadd.f32 %v422, %v432
      %v441 = vadd.f32 %v423, %v434
      %v442 = vadd.f32 %v424, %v436
      %vm444 = vcmask 1043456
      %v445 = vrot.slane %v361, 4
      %v446 = vrot.slane %v363, 4
      %v447 = vsel %vm444, %v445, %v446
      %v448 = vrot.slane %v366, 4
      %v449 = vsel %vm444, %v446, %v448
      %v450 = vrot.slane %v368, 4
      %v451 = vsel %vm444, %v448, %v450
      %452 = vrot.lane.b32.xlu0 %v447, 104
      %v453 = vpop.permute.xlu0 %452
      %454 = vrot.lane.b32.xlu0 %v449, 104
      %v455 = vpop.permute.xlu0 %454
      %456 = vrot.lane.b32.xlu0 %v451, 104
      %v457 = vpop.permute.xlu0 %456
      %v461 = vadd.f32 %v440, %v453
      %v462 = vadd.f32 %v441, %v455
      %v463 = vadd.f32 %v442, %v457
      %vm464 = vcmask 1042432
      %v465 = vrot.slane %v361, 5
      %v466 = vrot.slane %v363, 5
      %v467 = vsel %vm464, %v465, %v466
      %v468 = vrot.slane %v366, 5
      %v469 = vsel %vm464, %v466, %v468
      %v470 = vrot.slane %v368, 5
      %v471 = vsel %vm464, %v468, %v470
      %472 = vrot.lane.b32.xlu0 %v467, 96
      %v473 = vpop.permute.xlu0 %472
      %474 = vrot.lane.b32.xlu0 %v469, 96
      %v475 = vpop.permute.xlu0 %474
      %476 = vrot.lane.b32.xlu0 %v471, 96
      %v477 = vpop.permute.xlu0 %476
      %v481 = vadd.f32 %v461, %v473
      %v482 = vadd.f32 %v462, %v475
      %v483 = vadd.f32 %v463, %v477
      %vm484 = vcmask 1041408
      %v485 = vrot.slane %v361, 6
      %v486 = vrot.slane %v363, 6
      %v487 = vsel %vm484, %v485, %v486
      %v488 = vrot.slane %v366, 6
      %v489 = vsel %vm484, %v486, %v488
      %v490 = vrot.slane %v368, 6
      %v491 = vsel %vm484, %v488, %v490
      %492 = vrot.lane.b32.xlu0 %v487, 88
      %v493 = vpop.permute.xlu0 %492
      %494 = vrot.lane.b32.xlu0 %v489, 88
      %v495 = vpop.permute.xlu0 %494
      %496 = vrot.lane.b32.xlu0 %v491, 88
      %v497 = vpop.permute.xlu0 %496
      %v501 = vadd.f32 %v481, %v493
      %v502 = vadd.f32 %v482, %v495
      %v503 = vadd.f32 %v483, %v497
      %504 = vrot.lane.b32.xlu0 %v363, 80
      %v505 = vpop.permute.xlu0 %504
      %506 = vrot.lane.b32.xlu0 %v366, 80
      %v507 = vpop.permute.xlu0 %506
      %508 = vrot.lane.b32.xlu0 %v368, 80
      %v509 = vpop.permute.xlu0 %508
      %v513 = vadd.f32 %v501, %v505
      %v514 = vadd.f32 %v502, %v507
      %v515 = vadd.f32 %v503, %v509
      %v516 = vrot.slane %v368, 1
      %v517 = vsel %vm407, %v411, %v516
      %518 = vrot.lane.b32.xlu0 %v412, 72
      %v519 = vpop.permute.xlu0 %518
      %520 = vrot.lane.b32.xlu0 %v517, 72
      %v521 = vpop.permute.xlu0 %520
      %522 = vrot.lane.b32.xlu0 %v516, 72
      %v523 = vpop.permute.xlu0 %522
      %v527 = vadd.f32 %v513, %v519
      %v528 = vadd.f32 %v514, %v521
      %v529 = vadd.f32 %v515, %v523
      %v530 = vrot.slane %v368, 2
      %v531 = vsel %vm425, %v429, %v530
      %532 = vrot.lane.b32.xlu0 %v430, 64
      %v533 = vpop.permute.xlu0 %532
      %534 = vrot.lane.b32.xlu0 %v531, 64
      %v535 = vpop.permute.xlu0 %534
      %536 = vrot.lane.b32.xlu0 %v530, 64
      %v537 = vpop.permute.xlu0 %536
      %v541 = vadd.f32 %v527, %v533
      %v542 = vadd.f32 %v528, %v535
      %v543 = vadd.f32 %v529, %v537
      %545 = vrot.lane.b32.xlu0 %v366, 56
      %v546 = vpop.permute.xlu0 %545
      %547 = vrot.lane.b32.xlu0 %v368, 56
      %v548 = vpop.permute.xlu0 %547
      %549 = vrot.lane.b32.xlu0 %v371, 56
      %v550 = vpop.permute.xlu0 %549
      %v554 = vadd.f32 %v541, %v546
      %v555 = vadd.f32 %v542, %v548
      %v556 = vadd.f32 %v543, %v550
      %v557 = vrot.slane %v371, 1
      %v558 = vsel %vm407, %v516, %v557
      %559 = vrot.lane.b32.xlu0 %v517, 48
      %v560 = vpop.permute.xlu0 %559
      %561 = vrot.lane.b32.xlu0 %v558, 48
      %v562 = vpop.permute.xlu0 %561
      %563 = vrot.lane.b32.xlu0 %v557, 48
      %v564 = vpop.permute.xlu0 %563
      %v568 = vadd.f32 %v554, %v560
      %v569 = vadd.f32 %v555, %v562
      %v570 = vadd.f32 %v556, %v564
      %v571 = vrot.slane %v371, 2
      %v572 = vsel %vm425, %v530, %v571
      %573 = vrot.lane.b32.xlu0 %v531, 40
      %v574 = vpop.permute.xlu0 %573
      %575 = vrot.lane.b32.xlu0 %v572, 40
      %v576 = vpop.permute.xlu0 %575
      %577 = vrot.lane.b32.xlu0 %v571, 40
      %v578 = vpop.permute.xlu0 %577
      %v582 = vadd.f32 %v568, %v574
      %v583 = vadd.f32 %v569, %v576
      %v584 = vadd.f32 %v570, %v578
      %v586 = vrot.slane %v371, 4
      %v587 = vsel %vm444, %v450, %v586
      %v588 = vrot.slane %v373, 4
      %v589 = vsel %vm444, %v586, %v588
      %590 = vrot.lane.b32.xlu0 %v451, 32
      %v591 = vpop.permute.xlu0 %590
      %592 = vrot.lane.b32.xlu0 %v587, 32
      %v593 = vpop.permute.xlu0 %592
      %594 = vrot.lane.b32.xlu0 %v589, 32
      %v595 = vpop.permute.xlu0 %594
      %v599 = vadd.f32 %v582, %v591
      %v600 = vadd.f32 %v583, %v593
      %v601 = vadd.f32 %v584, %v595
      %v602 = vrot.slane %v371, 5
      %v603 = vsel %vm464, %v470, %v602
      %v604 = vrot.slane %v373, 5
      %v605 = vsel %vm464, %v602, %v604
      %606 = vrot.lane.b32.xlu0 %v471, 24
      %v607 = vpop.permute.xlu0 %606
      %608 = vrot.lane.b32.xlu0 %v603, 24
      %v609 = vpop.permute.xlu0 %608
      %610 = vrot.lane.b32.xlu0 %v605, 24
      %v611 = vpop.permute.xlu0 %610
      %v615 = vadd.f32 %v599, %v607
      %v616 = vadd.f32 %v600, %v609
      %v617 = vadd.f32 %v601, %v611
      %v618 = vrot.slane %v371, 6
      %v619 = vsel %vm484, %v490, %v618
      %v620 = vrot.slane %v373, 6
      %v621 = vsel %vm484, %v618, %v620
      %622 = vrot.lane.b32.xlu0 %v491, 16
      %v623 = vpop.permute.xlu0 %622
      %624 = vrot.lane.b32.xlu0 %v619, 16
      %v625 = vpop.permute.xlu0 %624
      %626 = vrot.lane.b32.xlu0 %v621, 16
      %v627 = vpop.permute.xlu0 %626
      %v631 = vadd.f32 %v615, %v623
      %v632 = vadd.f32 %v616, %v625
      %v633 = vadd.f32 %v617, %v627
      %634 = vrot.lane.b32.xlu0 %v368, 8
      %v635 = vpop.permute.xlu0 %634
      %636 = vrot.lane.b32.xlu0 %v371, 8
      %v637 = vpop.permute.xlu0 %636
      %638 = vrot.lane.b32.xlu0 %v373, 8
      %v639 = vpop.permute.xlu0 %638
      %v643 = vadd.f32 %v631, %v635
      %v644 = vadd.f32 %v632, %v637
      %v645 = vadd.f32 %v633, %v639
      %v649 = vrot.slane %v392, 1
      %v650 = vrot.slane %v395, 1
      %v651 = vsel %vm407, %v649, %v650
      %v652 = vrot.slane %v397, 1
      %v653 = vsel %vm407, %v650, %v652
      %v657 = vadd.f32 %v643, %v651
      %v658 = vadd.f32 %v644, %v653
      %v659 = vadd.f32 %v645, %v652
      %v660 = vrot.slane %v392, 2
      %v661 = vrot.slane %v395, 2
      %v662 = vsel %vm425, %v660, %v661
      %v663 = vrot.slane %v397, 2
      %v664 = vsel %vm425, %v661, %v663
      %665 = vrot.lane.b32.xlu0 %v662, 120
      %v666 = vpop.permute.xlu0 %665
      %667 = vrot.lane.b32.xlu0 %v664, 120
      %v668 = vpop.permute.xlu0 %667
      %669 = vrot.lane.b32.xlu0 %v663, 120
      %v670 = vpop.permute.xlu0 %669
      %v674 = vadd.f32 %v657, %v666
      %v675 = vadd.f32 %v658, %v668
      %v676 = vadd.f32 %v659, %v670
      %678 = vrot.lane.b32.xlu0 %v395, 112
      %v679 = vpop.permute.xlu0 %678
      %680 = vrot.lane.b32.xlu0 %v397, 112
      %v681 = vpop.permute.xlu0 %680
      %682 = vrot.lane.b32.xlu0 %v400, 112
      %v683 = vpop.permute.xlu0 %682
      %v687 = vadd.f32 %v674, %v679
      %v688 = vadd.f32 %v675, %v681
      %v689 = vadd.f32 %v676, %v683
      %v690 = vrot.slane %v400, 1
      %v691 = vsel %vm407, %v652, %v690
      %692 = vrot.lane.b32.xlu0 %v653, 104
      %v693 = vpop.permute.xlu0 %692
      %694 = vrot.lane.b32.xlu0 %v691, 104
      %v695 = vpop.permute.xlu0 %694
      %696 = vrot.lane.b32.xlu0 %v690, 104
      %v697 = vpop.permute.xlu0 %696
      %v701 = vadd.f32 %v687, %v693
      %v702 = vadd.f32 %v688, %v695
      %v703 = vadd.f32 %v689, %v697
      %v704 = vrot.slane %v400, 2
      %v705 = vsel %vm425, %v663, %v704
      %706 = vrot.lane.b32.xlu0 %v664, 96
      %v707 = vpop.permute.xlu0 %706
      %708 = vrot.lane.b32.xlu0 %v705, 96
      %v709 = vpop.permute.xlu0 %708
      %710 = vrot.lane.b32.xlu0 %v704, 96
      %v711 = vpop.permute.xlu0 %710
      %v715 = vadd.f32 %v701, %v707
      %v716 = vadd.f32 %v702, %v709
      %v717 = vadd.f32 %v703, %v711
      %v719 = vrot.slane %v395, 4
      %v720 = vrot.slane %v397, 4
      %v721 = vsel %vm444, %v719, %v720
      %v722 = vrot.slane %v400, 4
      %v723 = vsel %vm444, %v720, %v722
      %v724 = vrot.slane %v402, 4
      %v725 = vsel %vm444, %v722, %v724
      %726 = vrot.lane.b32.xlu0 %v721, 88
      %v727 = vpop.permute.xlu0 %726
      %728 = vrot.lane.b32.xlu0 %v723, 88
      %v729 = vpop.permute.xlu0 %728
      %730 = vrot.lane.b32.xlu0 %v725, 88
      %v731 = vpop.permute.xlu0 %730
      %v735 = vadd.f32 %v715, %v727
      %v736 = vadd.f32 %v716, %v729
      %v737 = vadd.f32 %v717, %v731
      %v738 = vrot.slane %v395, 5
      %v739 = vrot.slane %v397, 5
      %v740 = vsel %vm464, %v738, %v739
      %v741 = vrot.slane %v400, 5
      %v742 = vsel %vm464, %v739, %v741
      %v743 = vrot.slane %v402, 5
      %v744 = vsel %vm464, %v741, %v743
      %745 = vrot.lane.b32.xlu0 %v740, 80
      %v746 = vpop.permute.xlu0 %745
      %747 = vrot.lane.b32.xlu0 %v742, 80
      %v748 = vpop.permute.xlu0 %747
      %749 = vrot.lane.b32.xlu0 %v744, 80
      %v750 = vpop.permute.xlu0 %749
      %v754 = vadd.f32 %v735, %v746
      %v755 = vadd.f32 %v736, %v748
      %v756 = vadd.f32 %v737, %v750
      %v757 = vrot.slane %v395, 6
      %v758 = vrot.slane %v397, 6
      %v759 = vsel %vm484, %v757, %v758
      %v760 = vrot.slane %v400, 6
      %v761 = vsel %vm484, %v758, %v760
      %v762 = vrot.slane %v402, 6
      %v763 = vsel %vm484, %v760, %v762
      %764 = vrot.lane.b32.xlu0 %v759, 72
      %v765 = vpop.permute.xlu0 %764
      %766 = vrot.lane.b32.xlu0 %v761, 72
      %v767 = vpop.permute.xlu0 %766
      %768 = vrot.lane.b32.xlu0 %v763, 72
      %v769 = vpop.permute.xlu0 %768
      %v773 = vadd.f32 %v754, %v765
      %v774 = vadd.f32 %v755, %v767
      %v775 = vadd.f32 %v756, %v769
      %776 = vrot.lane.b32.xlu0 %v397, 64
      %v777 = vpop.permute.xlu0 %776
      %778 = vrot.lane.b32.xlu0 %v400, 64
      %v779 = vpop.permute.xlu0 %778
      %780 = vrot.lane.b32.xlu0 %v402, 64
      %v781 = vpop.permute.xlu0 %780
      %v785 = vadd.f32 %v773, %v777
      %v786 = vadd.f32 %v774, %v779
      %v787 = vadd.f32 %v775, %v781
      %v788 = vrot.slane %v402, 1
      %v789 = vsel %vm407, %v690, %v788
      %790 = vrot.lane.b32.xlu0 %v691, 56
      %v791 = vpop.permute.xlu0 %790
      %792 = vrot.lane.b32.xlu0 %v789, 56
      %v793 = vpop.permute.xlu0 %792
      %794 = vrot.lane.b32.xlu0 %v788, 56
      %v795 = vpop.permute.xlu0 %794
      %v799 = vadd.f32 %v785, %v791
      %v800 = vadd.f32 %v786, %v793
      %v801 = vadd.f32 %v787, %v795
      %v802 = vrot.slane %v402, 2
      %v803 = vsel %vm425, %v704, %v802
      %804 = vrot.lane.b32.xlu0 %v705, 48
      %v805 = vpop.permute.xlu0 %804
      %806 = vrot.lane.b32.xlu0 %v803, 48
      %v807 = vpop.permute.xlu0 %806
      %808 = vrot.lane.b32.xlu0 %v802, 48
      %v809 = vpop.permute.xlu0 %808
      %v813 = vadd.f32 %v799, %v805
      %v814 = vadd.f32 %v800, %v807
      %v815 = vadd.f32 %v801, %v809
      %vm816 = vcmask 64512
      %817 = vst.msk [vmem:[%s224] sm:$0xff] %vm816, %v813
      %818 = vst.msk [vmem:[%s224 + $0x8] sm:$0xff] %vm816, %v814
      %vm819 = vcmask 62464
      %820 = vst.msk [vmem:[%s224 + $0x10] sm:$0x3f] %vm819, %v815
      %p821 = scmp.lt.s32.totalorder %s16, 1
      %s822 = scalar_select %p821, %s16, 1
      %s823 = smul.addr %s822, 3
      %s824 = smul.addr %s823, 8
      %s825 = scalar_lea.vmem %s5, %s824
      // Predicated region
      $region41: #{densenet_forward.18} parent=39 // pred_check
        %p826 = pneg %p144
      $region42: #{densenet_forward.18} parent=39 // pred_check_branch
        %828 = sbr.rel (%p826) target = $region44
      $region43: #{densenet_forward.18} parent=39 // pred_region
        _
      $region44: #{densenet_forward.18} parent=39 // pred_fallthru
        _
    $region40: #{densenet_forward.18} parent=5 // pred_fallthru
      _
    %p829 = scmp.le.s32.totalorder 2, %s11
    // Predicated region
    $region45: #{densenet_forward.18} parent=5 // pred_check
      %p830 = pneg %p829
    $region46: #{densenet_forward.18} parent=5 // pred_check_branch
      %832 = sbr.rel (%p830) target = $region48
    $region47: #{densenet_forward.18} parent=5 // pred_region
      %s833 = ssub.s32 %s11, 2
      // Predicated region
      $region49: #{densenet_forward.18} parent=47 // pred_check
        %p834 = pneg %p150
      $region50: #{densenet_forward.18} parent=47 // pred_check_branch
        %836 = sbr.rel (%p834) target = $region52
      $region51: #{densenet_forward.18} parent=47 // pred_region
        %p837 = scmp.lt.s32.totalorder %s17, 1
        %s838 = scalar_select %p837, %s17, 1
        %s839 = smul.addr %s838, 3
        %s840 = smul.addr %s839, 8
        %s841 = scalar_lea.vmem %s5, %s840
      $region52: #{densenet_forward.18} parent=47 // pred_fallthru
        _
    $region48: #{densenet_forward.18} parent=5 // pred_fallthru
      _
  $region6: #{densenet_forward.18} parent=0 // loop_footer
    %s15 = sadd.s32 1, %s11
  $region7: #{densenet_forward.18} parent=0 // loop_footer_branch
    %10 = sbr.rel target = $region3
  $region8: #{densenet_forward.18} parent=0 // loop_exit
    _

</llo_original>
